<compile_context>
chip_gen: v7x
topology: tpu7x:2x2x1
jax: 0.10.0
libtpu: 0.0.40
codegen_flags: <defaults>
</compile_context>

<pallas_src>
import functools

import jax
import jax.numpy as jnp
from jax import lax
from jax.experimental import pallas as pl
from jax.experimental.pallas import tpu as pltpu

NEG_SLOPE = 0.01          # LeakyReLU negative slope (PyTorch default)

_VMEM_LIMIT = None


def _vmem_limit_bytes():
    """Generation-aware scoped-VMEM budget (v7x: 64 MiB, v5e/v6e: 128 MiB)."""
    global _VMEM_LIMIT
    if _VMEM_LIMIT is None:
        try:
            cap = int(pltpu.get_tpu_info().vmem_capacity_bytes)
        except Exception:  # conservative fallback that is safe on every chip
            cap = 64 * 1024 * 1024
        _VMEM_LIMIT = max(16 * 1024 * 1024, min(cap // 2, 64 * 1024 * 1024))
    return _VMEM_LIMIT


def _compiler_params():
    return pltpu.CompilerParams(dimension_semantics=("parallel",),
                                vmem_limit_bytes=_vmem_limit_bytes())


def _lane_plan(M, col_bytes, fixed_bytes):
    """Pick the lane-axis (output-column) tile for a lane-tiled GEMM.

    Returns (tile, padded_M, grid_steps); padded_M is a multiple of tile.
    The tile is the largest of (4096..128) fitting the VMEM budget while
    keeping >= 2 grid steps whenever M >= 256 (v7x megacore sharding)."""
    if M <= 128:                        # tiny case: one full block
        return M, M, 1
    budget = int(_vmem_limit_bytes() * 0.75)
    Mp = -(-M // 128) * 128
    cands = (4096, 2048, 1024, 512, 256, 128)
    fit = 128
    for t in cands:
        if fixed_bytes + col_bytes * t <= budget:
            fit = t
            break
    cap = min(fit, max(128, (Mp // 256) * 128)) if Mp >= 256 else fit
    tile = 128
    for t in cands:
        if t <= cap and Mp % t == 0:
            tile = t
            break
    return tile, Mp, Mp // tile


# ----------------------------- Pallas kernels -----------------------------

def _gemm_kernel(a_ref, b_ref, *rest, act, has_bias):
    if has_bias:
        bias_ref, o_ref = rest
    else:
        (o_ref,) = rest
    acc = jnp.dot(a_ref[...], b_ref[...], preferred_element_type=jnp.float32)
    if has_bias:
        acc = acc + bias_ref[...].astype(jnp.float32)
    if act == "leaky_relu":
        acc = jnp.where(acc >= 0.0, acc, NEG_SLOPE * acc)
    o_ref[...] = acc.astype(o_ref.dtype)


def gemm_bias_act(a, b, bias=None, bias_mode="row", act=None,
                  out_dtype=jnp.float32):
    """out = act(a @ b + bias).  a:(R,K) bf16, b:(K,M) bf16, output (R,M).

    bias_mode "row" -> bias (R,1), "lane" -> bias (1,M).  The M (lane) axis is
    tiled; the A operand and row bias stay resident across the grid."""
    R, K = a.shape
    Kb, M = b.shape
    assert K == Kb
    out_bytes = jnp.dtype(out_dtype).itemsize
    col_bytes = 2 * (K * b.dtype.itemsize + R * out_bytes)
    fixed = 2 * R * K * a.dtype.itemsize
    if bias is not None:
        bias = bias.astype(jnp.float32)
        if bias_mode == "lane":
            col_bytes += 2 * 4
        else:
            fixed += 2 * R * 4
    tile, Mp, steps = _lane_plan(M, col_bytes, fixed)
    if Mp != M:
        b = jnp.pad(b, ((0, 0), (0, Mp - M)))
        if bias is not None and bias_mode == "lane":
            bias = jnp.pad(bias, ((0, 0), (0, Mp - M)))

    in_specs = [pl.BlockSpec((R, K), lambda i: (0, 0)),
                pl.BlockSpec((K, tile), lambda i: (0, i))]
    inputs = [a, b]
    if bias is not None:
        if bias_mode == "lane":
            in_specs.append(pl.BlockSpec((1, tile), lambda i: (0, i)))
        else:
            in_specs.append(pl.BlockSpec((R, 1), lambda i: (0, 0)))
        inputs.append(bias)

    out = pl.pallas_call(
        functools.partial(_gemm_kernel, act=act, has_bias=bias is not None),
        out_shape=jax.ShapeDtypeStruct((R, Mp), out_dtype),
        grid=(steps,),
        in_specs=in_specs,
        out_specs=pl.BlockSpec((R, tile), lambda i: (0, i)),
        compiler_params=_compiler_params(),
    )(*inputs)
    return out if Mp == M else out[:, :M]


def _gru_gates_kernel(w_ref, p_ref, bias_ref, fc_ref, h_ref, ug_ref, rs_ref,
                      *, ch):
    acc = jnp.dot(w_ref[...], p_ref[...], preferred_element_type=jnp.float32)
    acc = acc + bias_ref[...] + fc_ref[...].astype(jnp.float32)
    g = 1.0 / (1.0 + jnp.exp(-acc))                 # sigmoid (exp on the EUP)
    ug_ref[...] = g[:ch, :]                         # update gate
    rs_ref[...] = (g[ch:, :] * h_ref[...]).astype(rs_ref.dtype)  # reset*h


def gru_gates(w_ur, patches, bias_ur, fc_ur_t, h_t, ch):
    """Fused update+reset FCConv3D GEMM: sigmoid epilogue, returns
    (update_gate, reset_gate * h), both in (Ch, N*D^3) layout."""
    R2, K3 = w_ur.shape
    M = patches.shape[1]
    col_bytes = 2 * (K3 * 2 + R2 * fc_ur_t.dtype.itemsize + ch * 4
                     + ch * 4 + ch * 2)
    fixed = 2 * (R2 * K3 * 2 + R2 * 4)
    tile, Mp, steps = _lane_plan(M, col_bytes, fixed)
    if Mp != M:
        padw = ((0, 0), (0, Mp - M))
        patches = jnp.pad(patches, padw)
        fc_ur_t = jnp.pad(fc_ur_t, padw)
        h_t = jnp.pad(h_t, padw)
    ug, rs = pl.pallas_call(
        functools.partial(_gru_gates_kernel, ch=ch),
        out_shape=(jax.ShapeDtypeStruct((ch, Mp), jnp.float32),
                   jax.ShapeDtypeStruct((ch, Mp), jnp.bfloat16)),
        grid=(steps,),
        in_specs=[pl.BlockSpec((R2, K3), lambda i: (0, 0)),
                  pl.BlockSpec((K3, tile), lambda i: (0, i)),
                  pl.BlockSpec((R2, 1), lambda i: (0, 0)),
                  pl.BlockSpec((R2, tile), lambda i: (0, i)),
                  pl.BlockSpec((ch, tile), lambda i: (0, i))],
        out_specs=(pl.BlockSpec((ch, tile), lambda i: (0, i)),
                   pl.BlockSpec((ch, tile), lambda i: (0, i))),
        compiler_params=_compiler_params(),
    )(w_ur, patches, bias_ur, fc_ur_t, h_t)
    if Mp != M:
        ug, rs = ug[:, :M], rs[:, :M]
    return ug, rs


def _gru_out_kernel(w_ref, p_ref, bias_ref, fc_ref, ug_ref, h_ref, o_ref):
    acc = jnp.dot(w_ref[...], p_ref[...], preferred_element_type=jnp.float32)
    t = jnp.tanh(acc + bias_ref[...] + fc_ref[...].astype(jnp.float32))
    ug = ug_ref[...]
    o_ref[...] = ug * h_ref[...] + (1.0 - ug) * t


def gru_output(w_rs, patches, bias_rs, fc_rs_t, ug_t, h_t):
    """Fused rs-branch FCConv3D GEMM: tanh + GRU blend epilogue."""
    R, K3 = w_rs.shape
    M = patches.shape[1]
    col_bytes = 2 * (K3 * 2 + R * fc_rs_t.dtype.itemsize + 3 * R * 4)
    fixed = 2 * (R * K3 * 2 + R * 4)
    tile, Mp, steps = _lane_plan(M, col_bytes, fixed)
    if Mp != M:
        padw = ((0, 0), (0, Mp - M))
        patches = jnp.pad(patches, padw)
        fc_rs_t = jnp.pad(fc_rs_t, padw)
        ug_t = jnp.pad(ug_t, padw)
        h_t = jnp.pad(h_t, padw)
    out = pl.pallas_call(
        _gru_out_kernel,
        out_shape=jax.ShapeDtypeStruct((R, Mp), jnp.float32),
        grid=(steps,),
        in_specs=[pl.BlockSpec((R, K3), lambda i: (0, 0)),
                  pl.BlockSpec((K3, tile), lambda i: (0, i)),
                  pl.BlockSpec((R, 1), lambda i: (0, 0)),
                  pl.BlockSpec((R, tile), lambda i: (0, i)),
                  pl.BlockSpec((R, tile), lambda i: (0, i)),
                  pl.BlockSpec((R, tile), lambda i: (0, i))],
        out_specs=pl.BlockSpec((R, tile), lambda i: (0, i)),
        compiler_params=_compiler_params(),
    )(w_rs, patches, bias_rs, fc_rs_t, ug_t, h_t)
    return out if Mp == M else out[:, :M]


# ------------------------------- JAX glue ----------------------------------

def _maxpool2d_cnhw(x):
    """PyTorch MaxPool2d(kernel_size=2, stride=2, padding=1) on CNHW."""
    neg = jnp.asarray(-jnp.inf, x.dtype)
    xp = jnp.pad(x, ((0, 0), (0, 0), (1, 1), (1, 1)), constant_values=neg)
    return lax.reduce_window(xp, neg, lax.max, (1, 1, 2, 2), (1, 1, 2, 2),
                             "VALID")


def conv2d_pool_act(feat_cn, w_mat, bias_col, k):
    """SAME Conv2d (stride 1) + fused LeakyReLU + MaxPool2d(2, 2, pad=1).

    feat_cn: (C, N, H, W) bf16 activations in CNHW layout.
    w_mat:   (Co, k*k*C) bf16 (tap-major, channel-minor columns).
    LeakyReLU before max-pool is exact (monotone activation)."""
    C, N, H, W = feat_cn.shape
    Co = w_mat.shape[0]
    pad = (k - 1) // 2
    xp = jnp.pad(feat_cn, ((0, 0), (0, 0), (pad, pad), (pad, pad)))
    taps = []
    for di in range(k):
        for dj in range(k):
            taps.append(xp[:, :, di:di + H, dj:dj + W].reshape(C, N * H * W))
    patches = jnp.concatenate(taps, axis=0)            # (k*k*C, N*H*W) bf16
    out = gemm_bias_act(w_mat, patches, bias_col, bias_mode="row",
                        act="leaky_relu", out_dtype=jnp.bfloat16)
    out = out.reshape(Co, N, H, W)                     # CNHW - no transpose
    return _maxpool2d_cnhw(out)


def _im2col3d_cn(x_cn, k):
    """x_cn: (C, N, D, H, W) bf16 -> (k^3*C, N*D*H*W), K rows tap-major."""
    C, N, D, H, W = x_cn.shape
    pad = (k - 1) // 2
    xp = jnp.pad(x_cn, ((0, 0), (0, 0), (pad, pad), (pad, pad), (pad, pad)))
    taps = []
    for dd in range(k):
        for dh in range(k):
            for dw in range(k):
                taps.append(xp[:, :, dd:dd + D, dh:dh + H, dw:dw + W]
                            .reshape(C, N * D * H * W))
    return jnp.concatenate(taps, axis=0)


# ------------------------------ Encoder -------------------------------------

def encoder_forward(prep, x, h, u):
    """x: (B,C,H,W) NCHW f32, h/u: (B,Ch,D,D,D) NCDHW f32.
    Returns (gru_out, update_gate), both (B,Ch,D,D,D) f32."""
    del u  # unused by the reference PyTorch forward; kept for call parity

    # conv stack in CNHW layout (lane-dense GEMM stores, transpose-free)
    feat = jnp.transpose(x.astype(jnp.bfloat16), (1, 0, 2, 3))   # (C,N,H,W)
    for i in range(6):
        feat = conv2d_pool_act(feat, prep[f"conv{i + 1}_w"],
                               prep[f"conv{i + 1}_b"], prep[f"conv{i + 1}_k"])

    C6, B, fh, fw = feat.shape
    # PyTorch flattens NCHW per sample as (c, h, w); our layout is CNHW.
    flat = jnp.transpose(feat, (1, 0, 2, 3)).reshape(B, C6 * fh * fw)
    rect7 = gemm_bias_act(flat, prep["fc7_w"], prep["fc7_b"],
                          bias_mode="lane", act="leaky_relu",
                          out_dtype=jnp.bfloat16)                # (B, n_fc)

    Bh, Ch, D, _, _ = h.shape
    vox = D * D * D
    M = Bh * vox

    # one wide fc GEMM for the update / reset / rs branches
    fc_all = gemm_bias_act(rect7, prep["fc_urr_w"],
                           out_dtype=jnp.bfloat16)               # (B, 3*Ch*D^3)
    fc_t = jnp.transpose(fc_all.reshape(Bh, 3, Ch, vox),
                         (1, 2, 0, 3)).reshape(3, Ch, M)
    fc_ur_t = fc_t[:2].reshape(2 * Ch, M)
    fc_rs_t = fc_t[2]

    h_cn = jnp.transpose(h, (1, 0, 2, 3, 4))                     # (Ch,N,D,D,D)
    h_t = h_cn.reshape(Ch, M).astype(jnp.float32)
    k3 = prep["k3"]
    patches_h = _im2col3d_cn(h_cn.astype(jnp.bfloat16), k3)      # (27Ch, M)

    # update & reset FCConv3D + sigmoid + reset*h, fused in one GEMM epilogue
    ug_t, rs_t = gru_gates(prep["conv3d_ur_w"], patches_h,
                           prep["conv3d_ur_b"], fc_ur_t, h_t, Ch)

    rs_cn = rs_t.reshape(Ch, Bh, D, D, D)                        # already C-major
    patches_rs = _im2col3d_cn(rs_cn, k3)

    # rs FCConv3D + tanh + GRU blend, fused in one GEMM epilogue
    gru_t = gru_output(prep["conv3d_rs_w"], patches_rs, prep["conv3d_rs_b"],
                       fc_rs_t, ug_t, h_t)

    def to_ncdhw(t):
        return jnp.transpose(t.reshape(Ch, Bh, D, D, D), (1, 0, 2, 3, 4))

    return to_ncdhw(gru_t), to_ncdhw(ug_t)


def prepare_params(params, h_shape):
    """One-time weight prep OUTSIDE jit: bf16 casts, im2col-ready layouts and
    pre-concatenated update/reset/rs FCConv3D branches."""
    ch = h_shape[1]
    p = {}
    for i in range(6):
        w = params[f"conv{i + 1}_w"]
        co, ci, k, _ = w.shape
        p[f"conv{i + 1}_w"] = (jnp.transpose(w, (0, 2, 3, 1))
                               .reshape(co, k * k * ci).astype(jnp.bfloat16))
        p[f"conv{i + 1}_b"] = (params[f"conv{i + 1}_b"]
                               .reshape(co, 1).astype(jnp.float32))
        p[f"conv{i + 1}_k"] = int(k)

    p["fc7_w"] = params["fc7_w"].astype(jnp.bfloat16)            # (fc_in, n_fc)
    p["fc7_b"] = params["fc7_b"].reshape(1, -1).astype(jnp.float32)

    p["fc_urr_w"] = jnp.concatenate(
        [params["upd"]["fc_w"], params["rst"]["fc_w"], params["rs"]["fc_w"]],
        axis=1).astype(jnp.bfloat16)                             # (n_fc, 3*Ch*D^3)

    def conv3d_mat(w):     # (Co,Ci,k,k,k) -> (Co, k^3*Ci), tap-major/C-minor
        co = w.shape[0]
        return (jnp.transpose(w, (0, 2, 3, 4, 1)).reshape(co, -1)
                .astype(jnp.bfloat16))

    p["conv3d_ur_w"] = jnp.concatenate(
        [conv3d_mat(params["upd"]["conv_w"]),
         conv3d_mat(params["rst"]["conv_w"])], axis=0)           # (2Ch, 27Ch)
    p["conv3d_ur_b"] = jnp.concatenate(
        [params["upd"]["bias"].reshape(ch, 1),
         params["rst"]["bias"].reshape(ch, 1)], axis=0).astype(jnp.float32)
    p["conv3d_rs_w"] = conv3d_mat(params["rs"]["conv_w"])        # (Ch, 27Ch)
    p["conv3d_rs_b"] = params["rs"]["bias"].reshape(ch, 1).astype(jnp.float32)
    p["k3"] = int(params["upd"]["conv_w"].shape[2])
    return p


def init_params(key, input_shape, n_convfilter, n_fc_filters, h_shape,
                conv3d_filter_shape):
    keys = jax.random.split(key, 32)
    ki = iter(keys)
    scale = 0.05
    p = {}
    cin = input_shape[1]
    ksizes = [7, 3, 3, 3, 3, 3]
    chans = [cin] + list(n_convfilter)
    for i in range(6):
        k = ksizes[i]
        p[f"conv{i + 1}_w"] = scale * jax.random.normal(
            next(ki), (chans[i + 1], chans[i], k, k), jnp.float32)
        p[f"conv{i + 1}_b"] = scale * jax.random.normal(
            next(ki), (chans[i + 1],), jnp.float32)

    def pooled(s):  # MaxPool2d(k=2, s=2, p=1) output size
        return (s + 2 - 2) // 2 + 1

    fw, fh = input_shape[2], input_shape[3]
    for _ in range(6):
        fw, fh = pooled(fw), pooled(fh)
    fc_in = n_convfilter[5] * fw * fh
    p["fc7_w"] = scale * jax.random.normal(next(ki), (fc_in, n_fc_filters[0]),
                                           jnp.float32)
    p["fc7_b"] = scale * jax.random.normal(next(ki), (n_fc_filters[0],),
                                           jnp.float32)

    Ch = h_shape[1]
    vox = h_shape[2] * h_shape[3] * h_shape[4]
    for name in ("upd", "rst", "rs"):
        p[name] = {
            "fc_w": scale * jax.random.normal(next(ki),
                                              (n_fc_filters[0], Ch * vox),
                                              jnp.float32),
            "conv_w": scale * jax.random.normal(next(ki), conv3d_filter_shape,
                                                jnp.float32),
            "bias": scale * jax.random.normal(next(ki), (1, Ch, 1, 1, 1),
                                              jnp.float32),
        }
    return p


if __name__ == "__main__":
    B = 2
    input_shape = (B, 4, 16, 16)            # (batch, channels, H, W)
    n_convfilter = [8, 8, 16, 16, 16, 16]
    n_fc_filters = [32]
    h_shape = (B, 8, 4, 4, 4)               # (batch, hidden_ch, D, D, D)
    conv3d_filter_shape = (8, 8, 3, 3, 3)   # (Cout, Cin, k, k, k)

    key = jax.random.PRNGKey(0)
    kp, kx, kh, ku = jax.random.split(key, 4)
    params = init_params(kp, input_shape, n_convfilter, n_fc_filters, h_shape,
                         conv3d_filter_shape)
    prep = prepare_params(params, h_shape)   # one-time bf16 cast / re-layout

    x = jax.random.normal(kx, input_shape, jnp.float32)
    h = jax.random.normal(kh, h_shape, jnp.float32)
    u = jax.random.normal(ku, h_shape, jnp.float32)

    fwd = jax.jit(functools.partial(encoder_forward, prep))
    gru_out, update_gate = fwd(x, h, u)
    jax.block_until_ready((gru_out, update_gate))
    assert gru_out.shape == h_shape and update_gate.shape == h_shape
    assert bool(jnp.all(jnp.isfinite(gru_out)))
    assert bool(jnp.all(jnp.isfinite(update_gate)))
    assert bool(jnp.all((update_gate >= 0.0) & (update_gate <= 1.0)))
    print("KERNEL_OK")
</pallas_src>

<mosaic_0001>
module attributes {stable_mosaic.version = 11 : i64} {
  func.func @_gemm_kernel(%arg0: i32, %arg1: memref<8x196xbf16, #tpu.memory_space<vmem>>, %arg2: memref<196x256xbf16, #tpu.memory_space<vmem>>, %arg3: memref<8x1xf32, #tpu.memory_space<vmem>>, %arg4: memref<8x256xbf16, #tpu.memory_space<vmem>>) attributes {dimension_semantics = [#tpu.dimension_semantics<parallel>], iteration_bounds = array<i64: 2>, scalar_prefetch = 0 : i64, scratch_operands = 0 : i64, tpu.core_type = #tpu.core_type<tc>, window_params = [{pipeline_mode = #tpu.pipeline_mode<synchronous>, transform_indices = @transform_0, window_bounds = array<i64: 8, 196>}, {transform_indices = @transform_1, window_bounds = array<i64: 196, 256>}, {pipeline_mode = #tpu.pipeline_mode<synchronous>, transform_indices = @transform_2, window_bounds = array<i64: 8, 1>}, {transform_indices = @transform_3, window_bounds = array<i64: 8, 256>}]} {
    %c0 = arith.constant 0 : index
    %c0_0 = arith.constant 0 : index
    %0 = vector.load %arg1[%c0, %c0_0] : memref<8x196xbf16, #tpu.memory_space<vmem>>, vector<8x196xbf16>
    %c0_1 = arith.constant 0 : index
    %c0_2 = arith.constant 0 : index
    %1 = vector.load %arg2[%c0_1, %c0_2] : memref<196x256xbf16, #tpu.memory_space<vmem>>, vector<196x256xbf16>
    %cst = arith.constant dense<0.000000e+00> : vector<8x256xf32>
    %2 = tpu.matmul %0, %1, %cst {dimension_numbers = #tpu.dot_dimension_numbers<[1], [0], [0], [1], [0, 0, 1, 1], [], []>} : vector<8x196xbf16>, vector<196x256xbf16>, vector<8x256xf32> -> vector<8x256xf32>
    %c0_3 = arith.constant 0 : index
    %c0_4 = arith.constant 0 : index
    %3 = vector.load %arg3[%c0_3, %c0_4] : memref<8x1xf32, #tpu.memory_space<vmem>>, vector<8x1xf32>
    %4 = vector.broadcast %3 : vector<8x1xf32> to vector<8x256xf32>
    %5 = arith.addf %2, %4 : vector<8x256xf32>
    %cst_5 = arith.constant 0.000000e+00 : f32
    %6 = vector.broadcast %cst_5 : f32 to vector<8x256xf32>
    %7 = arith.cmpf oge, %5, %6 : vector<8x256xf32>
    %cst_6 = arith.constant 0.00999999977 : f32
    %8 = vector.broadcast %cst_6 : f32 to vector<8x256xf32>
    %9 = arith.mulf %8, %5 : vector<8x256xf32>
    %10 = arith.select %7, %5, %9 : vector<8x256xi1>, vector<8x256xf32>
    %11 = arith.truncf %10 : vector<8x256xf32> to vector<8x256xbf16>
    %c0_7 = arith.constant 0 : index
    %c0_8 = arith.constant 0 : index
    %12 = vector.load %arg4[%c0_7, %c0_8] : memref<8x256xbf16, #tpu.memory_space<vmem>>, vector<8x256xbf16>
    tpu.vector_store %arg4[%c0_7, %c0_8], %11 {strides = array<i32>} : memref<8x256xbf16, #tpu.memory_space<vmem>>, vector<8x256xbf16>,
    return
  }
  func.func @transform_0(%arg0: i32) -> (i32, i32) {
    %c0_i32 = arith.constant 0 : i32
    %c0_i32_0 = arith.constant 0 : i32
    %c0_i32_1 = arith.constant 0 : i32
    return %c0_i32, %c0_i32_0 : i32, i32
  }
  func.func @transform_1(%arg0: i32) -> (i32, i32) {
    %c0_i32 = arith.constant 0 : i32
    %c0_i32_0 = arith.constant 0 : i32
    return %c0_i32, %arg0 : i32, i32
  }
  func.func @transform_2(%arg0: i32) -> (i32, i32) {
    %c0_i32 = arith.constant 0 : i32
    %c0_i32_0 = arith.constant 0 : i32
    %c0_i32_1 = arith.constant 0 : i32
    return %c0_i32, %c0_i32_0 : i32, i32
  }
  func.func @transform_3(%arg0: i32) -> (i32, i32) {
    %c0_i32 = arith.constant 0 : i32
    %c0_i32_0 = arith.constant 0 : i32
    return %c0_i32, %arg0 : i32, i32
  }
}

module attributes {stable_mosaic.version = 11 : i64} {
  func.func @_gemm_kernel(%arg0: i32, %arg1: memref<8x72xbf16, #tpu.memory_space<vmem>>, %arg2: memref<72x128xbf16, #tpu.memory_space<vmem>>, %arg3: memref<8x1xf32, #tpu.memory_space<vmem>>, %arg4: memref<8x128xbf16, #tpu.memory_space<vmem>>) attributes {dimension_semantics = [#tpu.dimension_semantics<parallel>], iteration_bounds = array<i64: 2>, scalar_prefetch = 0 : i64, scratch_operands = 0 : i64, tpu.core_type = #tpu.core_type<tc>, window_params = [{pipeline_mode = #tpu.pipeline_mode<synchronous>, transform_indices = @transform_0, window_bounds = array<i64: 8, 72>}, {transform_indices = @transform_1, window_bounds = array<i64: 72, 128>}, {pipeline_mode = #tpu.pipeline_mode<synchronous>, transform_indices = @transform_2, window_bounds = array<i64: 8, 1>}, {transform_indices = @transform_3, window_bounds = array<i64: 8, 128>}]} {
    %c0 = arith.constant 0 : index
    %c0_0 = arith.constant 0 : index
    %0 = vector.load %arg1[%c0, %c0_0] : memref<8x72xbf16, #tpu.memory_space<vmem>>, vector<8x72xbf16>
    %c0_1 = arith.constant 0 : index
    %c0_2 = arith.constant 0 : index
    %1 = vector.load %arg2[%c0_1, %c0_2] : memref<72x128xbf16, #tpu.memory_space<vmem>>, vector<72x128xbf16>
    %cst = arith.constant dense<0.000000e+00> : vector<8x128xf32>
    %2 = tpu.matmul %0, %1, %cst {dimension_numbers = #tpu.dot_dimension_numbers<[1], [0], [0], [1], [0, 0, 1, 1], [], []>} : vector<8x72xbf16>, vector<72x128xbf16>, vector<8x128xf32> -> vector<8x128xf32>
    %c0_3 = arith.constant 0 : index
    %c0_4 = arith.constant 0 : index
    %3 = vector.load %arg3[%c0_3, %c0_4] : memref<8x1xf32, #tpu.memory_space<vmem>>, vector<8x1xf32>
    %4 = vector.broadcast %3 : vector<8x1xf32> to vector<8x128xf32>
    %5 = arith.addf %2, %4 : vector<8x128xf32>
    %cst_5 = arith.constant 0.000000e+00 : f32
    %6 = vector.broadcast %cst_5 : f32 to vector<8x128xf32>
    %7 = arith.cmpf oge, %5, %6 : vector<8x128xf32>
    %cst_6 = arith.constant 0.00999999977 : f32
    %8 = vector.broadcast %cst_6 : f32 to vector<8x128xf32>
    %9 = arith.mulf %8, %5 : vector<8x128xf32>
    %10 = arith.select %7, %5, %9 : vector<8x128xi1>, vector<8x128xf32>
    %11 = arith.truncf %10 : vector<8x128xf32> to vector<8x128xbf16>
    %c0_7 = arith.constant 0 : index
    %c0_8 = arith.constant 0 : index
    %12 = vector.load %arg4[%c0_7, %c0_8] : memref<8x128xbf16, #tpu.memory_space<vmem>>, vector<8x128xbf16>
    tpu.vector_store %arg4[%c0_7, %c0_8], %11 {strides = array<i32>} : memref<8x128xbf16, #tpu.memory_space<vmem>>, vector<8x128xbf16>,
    return
  }
  func.func @transform_0(%arg0: i32) -> (i32, i32) {
    %c0_i32 = arith.constant 0 : i32
    %c0_i32_0 = arith.constant 0 : i32
    %c0_i32_1 = arith.constant 0 : i32
    return %c0_i32, %c0_i32_0 : i32, i32
  }
  func.func @transform_1(%arg0: i32) -> (i32, i32) {
    %c0_i32 = arith.constant 0 : i32
    %c0_i32_0 = arith.constant 0 : i32
    return %c0_i32, %arg0 : i32, i32
  }
  func.func @transform_2(%arg0: i32) -> (i32, i32) {
    %c0_i32 = arith.constant 0 : i32
    %c0_i32_0 = arith.constant 0 : i32
    %c0_i32_1 = arith.constant 0 : i32
    return %c0_i32, %c0_i32_0 : i32, i32
  }
  func.func @transform_3(%arg0: i32) -> (i32, i32) {
    %c0_i32 = arith.constant 0 : i32
    %c0_i32_0 = arith.constant 0 : i32
    return %c0_i32, %arg0 : i32, i32
  }
}

module attributes {stable_mosaic.version = 11 : i64} {
  func.func @_gemm_kernel(%arg0: i32, %arg1: memref<16x72xbf16, #tpu.memory_space<vmem>>, %arg2: memref<72x50xbf16, #tpu.memory_space<vmem>>, %arg3: memref<16x1xf32, #tpu.memory_space<vmem>>, %arg4: memref<16x50xbf16, #tpu.memory_space<vmem>>) attributes {dimension_semantics = [#tpu.dimension_semantics<parallel>], iteration_bounds = array<i64: 1>, scalar_prefetch = 0 : i64, scratch_operands = 0 : i64, tpu.core_type = #tpu.core_type<tc>, window_params = [{pipeline_mode = #tpu.pipeline_mode<synchronous>, transform_indices = @transform_0, window_bounds = array<i64: 16, 72>}, {transform_indices = @transform_1, window_bounds = array<i64: 72, 50>}, {pipeline_mode = #tpu.pipeline_mode<synchronous>, transform_indices = @transform_2, window_bounds = array<i64: 16, 1>}, {transform_indices = @transform_3, window_bounds = array<i64: 16, 50>}]} {
    %c0 = arith.constant 0 : index
    %c0_0 = arith.constant 0 : index
    %0 = vector.load %arg1[%c0, %c0_0] : memref<16x72xbf16, #tpu.memory_space<vmem>>, vector<16x72xbf16>
    %c0_1 = arith.constant 0 : index
    %c0_2 = arith.constant 0 : index
    %1 = vector.load %arg2[%c0_1, %c0_2] : memref<72x50xbf16, #tpu.memory_space<vmem>>, vector<72x50xbf16>
    %cst = arith.constant dense<0.000000e+00> : vector<16x50xf32>
    %2 = tpu.matmul %0, %1, %cst {dimension_numbers = #tpu.dot_dimension_numbers<[1], [0], [0], [1], [0, 0, 1, 1], [], []>} : vector<16x72xbf16>, vector<72x50xbf16>, vector<16x50xf32> -> vector<16x50xf32>
    %c0_3 = arith.constant 0 : index
    %c0_4 = arith.constant 0 : index
    %3 = vector.load %arg3[%c0_3, %c0_4] : memref<16x1xf32, #tpu.memory_space<vmem>>, vector<16x1xf32>
    %4 = vector.broadcast %3 : vector<16x1xf32> to vector<16x50xf32>
    %5 = arith.addf %2, %4 : vector<16x50xf32>
    %cst_5 = arith.constant 0.000000e+00 : f32
    %6 = vector.broadcast %cst_5 : f32 to vector<16x50xf32>
    %7 = arith.cmpf oge, %5, %6 : vector<16x50xf32>
    %cst_6 = arith.constant 0.00999999977 : f32
    %8 = vector.broadcast %cst_6 : f32 to vector<16x50xf32>
    %9 = arith.mulf %8, %5 : vector<16x50xf32>
    %10 = arith.select %7, %5, %9 : vector<16x50xi1>, vector<16x50xf32>
    %11 = arith.truncf %10 : vector<16x50xf32> to vector<16x50xbf16>
    %c0_7 = arith.constant 0 : index
    %c0_8 = arith.constant 0 : index
    %12 = vector.load %arg4[%c0_7, %c0_8] : memref<16x50xbf16, #tpu.memory_space<vmem>>, vector<16x50xbf16>
    tpu.vector_store %arg4[%c0_7, %c0_8], %11 {strides = array<i32>} : memref<16x50xbf16, #tpu.memory_space<vmem>>, vector<16x50xbf16>,
    return
  }
  func.func @transform_0(%arg0: i32) -> (i32, i32) {
    %c0_i32 = arith.constant 0 : i32
    %c0_i32_0 = arith.constant 0 : i32
    %c0_i32_1 = arith.constant 0 : i32
    return %c0_i32, %c0_i32_0 : i32, i32
  }
  func.func @transform_1(%arg0: i32) -> (i32, i32) {
    %c0_i32 = arith.constant 0 : i32
    %c0_i32_0 = arith.constant 0 : i32
    return %c0_i32, %arg0 : i32, i32
  }
  func.func @transform_2(%arg0: i32) -> (i32, i32) {
    %c0_i32 = arith.constant 0 : i32
    %c0_i32_0 = arith.constant 0 : i32
    %c0_i32_1 = arith.constant 0 : i32
    return %c0_i32, %c0_i32_0 : i32, i32
  }
  func.func @transform_3(%arg0: i32) -> (i32, i32) {
    %c0_i32 = arith.constant 0 : i32
    %c0_i32_0 = arith.constant 0 : i32
    return %c0_i32, %arg0 : i32, i32
  }
}

module attributes {stable_mosaic.version = 11 : i64} {
  func.func @_gemm_kernel(%arg0: i32, %arg1: memref<16x144xbf16, #tpu.memory_space<vmem>>, %arg2: memref<144x18xbf16, #tpu.memory_space<vmem>>, %arg3: memref<16x1xf32, #tpu.memory_space<vmem>>, %arg4: memref<16x18xbf16, #tpu.memory_space<vmem>>) attributes {dimension_semantics = [#tpu.dimension_semantics<parallel>], iteration_bounds = array<i64: 1>, scalar_prefetch = 0 : i64, scratch_operands = 0 : i64, tpu.core_type = #tpu.core_type<tc>, window_params = [{pipeline_mode = #tpu.pipeline_mode<synchronous>, transform_indices = @transform_0, window_bounds = array<i64: 16, 144>}, {transform_indices = @transform_1, window_bounds = array<i64: 144, 18>}, {pipeline_mode = #tpu.pipeline_mode<synchronous>, transform_indices = @transform_2, window_bounds = array<i64: 16, 1>}, {transform_indices = @transform_3, window_bounds = array<i64: 16, 18>}]} {
    %c0 = arith.constant 0 : index
    %c0_0 = arith.constant 0 : index
    %0 = vector.load %arg1[%c0, %c0_0] : memref<16x144xbf16, #tpu.memory_space<vmem>>, vector<16x144xbf16>
    %c0_1 = arith.constant 0 : index
    %c0_2 = arith.constant 0 : index
    %1 = vector.load %arg2[%c0_1, %c0_2] : memref<144x18xbf16, #tpu.memory_space<vmem>>, vector<144x18xbf16>
    %cst = arith.constant dense<0.000000e+00> : vector<16x18xf32>
    %2 = tpu.matmul %0, %1, %cst {dimension_numbers = #tpu.dot_dimension_numbers<[1], [0], [0], [1], [0, 0, 1, 1], [], []>} : vector<16x144xbf16>, vector<144x18xbf16>, vector<16x18xf32> -> vector<16x18xf32>
    %c0_3 = arith.constant 0 : index
    %c0_4 = arith.constant 0 : index
    %3 = vector.load %arg3[%c0_3, %c0_4] : memref<16x1xf32, #tpu.memory_space<vmem>>, vector<16x1xf32>
    %4 = vector.broadcast %3 : vector<16x1xf32> to vector<16x18xf32>
    %5 = arith.addf %2, %4 : vector<16x18xf32>
    %cst_5 = arith.constant 0.000000e+00 : f32
    %6 = vector.broadcast %cst_5 : f32 to vector<16x18xf32>
    %7 = arith.cmpf oge, %5, %6 : vector<16x18xf32>
    %cst_6 = arith.constant 0.00999999977 : f32
    %8 = vector.broadcast %cst_6 : f32 to vector<16x18xf32>
    %9 = arith.mulf %8, %5 : vector<16x18xf32>
    %10 = arith.select %7, %5, %9 : vector<16x18xi1>, vector<16x18xf32>
    %11 = arith.truncf %10 : vector<16x18xf32> to vector<16x18xbf16>
    %c0_7 = arith.constant 0 : index
    %c0_8 = arith.constant 0 : index
    %12 = vector.load %arg4[%c0_7, %c0_8] : memref<16x18xbf16, #tpu.memory_space<vmem>>, vector<16x18xbf16>
    tpu.vector_store %arg4[%c0_7, %c0_8], %11 {strides = array<i32>} : memref<16x18xbf16, #tpu.memory_space<vmem>>, vector<16x18xbf16>,
    return
  }
  func.func @transform_0(%arg0: i32) -> (i32, i32) {
    %c0_i32 = arith.constant 0 : i32
    %c0_i32_0 = arith.constant 0 : i32
    %c0_i32_1 = arith.constant 0 : i32
    return %c0_i32, %c0_i32_0 : i32, i32
  }
  func.func @transform_1(%arg0: i32) -> (i32, i32) {
    %c0_i32 = arith.constant 0 : i32
    %c0_i32_0 = arith.constant 0 : i32
    return %c0_i32, %arg0 : i32, i32
  }
  func.func @transform_2(%arg0: i32) -> (i32, i32) {
    %c0_i32 = arith.constant 0 : i32
    %c0_i32_0 = arith.constant 0 : i32
    %c0_i32_1 = arith.constant 0 : i32
    return %c0_i32, %c0_i32_0 : i32, i32
  }
  func.func @transform_3(%arg0: i32) -> (i32, i32) {
    %c0_i32 = arith.constant 0 : i32
    %c0_i32_0 = arith.constant 0 : i32
    return %c0_i32, %arg0 : i32, i32
  }
}

module attributes {stable_mosaic.version = 11 : i64} {
  func.func @_gemm_kernel(%arg0: i32, %arg1: memref<16x144xbf16, #tpu.memory_space<vmem>>, %arg2: memref<144x8xbf16, #tpu.memory_space<vmem>>, %arg3: memref<16x1xf32, #tpu.memory_space<vmem>>, %arg4: memref<16x8xbf16, #tpu.memory_space<vmem>>) attributes {dimension_semantics = [#tpu.dimension_semantics<parallel>], iteration_bounds = array<i64: 1>, scalar_prefetch = 0 : i64, scratch_operands = 0 : i64, tpu.core_type = #tpu.core_type<tc>, window_params = [{pipeline_mode = #tpu.pipeline_mode<synchronous>, transform_indices = @transform_0, window_bounds = array<i64: 16, 144>}, {transform_indices = @transform_1, window_bounds = array<i64: 144, 8>}, {pipeline_mode = #tpu.pipeline_mode<synchronous>, transform_indices = @transform_2, window_bounds = array<i64: 16, 1>}, {transform_indices = @transform_3, window_bounds = array<i64: 16, 8>}]} {
    %c0 = arith.constant 0 : index
    %c0_0 = arith.constant 0 : index
    %0 = vector.load %arg1[%c0, %c0_0] : memref<16x144xbf16, #tpu.memory_space<vmem>>, vector<16x144xbf16>
    %c0_1 = arith.constant 0 : index
    %c0_2 = arith.constant 0 : index
    %1 = vector.load %arg2[%c0_1, %c0_2] : memref<144x8xbf16, #tpu.memory_space<vmem>>, vector<144x8xbf16>
    %cst = arith.constant dense<0.000000e+00> : vector<16x8xf32>
    %2 = tpu.matmul %0, %1, %cst {dimension_numbers = #tpu.dot_dimension_numbers<[1], [0], [0], [1], [0, 0, 1, 1], [], []>} : vector<16x144xbf16>, vector<144x8xbf16>, vector<16x8xf32> -> vector<16x8xf32>
    %c0_3 = arith.constant 0 : index
    %c0_4 = arith.constant 0 : index
    %3 = vector.load %arg3[%c0_3, %c0_4] : memref<16x1xf32, #tpu.memory_space<vmem>>, vector<16x1xf32>
    %4 = vector.broadcast %3 : vector<16x1xf32> to vector<16x8xf32>
    %5 = arith.addf %2, %4 : vector<16x8xf32>
    %cst_5 = arith.constant 0.000000e+00 : f32
    %6 = vector.broadcast %cst_5 : f32 to vector<16x8xf32>
    %7 = arith.cmpf oge, %5, %6 : vector<16x8xf32>
    %cst_6 = arith.constant 0.00999999977 : f32
    %8 = vector.broadcast %cst_6 : f32 to vector<16x8xf32>
    %9 = arith.mulf %8, %5 : vector<16x8xf32>
    %10 = arith.select %7, %5, %9 : vector<16x8xi1>, vector<16x8xf32>
    %11 = arith.truncf %10 : vector<16x8xf32> to vector<16x8xbf16>
    %c0_7 = arith.constant 0 : index
    %c0_8 = arith.constant 0 : index
    %12 = vector.load %arg4[%c0_7, %c0_8] : memref<16x8xbf16, #tpu.memory_space<vmem>>, vector<16x8xbf16>
    tpu.vector_store %arg4[%c0_7, %c0_8], %11 {strides = array<i32>} : memref<16x8xbf16, #tpu.memory_space<vmem>>, vector<16x8xbf16>,
    return
  }
  func.func @transform_0(%arg0: i32) -> (i32, i32) {
    %c0_i32 = arith.constant 0 : i32
    %c0_i32_0 = arith.constant 0 : i32
    %c0_i32_1 = arith.constant 0 : i32
    return %c0_i32, %c0_i32_0 : i32, i32
  }
  func.func @transform_1(%arg0: i32) -> (i32, i32) {
    %c0_i32 = arith.constant 0 : i32
    %c0_i32_0 = arith.constant 0 : i32
    return %c0_i32, %arg0 : i32, i32
  }
  func.func @transform_2(%arg0: i32) -> (i32, i32) {
    %c0_i32 = arith.constant 0 : i32
    %c0_i32_0 = arith.constant 0 : i32
    %c0_i32_1 = arith.constant 0 : i32
    return %c0_i32, %c0_i32_0 : i32, i32
  }
  func.func @transform_3(%arg0: i32) -> (i32, i32) {
    %c0_i32 = arith.constant 0 : i32
    %c0_i32_0 = arith.constant 0 : i32
    return %c0_i32, %arg0 : i32, i32
  }
}

module attributes {stable_mosaic.version = 11 : i64} {
  func.func @_gemm_kernel(%arg0: i32, %arg1: memref<2x64xbf16, #tpu.memory_space<vmem>>, %arg2: memref<64x32xbf16, #tpu.memory_space<vmem>>, %arg3: memref<1x32xf32, #tpu.memory_space<vmem>>, %arg4: memref<2x32xbf16, #tpu.memory_space<vmem>>) attributes {dimension_semantics = [#tpu.dimension_semantics<parallel>], iteration_bounds = array<i64: 1>, scalar_prefetch = 0 : i64, scratch_operands = 0 : i64, tpu.core_type = #tpu.core_type<tc>, window_params = [{pipeline_mode = #tpu.pipeline_mode<synchronous>, transform_indices = @transform_0, window_bounds = array<i64: 2, 64>}, {transform_indices = @transform_1, window_bounds = array<i64: 64, 32>}, {transform_indices = @transform_2, window_bounds = array<i64: 1, 32>}, {transform_indices = @transform_3, window_bounds = array<i64: 2, 32>}]} {
    %c0 = arith.constant 0 : index
    %c0_0 = arith.constant 0 : index
    %0 = vector.load %arg1[%c0, %c0_0] : memref<2x64xbf16, #tpu.memory_space<vmem>>, vector<2x64xbf16>
    %c0_1 = arith.constant 0 : index
    %c0_2 = arith.constant 0 : index
    %1 = vector.load %arg2[%c0_1, %c0_2] : memref<64x32xbf16, #tpu.memory_space<vmem>>, vector<64x32xbf16>
    %cst = arith.constant dense<0.000000e+00> : vector<2x32xf32>
    %2 = tpu.matmul %0, %1, %cst {dimension_numbers = #tpu.dot_dimension_numbers<[1], [0], [0], [1], [0, 0, 1, 1], [], []>} : vector<2x64xbf16>, vector<64x32xbf16>, vector<2x32xf32> -> vector<2x32xf32>
    %c0_3 = arith.constant 0 : index
    %c0_4 = arith.constant 0 : index
    %3 = vector.load %arg3[%c0_3, %c0_4] : memref<1x32xf32, #tpu.memory_space<vmem>>, vector<1x32xf32>
    %4 = vector.broadcast %3 : vector<1x32xf32> to vector<2x32xf32>
    %5 = arith.addf %2, %4 : vector<2x32xf32>
    %cst_5 = arith.constant 0.000000e+00 : f32
    %6 = vector.broadcast %cst_5 : f32 to vector<2x32xf32>
    %7 = arith.cmpf oge, %5, %6 : vector<2x32xf32>
    %cst_6 = arith.constant 0.00999999977 : f32
    %8 = vector.broadcast %cst_6 : f32 to vector<2x32xf32>
    %9 = arith.mulf %8, %5 : vector<2x32xf32>
    %10 = arith.select %7, %5, %9 : vector<2x32xi1>, vector<2x32xf32>
    %11 = arith.truncf %10 : vector<2x32xf32> to vector<2x32xbf16>
    %c0_7 = arith.constant 0 : index
    %c0_8 = arith.constant 0 : index
    %12 = vector.load %arg4[%c0_7, %c0_8] : memref<2x32xbf16, #tpu.memory_space<vmem>>, vector<2x32xbf16>
    tpu.vector_store %arg4[%c0_7, %c0_8], %11 {strides = array<i32>} : memref<2x32xbf16, #tpu.memory_space<vmem>>, vector<2x32xbf16>,
    return
  }
  func.func @transform_0(%arg0: i32) -> (i32, i32) {
    %c0_i32 = arith.constant 0 : i32
    %c0_i32_0 = arith.constant 0 : i32
    %c0_i32_1 = arith.constant 0 : i32
    return %c0_i32, %c0_i32_0 : i32, i32
  }
  func.func @transform_1(%arg0: i32) -> (i32, i32) {
    %c0_i32 = arith.constant 0 : i32
    %c0_i32_0 = arith.constant 0 : i32
    return %c0_i32, %arg0 : i32, i32
  }
  func.func @transform_2(%arg0: i32) -> (i32, i32) {
    %c0_i32 = arith.constant 0 : i32
    %c0_i32_0 = arith.constant 0 : i32
    return %c0_i32, %arg0 : i32, i32
  }
  func.func @transform_3(%arg0: i32) -> (i32, i32) {
    %c0_i32 = arith.constant 0 : i32
    %c0_i32_0 = arith.constant 0 : i32
    return %c0_i32, %arg0 : i32, i32
  }
}

module attributes {stable_mosaic.version = 11 : i64} {
  func.func @_gemm_kernel(%arg0: i32, %arg1: memref<2x32xbf16, #tpu.memory_space<vmem>>, %arg2: memref<32x512xbf16, #tpu.memory_space<vmem>>, %arg3: memref<2x512xbf16, #tpu.memory_space<vmem>>) attributes {dimension_semantics = [#tpu.dimension_semantics<parallel>], iteration_bounds = array<i64: 3>, scalar_prefetch = 0 : i64, scratch_operands = 0 : i64, tpu.core_type = #tpu.core_type<tc>, window_params = [{pipeline_mode = #tpu.pipeline_mode<synchronous>, transform_indices = @transform_0, window_bounds = array<i64: 2, 32>}, {transform_indices = @transform_1, window_bounds = array<i64: 32, 512>}, {transform_indices = @transform_2, window_bounds = array<i64: 2, 512>}]} {
    %c0 = arith.constant 0 : index
    %c0_0 = arith.constant 0 : index
    %0 = vector.load %arg1[%c0, %c0_0] : memref<2x32xbf16, #tpu.memory_space<vmem>>, vector<2x32xbf16>
    %c0_1 = arith.constant 0 : index
    %c0_2 = arith.constant 0 : index
    %1 = vector.load %arg2[%c0_1, %c0_2] : memref<32x512xbf16, #tpu.memory_space<vmem>>, vector<32x512xbf16>
    %cst = arith.constant dense<0.000000e+00> : vector<2x512xf32>
    %2 = tpu.matmul %0, %1, %cst {dimension_numbers = #tpu.dot_dimension_numbers<[1], [0], [0], [1], [0, 0, 1, 1], [], []>} : vector<2x32xbf16>, vector<32x512xbf16>, vector<2x512xf32> -> vector<2x512xf32>
    %3 = arith.truncf %2 : vector<2x512xf32> to vector<2x512xbf16>
    %c0_3 = arith.constant 0 : index
    %c0_4 = arith.constant 0 : index
    %4 = vector.load %arg3[%c0_3, %c0_4] : memref<2x512xbf16, #tpu.memory_space<vmem>>, vector<2x512xbf16>
    tpu.vector_store %arg3[%c0_3, %c0_4], %3 {strides = array<i32>} : memref<2x512xbf16, #tpu.memory_space<vmem>>, vector<2x512xbf16>,
    return
  }
  func.func @transform_0(%arg0: i32) -> (i32, i32) {
    %c0_i32 = arith.constant 0 : i32
    %c0_i32_0 = arith.constant 0 : i32
    %c0_i32_1 = arith.constant 0 : i32
    return %c0_i32, %c0_i32_0 : i32, i32
  }
  func.func @transform_1(%arg0: i32) -> (i32, i32) {
    %c0_i32 = arith.constant 0 : i32
    %c0_i32_0 = arith.constant 0 : i32
    return %c0_i32, %arg0 : i32, i32
  }
  func.func @transform_2(%arg0: i32) -> (i32, i32) {
    %c0_i32 = arith.constant 0 : i32
    %c0_i32_0 = arith.constant 0 : i32
    return %c0_i32, %arg0 : i32, i32
  }
}

module attributes {stable_mosaic.version = 11 : i64} {
  func.func @_gru_gates_kernel(%arg0: i32, %arg1: memref<16x216xbf16, #tpu.memory_space<vmem>>, %arg2: memref<216x128xbf16, #tpu.memory_space<vmem>>, %arg3: memref<16x1xf32, #tpu.memory_space<vmem>>, %arg4: memref<16x128xbf16, #tpu.memory_space<vmem>>, %arg5: memref<8x128xf32, #tpu.memory_space<vmem>>, %arg6: memref<8x128xf32, #tpu.memory_space<vmem>>, %arg7: memref<8x128xbf16, #tpu.memory_space<vmem>>) attributes {dimension_semantics = [#tpu.dimension_semantics<parallel>], iteration_bounds = array<i64: 1>, scalar_prefetch = 0 : i64, scratch_operands = 0 : i64, tpu.core_type = #tpu.core_type<tc>, window_params = [{pipeline_mode = #tpu.pipeline_mode<synchronous>, transform_indices = @transform_0, window_bounds = array<i64: 16, 216>}, {transform_indices = @transform_1, window_bounds = array<i64: 216, 128>}, {pipeline_mode = #tpu.pipeline_mode<synchronous>, transform_indices = @transform_2, window_bounds = array<i64: 16, 1>}, {transform_indices = @transform_3, window_bounds = array<i64: 16, 128>}, {transform_indices = @transform_4, window_bounds = array<i64: 8, 128>}, {transform_indices = @transform_5, window_bounds = array<i64: 8, 128>}, {transform_indices = @transform_6, window_bounds = array<i64: 8, 128>}]} {
    %c0 = arith.constant 0 : index
    %c0_0 = arith.constant 0 : index
    %0 = vector.load %arg1[%c0, %c0_0] : memref<16x216xbf16, #tpu.memory_space<vmem>>, vector<16x216xbf16>
    %c0_1 = arith.constant 0 : index
    %c0_2 = arith.constant 0 : index
    %1 = vector.load %arg2[%c0_1, %c0_2] : memref<216x128xbf16, #tpu.memory_space<vmem>>, vector<216x128xbf16>
    %cst = arith.constant dense<0.000000e+00> : vector<16x128xf32>
    %2 = tpu.matmul %0, %1, %cst {dimension_numbers = #tpu.dot_dimension_numbers<[1], [0], [0], [1], [0, 0, 1, 1], [], []>} : vector<16x216xbf16>, vector<216x128xbf16>, vector<16x128xf32> -> vector<16x128xf32>
    %c0_3 = arith.constant 0 : index
    %c0_4 = arith.constant 0 : index
    %3 = vector.load %arg3[%c0_3, %c0_4] : memref<16x1xf32, #tpu.memory_space<vmem>>, vector<16x1xf32>
    %4 = vector.broadcast %3 : vector<16x1xf32> to vector<16x128xf32>
    %5 = arith.addf %2, %4 : vector<16x128xf32>
    %c0_5 = arith.constant 0 : index
    %c0_6 = arith.constant 0 : index
    %6 = vector.load %arg4[%c0_5, %c0_6] : memref<16x128xbf16, #tpu.memory_space<vmem>>, vector<16x128xbf16>
    %7 = arith.extf %6 : vector<16x128xbf16> to vector<16x128xf32>
    %8 = arith.addf %5, %7 : vector<16x128xf32>
    %cst_7 = arith.constant 0.000000e+00 : f32
    %9 = vector.broadcast %cst_7 : f32 to vector<16x128xf32>
    %10 = arith.subf %9, %8 : vector<16x128xf32>
    %11 = math.exp %10 : vector<16x128xf32>
    %cst_8 = arith.constant 1.000000e+00 : f32
    %12 = vector.broadcast %cst_8 : f32 to vector<16x128xf32>
    %13 = arith.addf %12, %11 : vector<16x128xf32>
    %cst_9 = arith.constant 1.000000e+00 : f32
    %14 = vector.broadcast %cst_9 : f32 to vector<16x128xf32>
    %15 = arith.divf %14, %13 : vector<16x128xf32>
    %16 = vector.extract_strided_slice %15 {offsets = [0, 0], sizes = [8, 128], strides = [1, 1]} : vector<16x128xf32> to vector<8x128xf32>
    %c0_10 = arith.constant 0 : index
    %c0_11 = arith.constant 0 : index
    %17 = vector.load %arg6[%c0_10, %c0_11] : memref<8x128xf32, #tpu.memory_space<vmem>>, vector<8x128xf32>
    tpu.vector_store %arg6[%c0_10, %c0_11], %16 {strides = array<i32>} : memref<8x128xf32, #tpu.memory_space<vmem>>, vector<8x128xf32>,
    %18 = vector.extract_strided_slice %15 {offsets = [8, 0], sizes = [8, 128], strides = [1, 1]} : vector<16x128xf32> to vector<8x128xf32>
    %c0_12 = arith.constant 0 : index
    %c0_13 = arith.constant 0 : index
    %19 = vector.load %arg5[%c0_12, %c0_13] : memref<8x128xf32, #tpu.memory_space<vmem>>, vector<8x128xf32>
    %20 = arith.mulf %18, %19 : vector<8x128xf32>
    %21 = arith.truncf %20 : vector<8x128xf32> to vector<8x128xbf16>
    %c0_14 = arith.constant 0 : index
    %c0_15 = arith.constant 0 : index
    %22 = vector.load %arg7[%c0_14, %c0_15] : memref<8x128xbf16, #tpu.memory_space<vmem>>, vector<8x128xbf16>
    tpu.vector_store %arg7[%c0_14, %c0_15], %21 {strides = array<i32>} : memref<8x128xbf16, #tpu.memory_space<vmem>>, vector<8x128xbf16>,
    return
  }
  func.func @transform_0(%arg0: i32) -> (i32, i32) {
    %c0_i32 = arith.constant 0 : i32
    %c0_i32_0 = arith.constant 0 : i32
    %c0_i32_1 = arith.constant 0 : i32
    return %c0_i32, %c0_i32_0 : i32, i32
  }
  func.func @transform_1(%arg0: i32) -> (i32, i32) {
    %c0_i32 = arith.constant 0 : i32
    %c0_i32_0 = arith.constant 0 : i32
    return %c0_i32, %arg0 : i32, i32
  }
  func.func @transform_2(%arg0: i32) -> (i32, i32) {
    %c0_i32 = arith.constant 0 : i32
    %c0_i32_0 = arith.constant 0 : i32
    %c0_i32_1 = arith.constant 0 : i32
    return %c0_i32, %c0_i32_0 : i32, i32
  }
  func.func @transform_3(%arg0: i32) -> (i32, i32) {
    %c0_i32 = arith.constant 0 : i32
    %c0_i32_0 = arith.constant 0 : i32
    return %c0_i32, %arg0 : i32, i32
  }
  func.func @transform_4(%arg0: i32) -> (i32, i32) {
    %c0_i32 = arith.constant 0 : i32
    %c0_i32_0 = arith.constant 0 : i32
    return %c0_i32, %arg0 : i32, i32
  }
  func.func @transform_5(%arg0: i32) -> (i32, i32) {
    %c0_i32 = arith.constant 0 : i32
    %c0_i32_0 = arith.constant 0 : i32
    return %c0_i32, %arg0 : i32, i32
  }
  func.func @transform_6(%arg0: i32) -> (i32, i32) {
    %c0_i32 = arith.constant 0 : i32
    %c0_i32_0 = arith.constant 0 : i32
    return %c0_i32, %arg0 : i32, i32
  }
}

module attributes {stable_mosaic.version = 11 : i64} {
  func.func @_gru_out_kernel(%arg0: i32, %arg1: memref<8x216xbf16, #tpu.memory_space<vmem>>, %arg2: memref<216x128xbf16, #tpu.memory_space<vmem>>, %arg3: memref<8x1xf32, #tpu.memory_space<vmem>>, %arg4: memref<8x128xbf16, #tpu.memory_space<vmem>>, %arg5: memref<8x128xf32, #tpu.memory_space<vmem>>, %arg6: memref<8x128xf32, #tpu.memory_space<vmem>>, %arg7: memref<8x128xf32, #tpu.memory_space<vmem>>) attributes {dimension_semantics = [#tpu.dimension_semantics<parallel>], iteration_bounds = array<i64: 1>, scalar_prefetch = 0 : i64, scratch_operands = 0 : i64, tpu.core_type = #tpu.core_type<tc>, window_params = [{pipeline_mode = #tpu.pipeline_mode<synchronous>, transform_indices = @transform_0, window_bounds = array<i64: 8, 216>}, {transform_indices = @transform_1, window_bounds = array<i64: 216, 128>}, {pipeline_mode = #tpu.pipeline_mode<synchronous>, transform_indices = @transform_2, window_bounds = array<i64: 8, 1>}, {transform_indices = @transform_3, window_bounds = array<i64: 8, 128>}, {transform_indices = @transform_4, window_bounds = array<i64: 8, 128>}, {transform_indices = @transform_5, window_bounds = array<i64: 8, 128>}, {transform_indices = @transform_6, window_bounds = array<i64: 8, 128>}]} {
    %c0 = arith.constant 0 : index
    %c0_0 = arith.constant 0 : index
    %0 = vector.load %arg1[%c0, %c0_0] : memref<8x216xbf16, #tpu.memory_space<vmem>>, vector<8x216xbf16>
    %c0_1 = arith.constant 0 : index
    %c0_2 = arith.constant 0 : index
    %1 = vector.load %arg2[%c0_1, %c0_2] : memref<216x128xbf16, #tpu.memory_space<vmem>>, vector<216x128xbf16>
    %cst = arith.constant dense<0.000000e+00> : vector<8x128xf32>
    %2 = tpu.matmul %0, %1, %cst {dimension_numbers = #tpu.dot_dimension_numbers<[1], [0], [0], [1], [0, 0, 1, 1], [], []>} : vector<8x216xbf16>, vector<216x128xbf16>, vector<8x128xf32> -> vector<8x128xf32>
    %c0_3 = arith.constant 0 : index
    %c0_4 = arith.constant 0 : index
    %3 = vector.load %arg3[%c0_3, %c0_4] : memref<8x1xf32, #tpu.memory_space<vmem>>, vector<8x1xf32>
    %4 = vector.broadcast %3 : vector<8x1xf32> to vector<8x128xf32>
    %5 = arith.addf %2, %4 : vector<8x128xf32>
    %c0_5 = arith.constant 0 : index
    %c0_6 = arith.constant 0 : index
    %6 = vector.load %arg4[%c0_5, %c0_6] : memref<8x128xbf16, #tpu.memory_space<vmem>>, vector<8x128xbf16>
    %7 = arith.extf %6 : vector<8x128xbf16> to vector<8x128xf32>
    %8 = arith.addf %5, %7 : vector<8x128xf32>
    %9 = math.tanh %8 : vector<8x128xf32>
    %c0_7 = arith.constant 0 : index
    %c0_8 = arith.constant 0 : index
    %10 = vector.load %arg5[%c0_7, %c0_8] : memref<8x128xf32, #tpu.memory_space<vmem>>, vector<8x128xf32>
    %c0_9 = arith.constant 0 : index
    %c0_10 = arith.constant 0 : index
    %11 = vector.load %arg6[%c0_9, %c0_10] : memref<8x128xf32, #tpu.memory_space<vmem>>, vector<8x128xf32>
    %12 = arith.mulf %10, %11 : vector<8x128xf32>
    %cst_11 = arith.constant 1.000000e+00 : f32
    %13 = vector.broadcast %cst_11 : f32 to vector<8x128xf32>
    %14 = arith.subf %13, %10 : vector<8x128xf32>
    %15 = arith.mulf %14, %9 : vector<8x128xf32>
    %16 = arith.addf %12, %15 : vector<8x128xf32>
    %c0_12 = arith.constant 0 : index
    %c0_13 = arith.constant 0 : index
    %17 = vector.load %arg7[%c0_12, %c0_13] : memref<8x128xf32, #tpu.memory_space<vmem>>, vector<8x128xf32>
    tpu.vector_store %arg7[%c0_12, %c0_13], %16 {strides = array<i32>} : memref<8x128xf32, #tpu.memory_space<vmem>>, vector<8x128xf32>,
    return
  }
  func.func @transform_0(%arg0: i32) -> (i32, i32) {
    %c0_i32 = arith.constant 0 : i32
    %c0_i32_0 = arith.constant 0 : i32
    %c0_i32_1 = arith.constant 0 : i32
    return %c0_i32, %c0_i32_0 : i32, i32
  }
  func.func @transform_1(%arg0: i32) -> (i32, i32) {
    %c0_i32 = arith.constant 0 : i32
    %c0_i32_0 = arith.constant 0 : i32
    return %c0_i32, %arg0 : i32, i32
  }
  func.func @transform_2(%arg0: i32) -> (i32, i32) {
    %c0_i32 = arith.constant 0 : i32
    %c0_i32_0 = arith.constant 0 : i32
    %c0_i32_1 = arith.constant 0 : i32
    return %c0_i32, %c0_i32_0 : i32, i32
  }
  func.func @transform_3(%arg0: i32) -> (i32, i32) {
    %c0_i32 = arith.constant 0 : i32
    %c0_i32_0 = arith.constant 0 : i32
    return %c0_i32, %arg0 : i32, i32
  }
  func.func @transform_4(%arg0: i32) -> (i32, i32) {
    %c0_i32 = arith.constant 0 : i32
    %c0_i32_0 = arith.constant 0 : i32
    return %c0_i32, %arg0 : i32, i32
  }
  func.func @transform_5(%arg0: i32) -> (i32, i32) {
    %c0_i32 = arith.constant 0 : i32
    %c0_i32_0 = arith.constant 0 : i32
    return %c0_i32, %arg0 : i32, i32
  }
  func.func @transform_6(%arg0: i32) -> (i32, i32) {
    %c0_i32 = arith.constant 0 : i32
    %c0_i32_0 = arith.constant 0 : i32
    return %c0_i32, %arg0 : i32, i32
  }
}

</mosaic_0001>

<llo_original>
// kernel: encoder_forward.10
$region0: #{encoder_forward.10}
  #allocation0 [shape = 'u32[]', space=smem, size = 0x4, offset = 0x4, fixed_abs, tag = 'smem constant byte address 0x4 - core index']
  #allocation1 [shape = 'u32[144,128]{1,0:T(1,128)}', space=vmem, size = 0x12000, scoped, tag = 'internal scratch']
  %s0 = inlined_call_operand.vmem [shape: bf16[8,196], index: 0, kind: input, shape index: {}]
  %s1 = inlined_call_operand.vmem [shape: bf16[196,512], index: 1, kind: input, shape index: {}]
  %s2 = inlined_call_operand.vmem [shape: f32[8,1], index: 2, kind: input, shape index: {}]
  %s3 = inlined_call_operand.vmem [shape: bf16[8,512], index: 3, kind: output, shape index: {}]
  %s4 = sld [smem:[#allocation0]]
  $region83: #{encoder_forward.10} parent=0
    _
  %s6 = ssub.s32 1, %s4
  %s7 = scalar_select 0, %s6, %s4
  $region1: #{encoder_forward.10} parent=0
    #allocation2 [shape = 'u8[204800]{0}', space=vmem, size = 0x32000, scoped, tag = 'input window, operand 1']
    loop: start=0, step=1, limit=4
    $region2: #{encoder_forward.10} parent=1 // loop_pre_header
      _
    $region3: #{encoder_forward.10} parent=1 // loop_header
      %s9 = sphi 0, %s13
      %p10 = scmp.ge.s32.totalorder %s9, 4
      %s17 = sphi 0, %s17
      %s19 = sphi 0, %s17
      %s20 = sphi 0, %s19
      %s34 = sphi 0, %s20
      %s40 = sphi 0, %s42
      %s43 = sphi 0, %s40
      %s44 = sphi 0, %s43
      %s60 = sphi 0, %s44
      %s64 = sphi 0, %s64
      %s66 = sphi 0, %s64
      %s67 = sphi 0, %s66
      %s81 = sphi 0, %s67
      %s87 = sphi 0, %s89
      %s90 = sphi 0, %s87
      %s91 = sphi 0, %s90
      %s107 = sphi 0, %s91
    $region4: #{encoder_forward.10} parent=1 // loop_header_branch
      %12 = sbr.rel (%p10) target = $region8
    $region5: #{encoder_forward.10} parent=1 // loop_body
      %s14 = ssub.s32 %s9, 1
      %s15 = ssub.s32 %s9, 2
      %s16 = sadd.s32 %s9, 1
      %s18 = sadd.s32 %s17, 1
      %p21 = scmp.eq.s32.totalorder %s9, 1
      %p22 = scmp.ne.s32.totalorder %s17, %s19
      %p23 = scmp.eq.s32.totalorder %s9, 0
      %p24 = por %p22, %p23
      %p25 = scmp.ne.s32.totalorder %s17, %s19
      %p26 = scmp.eq.s32.totalorder %s14, 1
      %p27 = por %p25, %p26
      %p28 = scmp.ne.s32.totalorder %s19, %s20
      %p29 = scmp.eq.s32.totalorder %s14, 0
      %p30 = por %p28, %p29
      %p31 = scmp.ne.s32.totalorder %s19, %s20
      %p32 = scmp.eq.s32.totalorder %s15, 1
      %p33 = por %p31, %p32
      %p35 = scmp.ne.s32.totalorder %s20, %s34
      %p36 = scmp.eq.s32.totalorder %s15, 0
      %p37 = por %p35, %p36
      %s38 = ssub.s32 %s9, %s16
      %p39 = scmp.eq.s32.totalorder %s38, 0
      %s41 = sadd.s32 %s40, 1
      %s42 = scalar_select %p39, %s40, %s41
      %p45 = pneg %p39
      %p46 = scmp.eq.s32.totalorder %s9, 1
      %p47 = por %p45, %p46
      %p48 = scmp.ne.s32.totalorder %s40, %s43
      %p49 = scmp.eq.s32.totalorder %s9, 0
      %p50 = por %p48, %p49
      %p51 = scmp.ne.s32.totalorder %s40, %s43
      %p52 = scmp.eq.s32.totalorder %s14, 1
      %p53 = por %p51, %p52
      %p54 = scmp.ne.s32.totalorder %s43, %s44
      %p55 = scmp.eq.s32.totalorder %s14, 0
      %p56 = por %p54, %p55
      %p57 = scmp.ne.s32.totalorder %s43, %s44
      %p58 = scmp.eq.s32.totalorder %s15, 1
      %p59 = por %p57, %p58
      %p61 = scmp.ne.s32.totalorder %s44, %s60
      %p62 = scmp.eq.s32.totalorder %s15, 0
      %p63 = por %p61, %p62
      %s65 = sadd.s32 %s64, 1
      %p68 = scmp.eq.s32.totalorder %s9, 1
      %p69 = scmp.ne.s32.totalorder %s64, %s66
      %p70 = scmp.eq.s32.totalorder %s9, 0
      %p71 = por %p69, %p70
      %p72 = scmp.ne.s32.totalorder %s64, %s66
      %p73 = scmp.eq.s32.totalorder %s14, 1
      %p74 = por %p72, %p73
      %p75 = scmp.ne.s32.totalorder %s66, %s67
      %p76 = scmp.eq.s32.totalorder %s14, 0
      %p77 = por %p75, %p76
      %p78 = scmp.ne.s32.totalorder %s66, %s67
      %p79 = scmp.eq.s32.totalorder %s15, 1
      %p80 = por %p78, %p79
      %p82 = scmp.ne.s32.totalorder %s67, %s81
      %p83 = scmp.eq.s32.totalorder %s15, 0
      %p84 = por %p82, %p83
      %s85 = ssub.s32 %s9, %s16
      %p86 = scmp.eq.s32.totalorder %s85, 0
      %s88 = sadd.s32 %s87, 1
      %s89 = scalar_select %p86, %s87, %s88
      %p92 = pneg %p86
      %p93 = scmp.eq.s32.totalorder %s9, 1
      %p94 = por %p92, %p93
      %p95 = scmp.ne.s32.totalorder %s87, %s90
      %p96 = scmp.eq.s32.totalorder %s9, 0
      %p97 = por %p95, %p96
      %p98 = scmp.ne.s32.totalorder %s87, %s90
      %p99 = scmp.eq.s32.totalorder %s14, 1
      %p100 = por %p98, %p99
      %p101 = scmp.ne.s32.totalorder %s90, %s91
      %p102 = scmp.eq.s32.totalorder %s14, 0
      %p103 = por %p101, %p102
      %p104 = scmp.ne.s32.totalorder %s90, %s91
      %p105 = scmp.eq.s32.totalorder %s15, 1
      %p106 = por %p104, %p105
      %p108 = scmp.ne.s32.totalorder %s91, %s107
      %p109 = scmp.eq.s32.totalorder %s15, 0
      %p110 = por %p108, %p109
      %p111 = scmp.le.s32.totalorder 1, %s9
      %p112 = scmp.lt.s32.totalorder %s9, 3
      %p113 = pnand %p111, %p112
      %p114 = pneg %p113
      // Predicated region
      $region9: #{encoder_forward.10} parent=5 // pred_check
        _
      $region10: #{encoder_forward.10} parent=5 // pred_check_branch
        %116 = sbr.rel (%p113) target = $region12
      $region11: #{encoder_forward.10} parent=5 // pred_region
        %s117 = ssub.s32 %s9, 1
        // Predicated region
        $region13: #{encoder_forward.10} parent=11 // pred_check
          %p118 = pneg %p30
        $region14: #{encoder_forward.10} parent=11 // pred_check_branch
          %120 = sbr.rel (%p118) target = $region16
        $region15: #{encoder_forward.10} parent=11 // pred_region
          _
        $region16: #{encoder_forward.10} parent=11 // pred_fallthru
          _
        // Predicated region
        $region17: #{encoder_forward.10} parent=11 // pred_check
          %p121 = pneg %p77
        $region18: #{encoder_forward.10} parent=11 // pred_check_branch
          %123 = sbr.rel (%p121) target = $region20
        $region19: #{encoder_forward.10} parent=11 // pred_region
          _
        $region20: #{encoder_forward.10} parent=11 // pred_fallthru
          _
      $region12: #{encoder_forward.10} parent=5 // pred_fallthru
        _
      %p124 = scmp.lt.s32.totalorder %s9, 2
      // Predicated region
      $region21: #{encoder_forward.10} parent=5 // pred_check
        %p125 = pneg %p124
      $region22: #{encoder_forward.10} parent=5 // pred_check_branch
        %127 = sbr.rel (%p125) target = $region24
      $region23: #{encoder_forward.10} parent=5 // pred_region
        // Predicated region
        $region25: #{encoder_forward.10} parent=23 // pred_check
          %p128 = pneg %p50
        $region26: #{encoder_forward.10} parent=23 // pred_check_branch
          %130 = sbr.rel (%p128) target = $region28
        $region27: #{encoder_forward.10} parent=23 // pred_region
          %s131 = sand.u32 %s40, 1
          %s132 = sand.u32 %s40, 1
          %s133 = smul.addr %s132, 200
          %s134 = scalar_lea.vmem [#allocation2], %s133
          %s135 = smul.u32 2, %s9
          %s136 = smul.addr %s135, 4
          %s137 = scalar_lea.vmem %s1, %s136
          // Predicated region
          $region29: #{encoder_forward.10} parent=27 // pred_check
            _
          $region30: #{encoder_forward.10} parent=27 // pred_check_branch
            %139 = sbr.rel (0) target = $region32
          $region31: #{encoder_forward.10} parent=27 // pred_region
            // Predicated region
            $region33: #{encoder_forward.10} parent=31 // pred_check
              _
            $region34: #{encoder_forward.10} parent=31 // pred_check_branch
              %141 = sbr.rel (0) target = $region36
            $region35: #{encoder_forward.10} parent=31 // pred_region
              // Predicated region
              $region48: #{encoder_forward.10} parent=35 // pred_check
                _
              $region49: #{encoder_forward.10} parent=35 // pred_check_branch
                %204 = sbr.rel (0) target = $region51
              $region50: #{encoder_forward.10} parent=35 // pred_region
                loop: start=0, step=1, limit=1
                $region52: #{encoder_forward.10} parent=50 // loop_pre_header
                  _
                $region53: #{encoder_forward.10} parent=50 // loop_header
                  %s206 = sphi 0, %s210
                  %p207 = scmp.ge.s32.totalorder %s206, 1
                  %s211 = sphi %s137, %s137
                  %s212 = sphi %s134, %s134
                $region54: #{encoder_forward.10} parent=50 // loop_header_branch
                  %209 = sbr.rel (%p207) target = $region58
                $region55: #{encoder_forward.10} parent=50 // loop_body
                  %v213 = vld [vmem:[%s211] sm:$0xff]
                  %214 = vst [vmem:[%s212] sm:$0xff] %v213
                  %v215 = vld [vmem:[%s211 + $0x10] sm:$0xff]
                  %216 = vst [vmem:[%s212 + $0x8] sm:$0xff] %v215
                  %v217 = vld [vmem:[%s211 + $0x20] sm:$0xff]
                  %218 = vst [vmem:[%s212 + $0x10] sm:$0xff] %v217
                  %v219 = vld [vmem:[%s211 + $0x30] sm:$0xff]
                  %220 = vst [vmem:[%s212 + $0x18] sm:$0xff] %v219
                  %v221 = vld [vmem:[%s211 + $0x40] sm:$0xff]
                  %222 = vst [vmem:[%s212 + $0x20] sm:$0xff] %v221
                  %v223 = vld [vmem:[%s211 + $0x50] sm:$0xff]
                  %224 = vst [vmem:[%s212 + $0x28] sm:$0xff] %v223
                  %v225 = vld [vmem:[%s211 + $0x60] sm:$0xff]
                  %226 = vst [vmem:[%s212 + $0x30] sm:$0xff] %v225
                  %v227 = vld [vmem:[%s211 + $0x70] sm:$0xff]
                  %228 = vst [vmem:[%s212 + $0x38] sm:$0xff] %v227
                  %v229 = vld [vmem:[%s211 + $0x80] sm:$0xff]
                  %230 = vst [vmem:[%s212 + $0x40] sm:$0xff] %v229
                  %v231 = vld [vmem:[%s211 + $0x90] sm:$0xff]
                  %232 = vst [vmem:[%s212 + $0x48] sm:$0xff] %v231
                  %v233 = vld [vmem:[%s211 + $0xa0] sm:$0xff]
                  %234 = vst [vmem:[%s212 + $0x50] sm:$0xff] %v233
                  %v235 = vld [vmem:[%s211 + $0xb0] sm:$0xff]
                  %236 = vst [vmem:[%s212 + $0x58] sm:$0xff] %v235
                  %v237 = vld [vmem:[%s211 + $0xc0] sm:$0xff]
                  %238 = vst [vmem:[%s212 + $0x60] sm:$0xff] %v237
                  %v239 = vld [vmem:[%s211 + $0xd0] sm:$0xff]
                  %240 = vst [vmem:[%s212 + $0x68] sm:$0xff] %v239
                  %v241 = vld [vmem:[%s211 + $0xe0] sm:$0xff]
                  %242 = vst [vmem:[%s212 + $0x70] sm:$0xff] %v241
                  %v243 = vld [vmem:[%s211 + $0xf0] sm:$0xff]
                  %244 = vst [vmem:[%s212 + $0x78] sm:$0xff] %v243
                  %v245 = vld [vmem:[%s211 + $0x100] sm:$0xff]
                  %246 = vst [vmem:[%s212 + $0x80] sm:$0xff] %v245
                  %v247 = vld [vmem:[%s211 + $0x110] sm:$0xff]
                  %248 = vst [vmem:[%s212 + $0x88] sm:$0xff] %v247
                  %v249 = vld [vmem:[%s211 + $0x120] sm:$0xff]
                  %250 = vst [vmem:[%s212 + $0x90] sm:$0xff] %v249
                  %v251 = vld [vmem:[%s211 + $0x130] sm:$0xff]
                  %252 = vst [vmem:[%s212 + $0x98] sm:$0xff] %v251
                  %v253 = vld [vmem:[%s211 + $0x140] sm:$0xff]
                  %254 = vst [vmem:[%s212 + $0xa0] sm:$0xff] %v253
                  %v255 = vld [vmem:[%s211 + $0x150] sm:$0xff]
                  %256 = vst [vmem:[%s212 + $0xa8] sm:$0xff] %v255
                  %v257 = vld [vmem:[%s211 + $0x160] sm:$0xff]
                  %258 = vst [vmem:[%s212 + $0xb0] sm:$0xff] %v257
                  %v259 = vld [vmem:[%s211 + $0x170] sm:$0xff]
                  %260 = vst [vmem:[%s212 + $0xb8] sm:$0xff] %v259
                  %v261 = vld [vmem:[%s211 + $0x180] sm:$0xff]
                  %262 = vst [vmem:[%s212 + $0xc0] sm:$0xff] %v261
                $region56: #{encoder_forward.10} parent=50 // loop_footer
                  %s210 = sadd.s32 1, %s206
                $region57: #{encoder_forward.10} parent=50 // loop_footer_branch
                  %205 = sbr.rel target = $region53
                $region58: #{encoder_forward.10} parent=50 // loop_exit
                  _
              $region51: #{encoder_forward.10} parent=35 // pred_fallthru
                _
              // Predicated region
              $region59: #{encoder_forward.10} parent=35 // pred_check
                _
              $region60: #{encoder_forward.10} parent=35 // pred_check_branch
                %264 = sbr.rel target = $region62
              $region61: #{encoder_forward.10} parent=35 // pred_region
                _
              $region62: #{encoder_forward.10} parent=35 // pred_fallthru
                _
            $region36: #{encoder_forward.10} parent=31 // pred_fallthru
              _
            // Predicated region
            $region37: #{encoder_forward.10} parent=31 // pred_check
              _
            $region38: #{encoder_forward.10} parent=31 // pred_check_branch
              %143 = sbr.rel target = $region40
            $region39: #{encoder_forward.10} parent=31 // pred_region
              loop: start=0, step=1, limit=1
              $region41: #{encoder_forward.10} parent=39 // loop_pre_header
                _
              $region42: #{encoder_forward.10} parent=39 // loop_header
                %s146 = sphi 0, %s150
                %p147 = scmp.ge.s32.totalorder %s146, 1
                %s151 = sphi %s137, %s137
                %s152 = sphi %s134, %s134
              $region43: #{encoder_forward.10} parent=39 // loop_header_branch
                %149 = sbr.rel (%p147) target = $region47
              $region44: #{encoder_forward.10} parent=39 // loop_body
                %v153 = vld [vmem:[%s151] sm:$0xff]
                %154 = vst [vmem:[%s152] sm:$0xff] %v153
                %v155 = vld [vmem:[%s151 + $0x10] sm:$0xff]
                %156 = vst [vmem:[%s152 + $0x8] sm:$0xff] %v155
                %v157 = vld [vmem:[%s151 + $0x20] sm:$0xff]
                %158 = vst [vmem:[%s152 + $0x10] sm:$0xff] %v157
                %v159 = vld [vmem:[%s151 + $0x30] sm:$0xff]
                %160 = vst [vmem:[%s152 + $0x18] sm:$0xff] %v159
                %v161 = vld [vmem:[%s151 + $0x40] sm:$0xff]
                %162 = vst [vmem:[%s152 + $0x20] sm:$0xff] %v161
                %v163 = vld [vmem:[%s151 + $0x50] sm:$0xff]
                %164 = vst [vmem:[%s152 + $0x28] sm:$0xff] %v163
                %v165 = vld [vmem:[%s151 + $0x60] sm:$0xff]
                %166 = vst [vmem:[%s152 + $0x30] sm:$0xff] %v165
                %v167 = vld [vmem:[%s151 + $0x70] sm:$0xff]
                %168 = vst [vmem:[%s152 + $0x38] sm:$0xff] %v167
                %v169 = vld [vmem:[%s151 + $0x80] sm:$0xff]
                %170 = vst [vmem:[%s152 + $0x40] sm:$0xff] %v169
                %v171 = vld [vmem:[%s151 + $0x90] sm:$0xff]
                %172 = vst [vmem:[%s152 + $0x48] sm:$0xff] %v171
                %v173 = vld [vmem:[%s151 + $0xa0] sm:$0xff]
                %174 = vst [vmem:[%s152 + $0x50] sm:$0xff] %v173
                %v175 = vld [vmem:[%s151 + $0xb0] sm:$0xff]
                %176 = vst [vmem:[%s152 + $0x58] sm:$0xff] %v175
                %v177 = vld [vmem:[%s151 + $0xc0] sm:$0xff]
                %178 = vst [vmem:[%s152 + $0x60] sm:$0xff] %v177
                %v179 = vld [vmem:[%s151 + $0xd0] sm:$0xff]
                %180 = vst [vmem:[%s152 + $0x68] sm:$0xff] %v179
                %v181 = vld [vmem:[%s151 + $0xe0] sm:$0xff]
                %182 = vst [vmem:[%s152 + $0x70] sm:$0xff] %v181
                %v183 = vld [vmem:[%s151 + $0xf0] sm:$0xff]
                %184 = vst [vmem:[%s152 + $0x78] sm:$0xff] %v183
                %v185 = vld [vmem:[%s151 + $0x100] sm:$0xff]
                %186 = vst [vmem:[%s152 + $0x80] sm:$0xff] %v185
                %v187 = vld [vmem:[%s151 + $0x110] sm:$0xff]
                %188 = vst [vmem:[%s152 + $0x88] sm:$0xff] %v187
                %v189 = vld [vmem:[%s151 + $0x120] sm:$0xff]
                %190 = vst [vmem:[%s152 + $0x90] sm:$0xff] %v189
                %v191 = vld [vmem:[%s151 + $0x130] sm:$0xff]
                %192 = vst [vmem:[%s152 + $0x98] sm:$0xff] %v191
                %v193 = vld [vmem:[%s151 + $0x140] sm:$0xff]
                %194 = vst [vmem:[%s152 + $0xa0] sm:$0xff] %v193
                %v195 = vld [vmem:[%s151 + $0x150] sm:$0xff]
                %196 = vst [vmem:[%s152 + $0xa8] sm:$0xff] %v195
                %v197 = vld [vmem:[%s151 + $0x160] sm:$0xff]
                %198 = vst [vmem:[%s152 + $0xb0] sm:$0xff] %v197
                %v199 = vld [vmem:[%s151 + $0x170] sm:$0xff]
                %200 = vst [vmem:[%s152 + $0xb8] sm:$0xff] %v199
                %v201 = vld [vmem:[%s151 + $0x180] sm:$0xff]
                %202 = vst [vmem:[%s152 + $0xc0] sm:$0xff] %v201
              $region45: #{encoder_forward.10} parent=39 // loop_footer
                %s150 = sadd.s32 1, %s146
              $region46: #{encoder_forward.10} parent=39 // loop_footer_branch
                %145 = sbr.rel target = $region42
              $region47: #{encoder_forward.10} parent=39 // loop_exit
                _
            $region40: #{encoder_forward.10} parent=31 // pred_fallthru
              _
          $region32: #{encoder_forward.10} parent=27 // pred_fallthru
            _
          %265 = vnop
        $region28: #{encoder_forward.10} parent=23 // pred_fallthru
          _
      $region24: #{encoder_forward.10} parent=5 // pred_fallthru
        _
      %p266 = scmp.le.s32.totalorder 1, %s9
      %p267 = scmp.lt.s32.totalorder %s9, 3
      %p268 = pnand %p266, %p267
      %p269 = pneg %p268
      // Predicated region
      $region63: #{encoder_forward.10} parent=5 // pred_check
        _
      $region64: #{encoder_forward.10} parent=5 // pred_check_branch
        %271 = sbr.rel (%p268) target = $region66
      $region65: #{encoder_forward.10} parent=5 // pred_region
        %s272 = ssub.s32 %s9, 1
        %s273 = sand.u32 %s43, 1
        %s274 = sand.u32 %s43, 1
        %s275 = smul.addr %s274, 200
        %s276 = scalar_lea.vmem [#allocation2], %s275
        // Predicated region
        $region67: #{encoder_forward.10} parent=65 // pred_check
          %p277 = pneg %p56
        $region68: #{encoder_forward.10} parent=65 // pred_check_branch
          %279 = sbr.rel (%p277) target = $region70
        $region69: #{encoder_forward.10} parent=65 // pred_region
          _
        $region70: #{encoder_forward.10} parent=65 // pred_fallthru
          _
        %p280 = pneg %p30
        %p281 = pneg %p27
        %s282 = sand.u32 %s43, 1
        %s283 = sand.u32 %s43, 1
        %s284 = smul.addr %s283, 200
        %s285 = scalar_lea.vmem [#allocation2], %s284
        %p286 = pneg %p56
        %p287 = pneg %p53
        %p288 = pneg %p77
        %p289 = pneg %p74
        %p290 = pneg %p103
        %p291 = pneg %p100
        %s292 = smul.u32 2, %s14
        %p293 = scmp.lt.s32.totalorder %s292, 3
        %s294 = scalar_select %p293, %s292, 3
        %s295 = smul.addr %s294, 4
        %s296 = scalar_lea.vmem %s3, %s295
        %s297 = smul.u32 2, %s14
        %s298 = smul.u32 2, %s14
        %p299 = scmp.lt.s32.totalorder %s298, 3
        %s300 = scalar_select %p299, %s298, 3
        %s301 = smul.addr %s300, 4
        %s302 = scalar_lea.vmem %s3, %s301
        %s303 = smul.u32 2, %s14
        %v305 = vld [vmem:[%s0] sm:$0xff]
        %v306 = vld [vmem:[%s276] sm:$0xff]
        %v307 = vld [vmem:[%s276 + $0x8] sm:$0xff]
        %v308 = vld [vmem:[%s276 + $0x10] sm:$0xff]
        %v309 = vld [vmem:[%s276 + $0x18] sm:$0xff]
        %v310 = vld [vmem:[%s276 + $0x20] sm:$0xff]
        %v311 = vld [vmem:[%s276 + $0x28] sm:$0xff]
        %v312 = vld [vmem:[%s276 + $0x30] sm:$0xff]
        %v313 = vld [vmem:[%s276 + $0x38] sm:$0xff]
        %v314 = vld [vmem:[%s276 + $0x40] sm:$0xff]
        %v315 = vld [vmem:[%s276 + $0x48] sm:$0xff]
        %v316 = vld [vmem:[%s276 + $0x50] sm:$0xff]
        %v317 = vld [vmem:[%s276 + $0x58] sm:$0xff]
        %v318 = vld [vmem:[%s276 + $0x60] sm:$0xff]
        %v319 = vld [vmem:[%s276 + $0x68] sm:$0xff]
        %v320 = vld [vmem:[%s276 + $0x70] sm:$0xff]
        %v321 = vld [vmem:[%s276 + $0x78] sm:$0xff]
        %v322 = vld [vmem:[%s276 + $0x80] sm:$0xff]
        %v323 = vld [vmem:[%s276 + $0x88] sm:$0xff]
        %v324 = vld [vmem:[%s276 + $0x90] sm:$0xff]
        %v325 = vld [vmem:[%s276 + $0x98] sm:$0xff]
        %v326 = vld [vmem:[%s276 + $0xa0] sm:$0xff]
        %v327 = vld [vmem:[%s276 + $0xa8] sm:$0xff]
        %v328 = vld [vmem:[%s276 + $0xb0] sm:$0xff]
        %v329 = vld [vmem:[%s276 + $0xb8] sm:$0xff]
        %v330 = vld [vmem:[%s276 + $0xc0] sm:$0x33]
        %v331 = vld [vmem:[%s2] sm:$0xff]
        %333 = vset.pattern.permute.xlu0 0
        %334 = vperm.xlu0 %333, %v331
        %v335 = vpop.permute.xlu0 %334
        %v338 = vunpack.c.l.b16 %v305
        %v339 = vunpack.c.h.b16 %v305
        %v340 = vpack.c.b16 %v338, %v338
        %v341 = vpack.c.b16 %v339, %v339
        %v368 = vunpack.c.l.b16 %v306
        %v369 = vunpack.c.h.b16 %v306
        %v370 = vunpack.c.l.b16 %v307
        %v371 = vunpack.c.h.b16 %v307
        %v372 = vunpack.c.l.b16 %v308
        %v373 = vunpack.c.h.b16 %v308
        %v374 = vunpack.c.l.b16 %v309
        %v375 = vunpack.c.h.b16 %v309
        %v376 = vunpack.c.l.b16 %v310
        %v377 = vunpack.c.h.b16 %v310
        %v378 = vunpack.c.l.b16 %v311
        %v379 = vunpack.c.h.b16 %v311
        %v380 = vunpack.c.l.b16 %v312
        %v381 = vunpack.c.h.b16 %v312
        %v382 = vunpack.c.l.b16 %v313
        %v383 = vunpack.c.h.b16 %v313
        %v384 = vunpack.c.l.b16 %v314
        %v385 = vunpack.c.h.b16 %v314
        %v386 = vunpack.c.l.b16 %v315
        %v387 = vunpack.c.h.b16 %v315
        %v388 = vunpack.c.l.b16 %v316
        %v389 = vunpack.c.h.b16 %v316
        %v390 = vunpack.c.l.b16 %v317
        %v391 = vunpack.c.h.b16 %v317
        %v392 = vunpack.c.l.b16 %v318
        %v393 = vunpack.c.h.b16 %v318
        %v394 = vunpack.c.l.b16 %v319
        %v395 = vunpack.c.h.b16 %v319
        %v396 = vunpack.c.l.b16 %v320
        %v397 = vunpack.c.h.b16 %v320
        %v398 = vunpack.c.l.b16 %v321
        %v399 = vunpack.c.h.b16 %v321
        %v400 = vunpack.c.l.b16 %v322
        %v401 = vunpack.c.h.b16 %v322
        %v402 = vunpack.c.l.b16 %v323
        %v403 = vunpack.c.h.b16 %v323
        %v404 = vunpack.c.l.b16 %v324
        %v405 = vunpack.c.h.b16 %v324
        %v406 = vunpack.c.l.b16 %v325
        %v407 = vunpack.c.h.b16 %v325
        %v408 = vunpack.c.l.b16 %v326
        %v409 = vunpack.c.h.b16 %v326
        %v410 = vunpack.c.l.b16 %v327
        %v411 = vunpack.c.h.b16 %v327
        %v412 = vunpack.c.l.b16 %v328
        %v413 = vunpack.c.h.b16 %v328
        %v414 = vunpack.c.l.b16 %v329
        %v415 = vunpack.c.h.b16 %v329
        %v416 = vunpack.c.l.b16 %v330
        %v417 = vunpack.c.h.b16 %v330
        %v418 = vpack.c.b16 %v370, %v368
        %v419 = vpack.c.b16 %v371, %v369
        %v420 = vpack.c.b16 %v374, %v372
        %v421 = vpack.c.b16 %v375, %v373
        %v422 = vpack.c.b16 %v378, %v376
        %v423 = vpack.c.b16 %v379, %v377
        %v424 = vpack.c.b16 %v382, %v380
        %v425 = vpack.c.b16 %v383, %v381
        %v426 = vpack.c.b16 %v386, %v384
        %v427 = vpack.c.b16 %v387, %v385
        %v428 = vpack.c.b16 %v390, %v388
        %v429 = vpack.c.b16 %v391, %v389
        %v430 = vpack.c.b16 %v394, %v392
        %v431 = vpack.c.b16 %v395, %v393
        %v432 = vpack.c.b16 %v398, %v396
        %v433 = vpack.c.b16 %v399, %v397
        %v434 = vpack.c.b16 %v402, %v400
        %v435 = vpack.c.b16 %v403, %v401
        %v436 = vpack.c.b16 %v406, %v404
        %v437 = vpack.c.b16 %v407, %v405
        %v438 = vpack.c.b16 %v410, %v408
        %v439 = vpack.c.b16 %v411, %v409
        %v440 = vpack.c.b16 %v414, %v412
        %v441 = vpack.c.b16 %v415, %v413
        %v442 = vpack.c.b16 %v416, %v416
        %v443 = vpack.c.b16 %v417, %v417
        %vm468 = vcmask 556032
        %v470 = vsel %vm468, %v341, 0
        %vm472 = vcmask 1041408
        %v474 = vsel %vm472, %v442, 0
        %v477 = vsel %vm472, %v443, 0
        %479 = vmatprep.subr.bf16.mxu0 %v419
        %480 = vmatpush1.bf16.msra.mxu0 %v418
        %481 = vmatprep.subr.bf16.mxu0 %v421
        %482 = vmatpush1.bf16.msra.mxu0 %v420
        %483 = vmatprep.subr.bf16.mxu0 %v423
        %484 = vmatpush1.bf16.msra.mxu0 %v422
        %485 = vmatprep.subr.bf16.mxu0 %v425
        %486 = vmatpush1.bf16.msra.mxu0 %v424
        %487 = vmatprep.subr.bf16.mxu0 %v427
        %488 = vmatpush1.bf16.msra.mxu0 %v426
        %489 = vmatprep.subr.bf16.mxu0 %v429
        %490 = vmatpush1.bf16.msra.mxu0 %v428
        %491 = vmatprep.subr.bf16.mxu0 %v431
        %492 = vmatpush1.bf16.msra.mxu0 %v430
        %493 = vmatprep.subr.bf16.mxu0 %v433
        %494 = vmatpush1.bf16.msra.mxu0 %v432
        %495 = vmatprep.subr.bf16.mxu0 %v435
        %496 = vmatpush1.bf16.msra.mxu0 %v434
        %497 = vmatprep.subr.bf16.mxu0 %v437
        %498 = vmatpush1.bf16.msra.mxu0 %v436
        %499 = vmatprep.subr.bf16.mxu0 %v439
        %500 = vmatpush1.bf16.msra.mxu0 %v438
        %501 = vmatprep.subr.bf16.mxu0 %v441
        %502 = vmatpush1.bf16.msra.mxu0 %v440
        %503 = vmatprep.subr.bf16.mxu0 %v477
        %504 = vmatpush1.bf16.msra.mxu0 %v474
        %505 = vmatprep.subr.bf16.mxu0 0
        %506 = vmatpush1.bf16.msra.mxu0 0
        %507 = vmatprep.subr.bf16.mxu0 0
        %508 = vmatpush1.bf16.msra.mxu0 0
        %509 = vmatprep.subr.bf16.mxu0 0
        %510 = vmatpush1.bf16.msra.mxu0 0
        %511 = vmatprep.mubr.bf16.mxu0 %v470
        %512 = vmatmul.mubr.bf16.gmra.mrb[0].mxu0 %v340
        %v513 = vpop.f32.mrb[0].mxu0
        %v514 = vadd.f32 %v335, %v513
        %v515 = vpop.f32.mrb[0].mxu0
        %v516 = vadd.f32 %v335, %v515
        %v517 = vpop.f32.mrb[0].mxu0
        %v518 = vpop.f32.mrb[0].mxu0
        %519 = vdwg.mxu0
        %vm520 = vcmp.ge.f32.partialorder %v514, 0.0
        %vm521 = vcmp.ge.f32.partialorder %v516, 0.0
        %v522 = vmul.f32 %v514, 0.01
        %v523 = vmul.f32 %v516, 0.01
        %v524 = vsel %vm520, %v514, %v522
        %v525 = vsel %vm521, %v516, %v523
        %v526 = vpack.c.bf16 %v524, %v524
        %v527 = vpack.c.bf16 %v525, %v525
        %v530 = vunpack.c.l.b16 %v526
        %v531 = vunpack.c.l.b16 %v527
        %v532 = vpack.c.b16 %v531, %v530
        %534 = vst [vmem:[%s302] sm:$0xff] %v532
        %s535 = smul.u32 2, %s14
        %p536 = scmp.lt.s32.totalorder %s535, 3
        %s537 = scalar_select %p536, %s535, 3
        %s538 = smul.addr %s537, 4
        %s539 = scalar_lea.vmem %s3, %s538
        // Predicated region
        $region71: #{encoder_forward.10} parent=65 // pred_check
          %p540 = pneg %p100
        $region72: #{encoder_forward.10} parent=65 // pred_check_branch
          %542 = sbr.rel (%p540) target = $region74
        $region73: #{encoder_forward.10} parent=65 // pred_region
          %s543 = smul.u32 2, %s14
        $region74: #{encoder_forward.10} parent=65 // pred_fallthru
          _
      $region66: #{encoder_forward.10} parent=5 // pred_fallthru
        _
      %p544 = scmp.le.s32.totalorder 2, %s9
      // Predicated region
      $region75: #{encoder_forward.10} parent=5 // pred_check
        %p545 = pneg %p544
      $region76: #{encoder_forward.10} parent=5 // pred_check_branch
        %547 = sbr.rel (%p545) target = $region78
      $region77: #{encoder_forward.10} parent=5 // pred_region
        %s548 = ssub.s32 %s9, 2
        // Predicated region
        $region79: #{encoder_forward.10} parent=77 // pred_check
          %p549 = pneg %p106
        $region80: #{encoder_forward.10} parent=77 // pred_check_branch
          %551 = sbr.rel (%p549) target = $region82
        $region81: #{encoder_forward.10} parent=77 // pred_region
          %s552 = smul.u32 2, %s15
          %p553 = scmp.lt.s32.totalorder %s552, 3
          %s554 = scalar_select %p553, %s552, 3
          %s555 = smul.addr %s554, 4
          %s556 = scalar_lea.vmem %s3, %s555
        $region82: #{encoder_forward.10} parent=77 // pred_fallthru
          _
      $region78: #{encoder_forward.10} parent=5 // pred_fallthru
        _
    $region6: #{encoder_forward.10} parent=1 // loop_footer
      %s13 = sadd.s32 1, %s9
    $region7: #{encoder_forward.10} parent=1 // loop_footer_branch
      %8 = sbr.rel target = $region3
    $region8: #{encoder_forward.10} parent=1 // loop_exit
      _

// kernel: encoder_forward.11
$region0: #{encoder_forward.11}
  #allocation0 [shape = 'u32[]', space=smem, size = 0x4, offset = 0x4, fixed_abs, tag = 'smem constant byte address 0x4 - core index']
  #allocation1 [shape = 'u32[144,128]{1,0:T(1,128)}', space=vmem, size = 0x12000, scoped, tag = 'internal scratch']
  %s0 = inlined_call_operand.vmem [shape: bf16[8,72], index: 0, kind: input, shape index: {}]
  %s1 = inlined_call_operand.vmem [shape: bf16[72,256], index: 1, kind: input, shape index: {}]
  %s2 = inlined_call_operand.vmem [shape: f32[8,1], index: 2, kind: input, shape index: {}]
  %s3 = inlined_call_operand.vmem [shape: bf16[8,256], index: 3, kind: output, shape index: {}]
  %s4 = sld [smem:[#allocation0]]
  $region86: #{encoder_forward.11} parent=0
    _
  %s6 = ssub.s32 1, %s4
  %s7 = scalar_select 0, %s6, %s4
  $region1: #{encoder_forward.11} parent=0
    #allocation2 [shape = 'u8[36864]{0}', space=vmem, size = 0x9000, scoped, tag = 'input window, operand 1']
    loop: start=0, step=1, limit=4
    $region2: #{encoder_forward.11} parent=1 // loop_pre_header
      _
    $region3: #{encoder_forward.11} parent=1 // loop_header
      %s9 = sphi 0, %s13
      %p10 = scmp.ge.s32.totalorder %s9, 4
      %s17 = sphi 0, %s17
      %s19 = sphi 0, %s17
      %s20 = sphi 0, %s19
      %s34 = sphi 0, %s20
      %s40 = sphi 0, %s42
      %s43 = sphi 0, %s40
      %s44 = sphi 0, %s43
      %s60 = sphi 0, %s44
      %s64 = sphi 0, %s64
      %s66 = sphi 0, %s64
      %s67 = sphi 0, %s66
      %s81 = sphi 0, %s67
      %s87 = sphi 0, %s89
      %s90 = sphi 0, %s87
      %s91 = sphi 0, %s90
      %s107 = sphi 0, %s91
    $region4: #{encoder_forward.11} parent=1 // loop_header_branch
      %12 = sbr.rel (%p10) target = $region8
    $region5: #{encoder_forward.11} parent=1 // loop_body
      %s14 = ssub.s32 %s9, 1
      %s15 = ssub.s32 %s9, 2
      %s16 = sadd.s32 %s9, 1
      %s18 = sadd.s32 %s17, 1
      %p21 = scmp.eq.s32.totalorder %s9, 1
      %p22 = scmp.ne.s32.totalorder %s17, %s19
      %p23 = scmp.eq.s32.totalorder %s9, 0
      %p24 = por %p22, %p23
      %p25 = scmp.ne.s32.totalorder %s17, %s19
      %p26 = scmp.eq.s32.totalorder %s14, 1
      %p27 = por %p25, %p26
      %p28 = scmp.ne.s32.totalorder %s19, %s20
      %p29 = scmp.eq.s32.totalorder %s14, 0
      %p30 = por %p28, %p29
      %p31 = scmp.ne.s32.totalorder %s19, %s20
      %p32 = scmp.eq.s32.totalorder %s15, 1
      %p33 = por %p31, %p32
      %p35 = scmp.ne.s32.totalorder %s20, %s34
      %p36 = scmp.eq.s32.totalorder %s15, 0
      %p37 = por %p35, %p36
      %s38 = ssub.s32 %s9, %s16
      %p39 = scmp.eq.s32.totalorder %s38, 0
      %s41 = sadd.s32 %s40, 1
      %s42 = scalar_select %p39, %s40, %s41
      %p45 = pneg %p39
      %p46 = scmp.eq.s32.totalorder %s9, 1
      %p47 = por %p45, %p46
      %p48 = scmp.ne.s32.totalorder %s40, %s43
      %p49 = scmp.eq.s32.totalorder %s9, 0
      %p50 = por %p48, %p49
      %p51 = scmp.ne.s32.totalorder %s40, %s43
      %p52 = scmp.eq.s32.totalorder %s14, 1
      %p53 = por %p51, %p52
      %p54 = scmp.ne.s32.totalorder %s43, %s44
      %p55 = scmp.eq.s32.totalorder %s14, 0
      %p56 = por %p54, %p55
      %p57 = scmp.ne.s32.totalorder %s43, %s44
      %p58 = scmp.eq.s32.totalorder %s15, 1
      %p59 = por %p57, %p58
      %p61 = scmp.ne.s32.totalorder %s44, %s60
      %p62 = scmp.eq.s32.totalorder %s15, 0
      %p63 = por %p61, %p62
      %s65 = sadd.s32 %s64, 1
      %p68 = scmp.eq.s32.totalorder %s9, 1
      %p69 = scmp.ne.s32.totalorder %s64, %s66
      %p70 = scmp.eq.s32.totalorder %s9, 0
      %p71 = por %p69, %p70
      %p72 = scmp.ne.s32.totalorder %s64, %s66
      %p73 = scmp.eq.s32.totalorder %s14, 1
      %p74 = por %p72, %p73
      %p75 = scmp.ne.s32.totalorder %s66, %s67
      %p76 = scmp.eq.s32.totalorder %s14, 0
      %p77 = por %p75, %p76
      %p78 = scmp.ne.s32.totalorder %s66, %s67
      %p79 = scmp.eq.s32.totalorder %s15, 1
      %p80 = por %p78, %p79
      %p82 = scmp.ne.s32.totalorder %s67, %s81
      %p83 = scmp.eq.s32.totalorder %s15, 0
      %p84 = por %p82, %p83
      %s85 = ssub.s32 %s9, %s16
      %p86 = scmp.eq.s32.totalorder %s85, 0
      %s88 = sadd.s32 %s87, 1
      %s89 = scalar_select %p86, %s87, %s88
      %p92 = pneg %p86
      %p93 = scmp.eq.s32.totalorder %s9, 1
      %p94 = por %p92, %p93
      %p95 = scmp.ne.s32.totalorder %s87, %s90
      %p96 = scmp.eq.s32.totalorder %s9, 0
      %p97 = por %p95, %p96
      %p98 = scmp.ne.s32.totalorder %s87, %s90
      %p99 = scmp.eq.s32.totalorder %s14, 1
      %p100 = por %p98, %p99
      %p101 = scmp.ne.s32.totalorder %s90, %s91
      %p102 = scmp.eq.s32.totalorder %s14, 0
      %p103 = por %p101, %p102
      %p104 = scmp.ne.s32.totalorder %s90, %s91
      %p105 = scmp.eq.s32.totalorder %s15, 1
      %p106 = por %p104, %p105
      %p108 = scmp.ne.s32.totalorder %s91, %s107
      %p109 = scmp.eq.s32.totalorder %s15, 0
      %p110 = por %p108, %p109
      %p111 = scmp.le.s32.totalorder 1, %s9
      %p112 = scmp.lt.s32.totalorder %s9, 3
      %p113 = pnand %p111, %p112
      %p114 = pneg %p113
      // Predicated region
      $region9: #{encoder_forward.11} parent=5 // pred_check
        _
      $region10: #{encoder_forward.11} parent=5 // pred_check_branch
        %116 = sbr.rel (%p113) target = $region12
      $region11: #{encoder_forward.11} parent=5 // pred_region
        %s117 = ssub.s32 %s9, 1
        // Predicated region
        $region13: #{encoder_forward.11} parent=11 // pred_check
          %p118 = pneg %p30
        $region14: #{encoder_forward.11} parent=11 // pred_check_branch
          %120 = sbr.rel (%p118) target = $region16
        $region15: #{encoder_forward.11} parent=11 // pred_region
          _
        $region16: #{encoder_forward.11} parent=11 // pred_fallthru
          _
        // Predicated region
        $region17: #{encoder_forward.11} parent=11 // pred_check
          %p121 = pneg %p77
        $region18: #{encoder_forward.11} parent=11 // pred_check_branch
          %123 = sbr.rel (%p121) target = $region20
        $region19: #{encoder_forward.11} parent=11 // pred_region
          _
        $region20: #{encoder_forward.11} parent=11 // pred_fallthru
          _
      $region12: #{encoder_forward.11} parent=5 // pred_fallthru
        _
      %p124 = scmp.lt.s32.totalorder %s9, 2
      // Predicated region
      $region21: #{encoder_forward.11} parent=5 // pred_check
        %p125 = pneg %p124
      $region22: #{encoder_forward.11} parent=5 // pred_check_branch
        %127 = sbr.rel (%p125) target = $region24
      $region23: #{encoder_forward.11} parent=5 // pred_region
        // Predicated region
        $region25: #{encoder_forward.11} parent=23 // pred_check
          %p128 = pneg %p50
        $region26: #{encoder_forward.11} parent=23 // pred_check_branch
          %130 = sbr.rel (%p128) target = $region28
        $region27: #{encoder_forward.11} parent=23 // pred_region
          %s131 = sand.u32 %s40, 1
          %s132 = sand.u32 %s40, 1
          %s133 = smul.addr %s132, 36
          %s134 = scalar_lea.vmem [#allocation2], %s133
          %s135 = smul.addr %s9, 4
          %s136 = scalar_lea.vmem %s1, %s135
          // Predicated region
          $region29: #{encoder_forward.11} parent=27 // pred_check
            _
          $region30: #{encoder_forward.11} parent=27 // pred_check_branch
            %138 = sbr.rel (0) target = $region32
          $region31: #{encoder_forward.11} parent=27 // pred_region
            // Predicated region
            $region33: #{encoder_forward.11} parent=31 // pred_check
              _
            $region34: #{encoder_forward.11} parent=31 // pred_check_branch
              %140 = sbr.rel target = $region36
            $region35: #{encoder_forward.11} parent=31 // pred_region
              // Predicated region
              $region48: #{encoder_forward.11} parent=35 // pred_check
                _
              $region49: #{encoder_forward.11} parent=35 // pred_check_branch
                %171 = sbr.rel (0) target = $region51
              $region50: #{encoder_forward.11} parent=35 // pred_region
                loop: start=0, step=1, limit=1
                $region52: #{encoder_forward.11} parent=50 // loop_pre_header
                  _
                $region53: #{encoder_forward.11} parent=50 // loop_header
                  %s173 = sphi 0, %s177
                  %p174 = scmp.ge.s32.totalorder %s173, 1
                  %s178 = sphi %s136, %s136
                  %s179 = sphi %s134, %s134
                $region54: #{encoder_forward.11} parent=50 // loop_header_branch
                  %176 = sbr.rel (%p174) target = $region58
                $region55: #{encoder_forward.11} parent=50 // loop_body
                  _
                $region56: #{encoder_forward.11} parent=50 // loop_footer
                  %s177 = sadd.s32 1, %s173
                $region57: #{encoder_forward.11} parent=50 // loop_footer_branch
                  %172 = sbr.rel target = $region53
                $region58: #{encoder_forward.11} parent=50 // loop_exit
                  _
                loop: start=0, step=1, limit=1
                $region59: #{encoder_forward.11} parent=50 // loop_pre_header
                  _
                $region60: #{encoder_forward.11} parent=50 // loop_header
                  %s182 = sphi 0, %s186
                  %p183 = scmp.ge.s32.totalorder %s182, 1
                  %s187 = sphi %s136, %s136
                  %s188 = sphi %s134, %s134
                $region61: #{encoder_forward.11} parent=50 // loop_header_branch
                  %185 = sbr.rel (%p183) target = $region65
                $region62: #{encoder_forward.11} parent=50 // loop_body
                  %v189 = vld [vmem:[%s187] sm:$0xf]
                  %190 = vst [vmem:[%s188] sm:$0xf] %v189
                  %v191 = vld [vmem:[%s187 + $0x8] sm:$0xf]
                  %192 = vst [vmem:[%s188 + $0x4] sm:$0xf] %v191
                  %v193 = vld [vmem:[%s187 + $0x10] sm:$0xf]
                  %194 = vst [vmem:[%s188 + $0x8] sm:$0xf] %v193
                  %v195 = vld [vmem:[%s187 + $0x18] sm:$0xf]
                  %196 = vst [vmem:[%s188 + $0xc] sm:$0xf] %v195
                  %v197 = vld [vmem:[%s187 + $0x20] sm:$0xf]
                  %198 = vst [vmem:[%s188 + $0x10] sm:$0xf] %v197
                  %v199 = vld [vmem:[%s187 + $0x28] sm:$0xf]
                  %200 = vst [vmem:[%s188 + $0x14] sm:$0xf] %v199
                  %v201 = vld [vmem:[%s187 + $0x30] sm:$0xf]
                  %202 = vst [vmem:[%s188 + $0x18] sm:$0xf] %v201
                  %v203 = vld [vmem:[%s187 + $0x38] sm:$0xf]
                  %204 = vst [vmem:[%s188 + $0x1c] sm:$0xf] %v203
                  %v205 = vld [vmem:[%s187 + $0x40] sm:$0xf]
                  %206 = vst [vmem:[%s188 + $0x20] sm:$0xf] %v205
                $region63: #{encoder_forward.11} parent=50 // loop_footer
                  %s186 = sadd.s32 1, %s182
                $region64: #{encoder_forward.11} parent=50 // loop_footer_branch
                  %181 = sbr.rel target = $region60
                $region65: #{encoder_forward.11} parent=50 // loop_exit
                  _
              $region51: #{encoder_forward.11} parent=35 // pred_fallthru
                _
            $region36: #{encoder_forward.11} parent=31 // pred_fallthru
              _
            // Predicated region
            $region37: #{encoder_forward.11} parent=31 // pred_check
              _
            $region38: #{encoder_forward.11} parent=31 // pred_check_branch
              %142 = sbr.rel (0) target = $region40
            $region39: #{encoder_forward.11} parent=31 // pred_region
              loop: start=0, step=1, limit=1
              $region41: #{encoder_forward.11} parent=39 // loop_pre_header
                _
              $region42: #{encoder_forward.11} parent=39 // loop_header
                %s145 = sphi 0, %s149
                %p146 = scmp.ge.s32.totalorder %s145, 1
                %s150 = sphi %s136, %s136
                %s151 = sphi %s134, %s134
              $region43: #{encoder_forward.11} parent=39 // loop_header_branch
                %148 = sbr.rel (%p146) target = $region47
              $region44: #{encoder_forward.11} parent=39 // loop_body
                %v152 = vld [vmem:[%s150] sm:$0xf]
                %153 = vst [vmem:[%s151] sm:$0xf] %v152
                %v154 = vld [vmem:[%s150 + $0x8] sm:$0xf]
                %155 = vst [vmem:[%s151 + $0x4] sm:$0xf] %v154
                %v156 = vld [vmem:[%s150 + $0x10] sm:$0xf]
                %157 = vst [vmem:[%s151 + $0x8] sm:$0xf] %v156
                %v158 = vld [vmem:[%s150 + $0x18] sm:$0xf]
                %159 = vst [vmem:[%s151 + $0xc] sm:$0xf] %v158
                %v160 = vld [vmem:[%s150 + $0x20] sm:$0xf]
                %161 = vst [vmem:[%s151 + $0x10] sm:$0xf] %v160
                %v162 = vld [vmem:[%s150 + $0x28] sm:$0xf]
                %163 = vst [vmem:[%s151 + $0x14] sm:$0xf] %v162
                %v164 = vld [vmem:[%s150 + $0x30] sm:$0xf]
                %165 = vst [vmem:[%s151 + $0x18] sm:$0xf] %v164
                %v166 = vld [vmem:[%s150 + $0x38] sm:$0xf]
                %167 = vst [vmem:[%s151 + $0x1c] sm:$0xf] %v166
                %v168 = vld [vmem:[%s150 + $0x40] sm:$0xf]
                %169 = vst [vmem:[%s151 + $0x20] sm:$0xf] %v168
              $region45: #{encoder_forward.11} parent=39 // loop_footer
                %s149 = sadd.s32 1, %s145
              $region46: #{encoder_forward.11} parent=39 // loop_footer_branch
                %144 = sbr.rel target = $region42
              $region47: #{encoder_forward.11} parent=39 // loop_exit
                _
            $region40: #{encoder_forward.11} parent=31 // pred_fallthru
              _
          $region32: #{encoder_forward.11} parent=27 // pred_fallthru
            _
          %207 = vnop
        $region28: #{encoder_forward.11} parent=23 // pred_fallthru
          _
      $region24: #{encoder_forward.11} parent=5 // pred_fallthru
        _
      %p208 = scmp.le.s32.totalorder 1, %s9
      %p209 = scmp.lt.s32.totalorder %s9, 3
      %p210 = pnand %p208, %p209
      %p211 = pneg %p210
      // Predicated region
      $region66: #{encoder_forward.11} parent=5 // pred_check
        _
      $region67: #{encoder_forward.11} parent=5 // pred_check_branch
        %213 = sbr.rel (%p210) target = $region69
      $region68: #{encoder_forward.11} parent=5 // pred_region
        %s214 = ssub.s32 %s9, 1
        %s215 = sand.u32 %s43, 1
        %s216 = sand.u32 %s43, 1
        %s217 = smul.addr %s216, 36
        %s218 = scalar_lea.vmem [#allocation2], %s217
        // Predicated region
        $region70: #{encoder_forward.11} parent=68 // pred_check
          %p219 = pneg %p56
        $region71: #{encoder_forward.11} parent=68 // pred_check_branch
          %221 = sbr.rel (%p219) target = $region73
        $region72: #{encoder_forward.11} parent=68 // pred_region
          _
        $region73: #{encoder_forward.11} parent=68 // pred_fallthru
          _
        %p222 = pneg %p30
        %p223 = pneg %p27
        %s224 = sand.u32 %s43, 1
        %s225 = sand.u32 %s43, 1
        %s226 = smul.addr %s225, 36
        %s227 = scalar_lea.vmem [#allocation2], %s226
        %p228 = pneg %p56
        %p229 = pneg %p53
        %p230 = pneg %p77
        %p231 = pneg %p74
        %p232 = pneg %p103
        %p233 = pneg %p100
        %p234 = scmp.lt.s32.totalorder %s14, 1
        %s235 = scalar_select %p234, %s14, 1
        %s236 = smul.addr %s235, 4
        %s237 = scalar_lea.vmem %s3, %s236
        %p238 = scmp.lt.s32.totalorder %s14, 1
        %s239 = scalar_select %p238, %s14, 1
        %s240 = smul.addr %s239, 4
        %s241 = scalar_lea.vmem %s3, %s240
        %v243 = vld [vmem:[%s0] sm:$0xf]
        %v244 = vld [vmem:[%s218] sm:$0xf]
        %v245 = vld [vmem:[%s218 + $0x4] sm:$0xf]
        %v246 = vld [vmem:[%s218 + $0x8] sm:$0xf]
        %v247 = vld [vmem:[%s218 + $0xc] sm:$0xf]
        %v248 = vld [vmem:[%s218 + $0x10] sm:$0xf]
        %v249 = vld [vmem:[%s218 + $0x14] sm:$0xf]
        %v250 = vld [vmem:[%s218 + $0x18] sm:$0xf]
        %v251 = vld [vmem:[%s218 + $0x1c] sm:$0xf]
        %v252 = vld [vmem:[%s218 + $0x20] sm:$0xf]
        %v253 = vld [vmem:[%s2] sm:$0xff]
        %255 = vset.pattern.permute.xlu0 0
        %256 = vperm.xlu0 %255, %v253
        %v257 = vpop.permute.xlu0 %256
        %v268 = vunpack.c.l.b16 %v244
        %v269 = vunpack.c.l.b16 %v245
        %v270 = vunpack.c.l.b16 %v246
        %v271 = vunpack.c.l.b16 %v247
        %v272 = vunpack.c.l.b16 %v248
        %v273 = vunpack.c.l.b16 %v249
        %v274 = vunpack.c.l.b16 %v250
        %v275 = vunpack.c.l.b16 %v251
        %v276 = vunpack.c.l.b16 %v252
        %v277 = vpack.c.b16 %v269, %v268
        %v278 = vpack.c.b16 %v271, %v270
        %v279 = vpack.c.b16 %v273, %v272
        %v280 = vpack.c.b16 %v275, %v274
        %v281 = vpack.c.b16 %v276, %v276
        %vm286 = vcmask 588800
        %v288 = vsel %vm286, %v243, 0
        %vm290 = vcmask 1043456
        %v292 = vsel %vm290, %v281, 0
        %294 = vmatprep.subr.bf16.mxu0 0
        %295 = vmatpush1.bf16.msra.mxu0 %v277
        %296 = vmatprep.subr.bf16.mxu0 0
        %297 = vmatpush1.bf16.msra.mxu0 %v278
        %298 = vmatprep.subr.bf16.mxu0 0
        %299 = vmatpush1.bf16.msra.mxu0 %v279
        %300 = vmatprep.subr.bf16.mxu0 0
        %301 = vmatpush1.bf16.msra.mxu0 %v280
        %302 = vmatprep.subr.bf16.mxu0 0
        %303 = vmatpush1.bf16.msra.mxu0 %v292
        %304 = vmatprep.subr.bf16.mxu0 0
        %305 = vmatpush1.bf16.msra.mxu0 0
        %306 = vmatprep.subr.bf16.mxu0 0
        %307 = vmatpush1.bf16.msra.mxu0 0
        %308 = vmatprep.subr.bf16.mxu0 0
        %309 = vmatpush1.bf16.msra.mxu0 0
        %310 = vmatprep.subr.bf16.mxu0 0
        %311 = vmatpush1.bf16.msra.mxu0 0
        %312 = vmatprep.subr.bf16.mxu0 0
        %313 = vmatpush1.bf16.msra.mxu0 0
        %314 = vmatprep.subr.bf16.mxu0 0
        %315 = vmatpush1.bf16.msra.mxu0 0
        %316 = vmatprep.subr.bf16.mxu0 0
        %317 = vmatpush1.bf16.msra.mxu0 0
        %318 = vmatprep.subr.bf16.mxu0 0
        %319 = vmatpush1.bf16.msra.mxu0 0
        %320 = vmatprep.subr.bf16.mxu0 0
        %321 = vmatpush1.bf16.msra.mxu0 0
        %322 = vmatprep.subr.bf16.mxu0 0
        %323 = vmatpush1.bf16.msra.mxu0 0
        %324 = vmatprep.subr.bf16.mxu0 0
        %325 = vmatpush1.bf16.msra.mxu0 0
        %326 = vmatprep.mubr.bf16.mxu0 0
        %327 = vmatmul.mubr.bf16.gmra.mrb[0].mxu0 %v288
        %v328 = vpop.f32.mrb[0].mxu0
        %v329 = vadd.f32 %v257, %v328
        %v330 = vpop.f32.mrb[0].mxu0
        %v331 = vpop.f32.mrb[0].mxu0
        %v332 = vpop.f32.mrb[0].mxu0
        %333 = vdwg.mxu0
        %vm334 = vcmp.ge.f32.partialorder %v329, 0.0
        %v335 = vmul.f32 %v329, 0.01
        %v336 = vsel %vm334, %v329, %v335
        %v337 = vpack.c.bf16 %v336, %v336
        %338 = vst [vmem:[%s241] sm:$0xf] %v337
        %p339 = scmp.lt.s32.totalorder %s14, 1
        %s340 = scalar_select %p339, %s14, 1
        %s341 = smul.addr %s340, 4
        %s342 = scalar_lea.vmem %s3, %s341
        // Predicated region
        $region74: #{encoder_forward.11} parent=68 // pred_check
          %p343 = pneg %p100
        $region75: #{encoder_forward.11} parent=68 // pred_check_branch
          %345 = sbr.rel (%p343) target = $region77
        $region76: #{encoder_forward.11} parent=68 // pred_region
          _
        $region77: #{encoder_forward.11} parent=68 // pred_fallthru
          _
      $region69: #{encoder_forward.11} parent=5 // pred_fallthru
        _
      %p346 = scmp.le.s32.totalorder 2, %s9
      // Predicated region
      $region78: #{encoder_forward.11} parent=5 // pred_check
        %p347 = pneg %p346
      $region79: #{encoder_forward.11} parent=5 // pred_check_branch
        %349 = sbr.rel (%p347) target = $region81
      $region80: #{encoder_forward.11} parent=5 // pred_region
        %s350 = ssub.s32 %s9, 2
        // Predicated region
        $region82: #{encoder_forward.11} parent=80 // pred_check
          %p351 = pneg %p106
        $region83: #{encoder_forward.11} parent=80 // pred_check_branch
          %353 = sbr.rel (%p351) target = $region85
        $region84: #{encoder_forward.11} parent=80 // pred_region
          %p354 = scmp.lt.s32.totalorder %s15, 1
          %s355 = scalar_select %p354, %s15, 1
          %s356 = smul.addr %s355, 4
          %s357 = scalar_lea.vmem %s3, %s356
        $region85: #{encoder_forward.11} parent=80 // pred_fallthru
          _
      $region81: #{encoder_forward.11} parent=5 // pred_fallthru
        _
    $region6: #{encoder_forward.11} parent=1 // loop_footer
      %s13 = sadd.s32 1, %s9
    $region7: #{encoder_forward.11} parent=1 // loop_footer_branch
      %8 = sbr.rel target = $region3
    $region8: #{encoder_forward.11} parent=1 // loop_exit
      _

// kernel: encoder_forward.12
$region0: #{encoder_forward.12}
  #allocation0 [shape = 'u32[]', space=smem, size = 0x4, offset = 0x4, fixed_abs, tag = 'smem constant byte address 0x4 - core index']
  #allocation1 [shape = 'u32[144,128]{1,0:T(1,128)}', space=vmem, size = 0x12000, scoped, tag = 'internal scratch']
  %s0 = inlined_call_operand.vmem [shape: bf16[16,72], index: 0, kind: input, shape index: {}]
  %s1 = inlined_call_operand.vmem [shape: bf16[72,50], index: 1, kind: input, shape index: {}]
  %s2 = inlined_call_operand.vmem [shape: f32[16,1], index: 2, kind: input, shape index: {}]
  %s3 = inlined_call_operand.vmem [shape: bf16[16,50], index: 3, kind: output, shape index: {}]
  %s4 = sld [smem:[#allocation0]]
  $region22: #{encoder_forward.12} parent=0
    _
  %s6 = ssub.s32 1, %s4
  %s7 = scalar_select 0, %s6, %s4
  // Predicated region
  $region2: #{encoder_forward.12} parent=0 // pred_check
    _
  $region3: #{encoder_forward.12} parent=0 // pred_check_branch
    %9 = sbr.rel (0) target = $region5
  $region4: #{encoder_forward.12} parent=0 // pred_region
    _
  $region5: #{encoder_forward.12} parent=0 // pred_fallthru
    _
  // Predicated region
  $region6: #{encoder_forward.12} parent=0 // pred_check
    _
  $region7: #{encoder_forward.12} parent=0 // pred_check_branch
    %11 = sbr.rel (0) target = $region9
  $region8: #{encoder_forward.12} parent=0 // pred_region
    _
  $region9: #{encoder_forward.12} parent=0 // pred_fallthru
    _
  // Predicated region
  $region10: #{encoder_forward.12} parent=0 // pred_check
    _
  $region11: #{encoder_forward.12} parent=0 // pred_check_branch
    %13 = sbr.rel (0) target = $region13
  $region12: #{encoder_forward.12} parent=0 // pred_region
    _
  $region13: #{encoder_forward.12} parent=0 // pred_fallthru
    _
  %v15 = vld [vmem:[%s0] sm:$0xf]
  %v16 = vld [vmem:[%s0 + $0x4] sm:$0xf]
  %v17 = vld [vmem:[%s1] sm:$0xf]
  %v18 = vld [vmem:[%s1 + $0x4] sm:$0xf]
  %v19 = vld [vmem:[%s1 + $0x8] sm:$0xf]
  %v20 = vld [vmem:[%s1 + $0xc] sm:$0xf]
  %v21 = vld [vmem:[%s1 + $0x10] sm:$0xf]
  %v22 = vld [vmem:[%s1 + $0x14] sm:$0xf]
  %v23 = vld [vmem:[%s1 + $0x18] sm:$0xf]
  %v24 = vld [vmem:[%s1 + $0x1c] sm:$0xf]
  %v25 = vld [vmem:[%s1 + $0x20] sm:$0xf]
  %v26 = vld [vmem:[%s2] sm:$0xff]
  %v27 = vld [vmem:[%s2 + $0x8] sm:$0xff]
  %29 = vset.pattern.permute.xlu0 0
  %30 = vperm.xlu0 %29, %v26
  %v31 = vpop.permute.xlu0 %30
  %34 = vset.pattern.permute.xlu0 0
  %35 = vperm.xlu0 %34, %v27
  %v36 = vpop.permute.xlu0 %35
  %v40 = vunpack.c.l.b16 %v15
  %v41 = vunpack.c.l.b16 %v16
  %v42 = vpack.c.b16 %v41, %v40
  %v52 = vunpack.c.l.b16 %v17
  %v53 = vunpack.c.l.b16 %v18
  %v54 = vunpack.c.l.b16 %v19
  %v55 = vunpack.c.l.b16 %v20
  %v56 = vunpack.c.l.b16 %v21
  %v57 = vunpack.c.l.b16 %v22
  %v58 = vunpack.c.l.b16 %v23
  %v59 = vunpack.c.l.b16 %v24
  %v60 = vunpack.c.l.b16 %v25
  %v61 = vpack.c.b16 %v53, %v52
  %v62 = vpack.c.b16 %v55, %v54
  %v63 = vpack.c.b16 %v57, %v56
  %v64 = vpack.c.b16 %v59, %v58
  %v65 = vpack.c.b16 %v60, %v60
  %vm70 = vcmask 588800
  %v72 = vsel %vm70, %v42, 0
  %vm74 = vcmask 1043456
  %v76 = vsel %vm74, %v65, 0
  %78 = vmatprep.subr.bf16.mxu0 0
  %79 = vmatpush1.bf16.msra.mxu0 %v61
  %80 = vmatprep.subr.bf16.mxu0 0
  %81 = vmatpush1.bf16.msra.mxu0 %v62
  %82 = vmatprep.subr.bf16.mxu0 0
  %83 = vmatpush1.bf16.msra.mxu0 %v63
  %84 = vmatprep.subr.bf16.mxu0 0
  %85 = vmatpush1.bf16.msra.mxu0 %v64
  %86 = vmatprep.subr.bf16.mxu0 0
  %87 = vmatpush1.bf16.msra.mxu0 %v76
  %88 = vmatprep.subr.bf16.mxu0 0
  %89 = vmatpush1.bf16.msra.mxu0 0
  %90 = vmatprep.subr.bf16.mxu0 0
  %91 = vmatpush1.bf16.msra.mxu0 0
  %92 = vmatprep.subr.bf16.mxu0 0
  %93 = vmatpush1.bf16.msra.mxu0 0
  %94 = vmatprep.subr.bf16.mxu0 0
  %95 = vmatpush1.bf16.msra.mxu0 0
  %96 = vmatprep.subr.bf16.mxu0 0
  %97 = vmatpush1.bf16.msra.mxu0 0
  %98 = vmatprep.subr.bf16.mxu0 0
  %99 = vmatpush1.bf16.msra.mxu0 0
  %100 = vmatprep.subr.bf16.mxu0 0
  %101 = vmatpush1.bf16.msra.mxu0 0
  %102 = vmatprep.subr.bf16.mxu0 0
  %103 = vmatpush1.bf16.msra.mxu0 0
  %104 = vmatprep.subr.bf16.mxu0 0
  %105 = vmatpush1.bf16.msra.mxu0 0
  %106 = vmatprep.subr.bf16.mxu0 0
  %107 = vmatpush1.bf16.msra.mxu0 0
  %108 = vmatprep.subr.bf16.mxu0 0
  %109 = vmatpush1.bf16.msra.mxu0 0
  %110 = vmatprep.mubr.bf16.mxu0 0
  %111 = vmatmul.mubr.bf16.gmra.mrb[0].mxu0 %v72
  %v112 = vpop.f32.mrb[0].mxu0
  %v113 = vadd.f32 %v31, %v112
  %v114 = vpop.f32.mrb[0].mxu0
  %v115 = vpop.f32.mrb[0].mxu0
  %v116 = vadd.f32 %v36, %v115
  %v117 = vpop.f32.mrb[0].mxu0
  %118 = vdwg.mxu0
  %vm119 = vcmp.ge.f32.partialorder %v113, 0.0
  %vm120 = vcmp.ge.f32.partialorder %v116, 0.0
  %v121 = vmul.f32 %v113, 0.01
  %v122 = vmul.f32 %v116, 0.01
  %v123 = vsel %vm119, %v113, %v121
  %v124 = vsel %vm120, %v116, %v122
  %v125 = vpack.c.bf16 %v124, %v123
  %v127 = vunpack.c.l.b16 %v125
  %v128 = vunpack.c.h.b16 %v125
  %v129 = vpack.c.b16 %v127, %v127
  %v130 = vpack.c.b16 %v128, %v128
  %vm133 = vcmask 404480
  %134 = vst.msk [vmem:[%s3] sm:$0xf] %vm133, %v129
  %135 = vst.msk [vmem:[%s3 + $0x4] sm:$0xf] %vm133, %v130
  // Predicated region
  $region14: #{encoder_forward.12} parent=0 // pred_check
    _
  $region15: #{encoder_forward.12} parent=0 // pred_check_branch
    %137 = sbr.rel (0) target = $region17
  $region16: #{encoder_forward.12} parent=0 // pred_region
    _
  $region17: #{encoder_forward.12} parent=0 // pred_fallthru
    _
  // Predicated region
  $region18: #{encoder_forward.12} parent=0 // pred_check
    _
  $region19: #{encoder_forward.12} parent=0 // pred_check_branch
    %139 = sbr.rel (0) target = $region21
  $region20: #{encoder_forward.12} parent=0 // pred_region
    _
  $region21: #{encoder_forward.12} parent=0 // pred_fallthru
    _

// kernel: encoder_forward.13
$region0: #{encoder_forward.13}
  #allocation0 [shape = 'u32[]', space=smem, size = 0x4, offset = 0x4, fixed_abs, tag = 'smem constant byte address 0x4 - core index']
  #allocation1 [shape = 'u32[144,128]{1,0:T(1,128)}', space=vmem, size = 0x12000, scoped, tag = 'internal scratch']
  %s0 = inlined_call_operand.vmem [shape: bf16[16,144], index: 0, kind: input, shape index: {}]
  %s1 = inlined_call_operand.vmem [shape: bf16[144,18], index: 1, kind: input, shape index: {}]
  %s2 = inlined_call_operand.vmem [shape: f32[16,1], index: 2, kind: input, shape index: {}]
  %s3 = inlined_call_operand.vmem [shape: bf16[16,18], index: 3, kind: output, shape index: {}]
  %s4 = sld [smem:[#allocation0]]
  $region22: #{encoder_forward.13} parent=0
    _
  %s6 = ssub.s32 1, %s4
  %s7 = scalar_select 0, %s6, %s4
  // Predicated region
  $region2: #{encoder_forward.13} parent=0 // pred_check
    _
  $region3: #{encoder_forward.13} parent=0 // pred_check_branch
    %9 = sbr.rel (0) target = $region5
  $region4: #{encoder_forward.13} parent=0 // pred_region
    _
  $region5: #{encoder_forward.13} parent=0 // pred_fallthru
    _
  // Predicated region
  $region6: #{encoder_forward.13} parent=0 // pred_check
    _
  $region7: #{encoder_forward.13} parent=0 // pred_check_branch
    %11 = sbr.rel (0) target = $region9
  $region8: #{encoder_forward.13} parent=0 // pred_region
    _
  $region9: #{encoder_forward.13} parent=0 // pred_fallthru
    _
  // Predicated region
  $region10: #{encoder_forward.13} parent=0 // pred_check
    _
  $region11: #{encoder_forward.13} parent=0 // pred_check_branch
    %13 = sbr.rel (0) target = $region13
  $region12: #{encoder_forward.13} parent=0 // pred_region
    _
  $region13: #{encoder_forward.13} parent=0 // pred_fallthru
    _
  %v15 = vld [vmem:[%s0] sm:$0xff]
  %v16 = vld [vmem:[%s0 + $0x8] sm:$0xff]
  %v17 = vld [vmem:[%s1] sm:$0xf]
  %v18 = vld [vmem:[%s1 + $0x4] sm:$0xf]
  %v19 = vld [vmem:[%s1 + $0x8] sm:$0xf]
  %v20 = vld [vmem:[%s1 + $0xc] sm:$0xf]
  %v21 = vld [vmem:[%s1 + $0x10] sm:$0xf]
  %v22 = vld [vmem:[%s1 + $0x14] sm:$0xf]
  %v23 = vld [vmem:[%s1 + $0x18] sm:$0xf]
  %v24 = vld [vmem:[%s1 + $0x1c] sm:$0xf]
  %v25 = vld [vmem:[%s1 + $0x20] sm:$0xf]
  %v26 = vld [vmem:[%s1 + $0x24] sm:$0xf]
  %v27 = vld [vmem:[%s1 + $0x28] sm:$0xf]
  %v28 = vld [vmem:[%s1 + $0x2c] sm:$0xf]
  %v29 = vld [vmem:[%s1 + $0x30] sm:$0xf]
  %v30 = vld [vmem:[%s1 + $0x34] sm:$0xf]
  %v31 = vld [vmem:[%s1 + $0x38] sm:$0xf]
  %v32 = vld [vmem:[%s1 + $0x3c] sm:$0xf]
  %v33 = vld [vmem:[%s1 + $0x40] sm:$0xf]
  %v34 = vld [vmem:[%s1 + $0x44] sm:$0xf]
  %v35 = vld [vmem:[%s2] sm:$0xff]
  %v36 = vld [vmem:[%s2 + $0x8] sm:$0xff]
  %38 = vset.pattern.permute.xlu0 0
  %39 = vperm.xlu0 %38, %v35
  %v40 = vpop.permute.xlu0 %39
  %43 = vset.pattern.permute.xlu0 0
  %44 = vperm.xlu0 %43, %v36
  %v45 = vpop.permute.xlu0 %44
  %v49 = vunpack.c.l.b16 %v15
  %v50 = vunpack.c.h.b16 %v15
  %v51 = vunpack.c.l.b16 %v16
  %v52 = vunpack.c.h.b16 %v16
  %v53 = vpack.c.b16 %v51, %v49
  %v54 = vpack.c.b16 %v52, %v50
  %v74 = vunpack.c.l.b16 %v17
  %v75 = vunpack.c.l.b16 %v18
  %v76 = vunpack.c.l.b16 %v19
  %v77 = vunpack.c.l.b16 %v20
  %v78 = vunpack.c.l.b16 %v21
  %v79 = vunpack.c.l.b16 %v22
  %v80 = vunpack.c.l.b16 %v23
  %v81 = vunpack.c.l.b16 %v24
  %v82 = vunpack.c.l.b16 %v25
  %v83 = vunpack.c.l.b16 %v26
  %v84 = vunpack.c.l.b16 %v27
  %v85 = vunpack.c.l.b16 %v28
  %v86 = vunpack.c.l.b16 %v29
  %v87 = vunpack.c.l.b16 %v30
  %v88 = vunpack.c.l.b16 %v31
  %v89 = vunpack.c.l.b16 %v32
  %v90 = vunpack.c.l.b16 %v33
  %v91 = vunpack.c.l.b16 %v34
  %v92 = vpack.c.b16 %v75, %v74
  %v93 = vpack.c.b16 %v77, %v76
  %v94 = vpack.c.b16 %v79, %v78
  %v95 = vpack.c.b16 %v81, %v80
  %v96 = vpack.c.b16 %v83, %v82
  %v97 = vpack.c.b16 %v85, %v84
  %v98 = vpack.c.b16 %v87, %v86
  %v99 = vpack.c.b16 %v89, %v88
  %v100 = vpack.c.b16 %v91, %v90
  %vm110 = vcmask 130048
  %v112 = vsel %vm110, %v54, 0
  %114 = vmatprep.subr.bf16.mxu0 0
  %115 = vmatpush1.bf16.msra.mxu0 %v92
  %116 = vmatprep.subr.bf16.mxu0 0
  %117 = vmatpush1.bf16.msra.mxu0 %v93
  %118 = vmatprep.subr.bf16.mxu0 0
  %119 = vmatpush1.bf16.msra.mxu0 %v94
  %120 = vmatprep.subr.bf16.mxu0 0
  %121 = vmatpush1.bf16.msra.mxu0 %v95
  %122 = vmatprep.subr.bf16.mxu0 0
  %123 = vmatpush1.bf16.msra.mxu0 %v96
  %124 = vmatprep.subr.bf16.mxu0 0
  %125 = vmatpush1.bf16.msra.mxu0 %v97
  %126 = vmatprep.subr.bf16.mxu0 0
  %127 = vmatpush1.bf16.msra.mxu0 %v98
  %128 = vmatprep.subr.bf16.mxu0 0
  %129 = vmatpush1.bf16.msra.mxu0 %v99
  %130 = vmatprep.subr.bf16.mxu0 0
  %131 = vmatpush1.bf16.msra.mxu0 %v100
  %132 = vmatprep.subr.bf16.mxu0 0
  %133 = vmatpush1.bf16.msra.mxu0 0
  %134 = vmatprep.subr.bf16.mxu0 0
  %135 = vmatpush1.bf16.msra.mxu0 0
  %136 = vmatprep.subr.bf16.mxu0 0
  %137 = vmatpush1.bf16.msra.mxu0 0
  %138 = vmatprep.subr.bf16.mxu0 0
  %139 = vmatpush1.bf16.msra.mxu0 0
  %140 = vmatprep.subr.bf16.mxu0 0
  %141 = vmatpush1.bf16.msra.mxu0 0
  %142 = vmatprep.subr.bf16.mxu0 0
  %143 = vmatpush1.bf16.msra.mxu0 0
  %144 = vmatprep.subr.bf16.mxu0 0
  %145 = vmatpush1.bf16.msra.mxu0 0
  %146 = vmatprep.mubr.bf16.mxu0 %v112
  %147 = vmatmul.mubr.bf16.gmra.mrb[0].mxu0 %v53
  %v148 = vpop.f32.mrb[0].mxu0
  %v149 = vadd.f32 %v40, %v148
  %v150 = vpop.f32.mrb[0].mxu0
  %v151 = vpop.f32.mrb[0].mxu0
  %v152 = vadd.f32 %v45, %v151
  %v153 = vpop.f32.mrb[0].mxu0
  %154 = vdwg.mxu0
  %vm155 = vcmp.ge.f32.partialorder %v149, 0.0
  %vm156 = vcmp.ge.f32.partialorder %v152, 0.0
  %v157 = vmul.f32 %v149, 0.01
  %v158 = vmul.f32 %v152, 0.01
  %v159 = vsel %vm155, %v149, %v157
  %v160 = vsel %vm156, %v152, %v158
  %v161 = vpack.c.bf16 %v160, %v159
  %v163 = vunpack.c.l.b16 %v161
  %v164 = vunpack.c.h.b16 %v161
  %v165 = vpack.c.b16 %v163, %v163
  %v166 = vpack.c.b16 %v164, %v164
  %vm169 = vcmask 142336
  %170 = vst.msk [vmem:[%s3] sm:$0xf] %vm169, %v165
  %171 = vst.msk [vmem:[%s3 + $0x4] sm:$0xf] %vm169, %v166
  // Predicated region
  $region14: #{encoder_forward.13} parent=0 // pred_check
    _
  $region15: #{encoder_forward.13} parent=0 // pred_check_branch
    %173 = sbr.rel (0) target = $region17
  $region16: #{encoder_forward.13} parent=0 // pred_region
    _
  $region17: #{encoder_forward.13} parent=0 // pred_fallthru
    _
  // Predicated region
  $region18: #{encoder_forward.13} parent=0 // pred_check
    _
  $region19: #{encoder_forward.13} parent=0 // pred_check_branch
    %175 = sbr.rel (0) target = $region21
  $region20: #{encoder_forward.13} parent=0 // pred_region
    _
  $region21: #{encoder_forward.13} parent=0 // pred_fallthru
    _

// kernel: encoder_forward.14
$region0: #{encoder_forward.14}
  #allocation0 [shape = 'u32[]', space=smem, size = 0x4, offset = 0x4, fixed_abs, tag = 'smem constant byte address 0x4 - core index']
  #allocation1 [shape = 'u32[144,128]{1,0:T(1,128)}', space=vmem, size = 0x12000, scoped, tag = 'internal scratch']
  %s0 = inlined_call_operand.vmem [shape: bf16[16,144], index: 0, kind: input, shape index: {}]
  %s1 = inlined_call_operand.vmem [shape: bf16[144,8], index: 1, kind: input, shape index: {}]
  %s2 = inlined_call_operand.vmem [shape: f32[16,1], index: 2, kind: input, shape index: {}]
  %s3 = inlined_call_operand.vmem [shape: bf16[16,8], index: 3, kind: output, shape index: {}]
  %s4 = sld [smem:[#allocation0]]
  $region22: #{encoder_forward.14} parent=0
    _
  %s6 = ssub.s32 1, %s4
  %s7 = scalar_select 0, %s6, %s4
  // Predicated region
  $region2: #{encoder_forward.14} parent=0 // pred_check
    _
  $region3: #{encoder_forward.14} parent=0 // pred_check_branch
    %9 = sbr.rel (0) target = $region5
  $region4: #{encoder_forward.14} parent=0 // pred_region
    _
  $region5: #{encoder_forward.14} parent=0 // pred_fallthru
    _
  // Predicated region
  $region6: #{encoder_forward.14} parent=0 // pred_check
    _
  $region7: #{encoder_forward.14} parent=0 // pred_check_branch
    %11 = sbr.rel (0) target = $region9
  $region8: #{encoder_forward.14} parent=0 // pred_region
    _
  $region9: #{encoder_forward.14} parent=0 // pred_fallthru
    _
  // Predicated region
  $region10: #{encoder_forward.14} parent=0 // pred_check
    _
  $region11: #{encoder_forward.14} parent=0 // pred_check_branch
    %13 = sbr.rel (0) target = $region13
  $region12: #{encoder_forward.14} parent=0 // pred_region
    _
  $region13: #{encoder_forward.14} parent=0 // pred_fallthru
    _
  %v15 = vld [vmem:[%s0] sm:$0xff]
  %v16 = vld [vmem:[%s0 + $0x8] sm:$0xff]
  %v17 = vld [vmem:[%s1] sm:$0xf]
  %v18 = vld [vmem:[%s1 + $0x4] sm:$0xf]
  %v19 = vld [vmem:[%s1 + $0x8] sm:$0xf]
  %v20 = vld [vmem:[%s1 + $0xc] sm:$0xf]
  %v21 = vld [vmem:[%s1 + $0x10] sm:$0xf]
  %v22 = vld [vmem:[%s1 + $0x14] sm:$0xf]
  %v23 = vld [vmem:[%s1 + $0x18] sm:$0xf]
  %v24 = vld [vmem:[%s1 + $0x1c] sm:$0xf]
  %v25 = vld [vmem:[%s1 + $0x20] sm:$0xf]
  %v26 = vld [vmem:[%s1 + $0x24] sm:$0xf]
  %v27 = vld [vmem:[%s1 + $0x28] sm:$0xf]
  %v28 = vld [vmem:[%s1 + $0x2c] sm:$0xf]
  %v29 = vld [vmem:[%s1 + $0x30] sm:$0xf]
  %v30 = vld [vmem:[%s1 + $0x34] sm:$0xf]
  %v31 = vld [vmem:[%s1 + $0x38] sm:$0xf]
  %v32 = vld [vmem:[%s1 + $0x3c] sm:$0xf]
  %v33 = vld [vmem:[%s1 + $0x40] sm:$0xf]
  %v34 = vld [vmem:[%s1 + $0x44] sm:$0xf]
  %v35 = vld [vmem:[%s2] sm:$0xff]
  %v36 = vld [vmem:[%s2 + $0x8] sm:$0xff]
  %38 = vset.pattern.permute.xlu0 0
  %39 = vperm.xlu0 %38, %v35
  %v40 = vpop.permute.xlu0 %39
  %43 = vset.pattern.permute.xlu0 0
  %44 = vperm.xlu0 %43, %v36
  %v45 = vpop.permute.xlu0 %44
  %v49 = vunpack.c.l.b16 %v15
  %v50 = vunpack.c.h.b16 %v15
  %v51 = vunpack.c.l.b16 %v16
  %v52 = vunpack.c.h.b16 %v16
  %v53 = vpack.c.b16 %v51, %v49
  %v54 = vpack.c.b16 %v52, %v50
  %v74 = vunpack.c.l.b16 %v17
  %v75 = vunpack.c.l.b16 %v18
  %v76 = vunpack.c.l.b16 %v19
  %v77 = vunpack.c.l.b16 %v20
  %v78 = vunpack.c.l.b16 %v21
  %v79 = vunpack.c.l.b16 %v22
  %v80 = vunpack.c.l.b16 %v23
  %v81 = vunpack.c.l.b16 %v24
  %v82 = vunpack.c.l.b16 %v25
  %v83 = vunpack.c.l.b16 %v26
  %v84 = vunpack.c.l.b16 %v27
  %v85 = vunpack.c.l.b16 %v28
  %v86 = vunpack.c.l.b16 %v29
  %v87 = vunpack.c.l.b16 %v30
  %v88 = vunpack.c.l.b16 %v31
  %v89 = vunpack.c.l.b16 %v32
  %v90 = vunpack.c.l.b16 %v33
  %v91 = vunpack.c.l.b16 %v34
  %v92 = vpack.c.b16 %v75, %v74
  %v93 = vpack.c.b16 %v77, %v76
  %v94 = vpack.c.b16 %v79, %v78
  %v95 = vpack.c.b16 %v81, %v80
  %v96 = vpack.c.b16 %v83, %v82
  %v97 = vpack.c.b16 %v85, %v84
  %v98 = vpack.c.b16 %v87, %v86
  %v99 = vpack.c.b16 %v89, %v88
  %v100 = vpack.c.b16 %v91, %v90
  %vm110 = vcmask 130048
  %v112 = vsel %vm110, %v54, 0
  %114 = vmatprep.subr.bf16.mxu0 0
  %115 = vmatpush1.bf16.msra.mxu0 %v92
  %116 = vmatprep.subr.bf16.mxu0 0
  %117 = vmatpush1.bf16.msra.mxu0 %v93
  %118 = vmatprep.subr.bf16.mxu0 0
  %119 = vmatpush1.bf16.msra.mxu0 %v94
  %120 = vmatprep.subr.bf16.mxu0 0
  %121 = vmatpush1.bf16.msra.mxu0 %v95
  %122 = vmatprep.subr.bf16.mxu0 0
  %123 = vmatpush1.bf16.msra.mxu0 %v96
  %124 = vmatprep.subr.bf16.mxu0 0
  %125 = vmatpush1.bf16.msra.mxu0 %v97
  %126 = vmatprep.subr.bf16.mxu0 0
  %127 = vmatpush1.bf16.msra.mxu0 %v98
  %128 = vmatprep.subr.bf16.mxu0 0
  %129 = vmatpush1.bf16.msra.mxu0 %v99
  %130 = vmatprep.subr.bf16.mxu0 0
  %131 = vmatpush1.bf16.msra.mxu0 %v100
  %132 = vmatprep.subr.bf16.mxu0 0
  %133 = vmatpush1.bf16.msra.mxu0 0
  %134 = vmatprep.subr.bf16.mxu0 0
  %135 = vmatpush1.bf16.msra.mxu0 0
  %136 = vmatprep.subr.bf16.mxu0 0
  %137 = vmatpush1.bf16.msra.mxu0 0
  %138 = vmatprep.subr.bf16.mxu0 0
  %139 = vmatpush1.bf16.msra.mxu0 0
  %140 = vmatprep.subr.bf16.mxu0 0
  %141 = vmatpush1.bf16.msra.mxu0 0
  %142 = vmatprep.subr.bf16.mxu0 0
  %143 = vmatpush1.bf16.msra.mxu0 0
  %144 = vmatprep.subr.bf16.mxu0 0
  %145 = vmatpush1.bf16.msra.mxu0 0
  %146 = vmatprep.mubr.bf16.mxu0 %v112
  %147 = vmatmul.mubr.bf16.gmra.mrb[0].mxu0 %v53
  %v148 = vpop.f32.mrb[0].mxu0
  %v149 = vadd.f32 %v40, %v148
  %v150 = vpop.f32.mrb[0].mxu0
  %v151 = vpop.f32.mrb[0].mxu0
  %v152 = vadd.f32 %v45, %v151
  %v153 = vpop.f32.mrb[0].mxu0
  %154 = vdwg.mxu0
  %vm155 = vcmp.ge.f32.partialorder %v149, 0.0
  %vm156 = vcmp.ge.f32.partialorder %v152, 0.0
  %v157 = vmul.f32 %v149, 0.01
  %v158 = vmul.f32 %v152, 0.01
  %v159 = vsel %vm155, %v149, %v157
  %v160 = vsel %vm156, %v152, %v158
  %v161 = vpack.c.bf16 %v160, %v159
  %v163 = vunpack.c.l.b16 %v161
  %v164 = vunpack.c.h.b16 %v161
  %v165 = vpack.c.b16 %v163, %v163
  %v166 = vpack.c.b16 %v164, %v164
  %vm169 = vcmask 60416
  %170 = vst.msk [vmem:[%s3] sm:$0xf] %vm169, %v165
  %171 = vst.msk [vmem:[%s3 + $0x4] sm:$0xf] %vm169, %v166
  // Predicated region
  $region14: #{encoder_forward.14} parent=0 // pred_check
    _
  $region15: #{encoder_forward.14} parent=0 // pred_check_branch
    %173 = sbr.rel (0) target = $region17
  $region16: #{encoder_forward.14} parent=0 // pred_region
    _
  $region17: #{encoder_forward.14} parent=0 // pred_fallthru
    _
  // Predicated region
  $region18: #{encoder_forward.14} parent=0 // pred_check
    _
  $region19: #{encoder_forward.14} parent=0 // pred_check_branch
    %175 = sbr.rel (0) target = $region21
  $region20: #{encoder_forward.14} parent=0 // pred_region
    _
  $region21: #{encoder_forward.14} parent=0 // pred_fallthru
    _

// kernel: encoder_forward.16
$region0: #{encoder_forward.16}
  #allocation0 [shape = 'u32[]', space=smem, size = 0x4, offset = 0x4, fixed_abs, tag = 'smem constant byte address 0x4 - core index']
  #allocation1 [shape = 'u32[144,128]{1,0:T(1,128)}', space=vmem, size = 0x12000, scoped, tag = 'internal scratch']
  %s0 = inlined_call_operand.vmem [shape: bf16[2,64], index: 0, kind: input, shape index: {}]
  %s1 = inlined_call_operand.vmem [shape: bf16[64,32], index: 1, kind: input, shape index: {}]
  %s2 = inlined_call_operand.vmem [shape: f32[1,32], index: 2, kind: input, shape index: {}]
  %s3 = inlined_call_operand.vmem [shape: bf16[2,32], index: 3, kind: output, shape index: {}]
  %s4 = sld [smem:[#allocation0]]
  $region22: #{encoder_forward.16} parent=0
    _
  %s6 = ssub.s32 1, %s4
  %s7 = scalar_select 0, %s6, %s4
  // Predicated region
  $region2: #{encoder_forward.16} parent=0 // pred_check
    _
  $region3: #{encoder_forward.16} parent=0 // pred_check_branch
    %9 = sbr.rel (0) target = $region5
  $region4: #{encoder_forward.16} parent=0 // pred_region
    _
  $region5: #{encoder_forward.16} parent=0 // pred_fallthru
    _
  // Predicated region
  $region6: #{encoder_forward.16} parent=0 // pred_check
    _
  $region7: #{encoder_forward.16} parent=0 // pred_check_branch
    %11 = sbr.rel (0) target = $region9
  $region8: #{encoder_forward.16} parent=0 // pred_region
    _
  $region9: #{encoder_forward.16} parent=0 // pred_fallthru
    _
  // Predicated region
  $region10: #{encoder_forward.16} parent=0 // pred_check
    _
  $region11: #{encoder_forward.16} parent=0 // pred_check_branch
    %13 = sbr.rel (0) target = $region13
  $region12: #{encoder_forward.16} parent=0 // pred_region
    _
  $region13: #{encoder_forward.16} parent=0 // pred_fallthru
    _
  %v15 = vld [vmem:[%s0] sm:$0x1]
  %v16 = vld [vmem:[%s1] sm:$0xf]
  %v17 = vld [vmem:[%s1 + $0x4] sm:$0xf]
  %v18 = vld [vmem:[%s1 + $0x8] sm:$0xf]
  %v19 = vld [vmem:[%s1 + $0xc] sm:$0xf]
  %v20 = vld [vmem:[%s1 + $0x10] sm:$0xf]
  %v21 = vld [vmem:[%s1 + $0x14] sm:$0xf]
  %v22 = vld [vmem:[%s1 + $0x18] sm:$0xf]
  %v23 = vld [vmem:[%s1 + $0x1c] sm:$0xf]
  %v24 = vld [vmem:[%s2] sm:$0x1]
  %v26 = vlaneseq
  %v27 = vshrl.u32 %v26, 7
  %v28 = vsub.s32 0, %v27
  %v29 = vrot.slane %v24, %v28
  %v39 = vunpack.c.l.b16 %v16
  %v40 = vunpack.c.l.b16 %v17
  %v41 = vunpack.c.l.b16 %v18
  %v42 = vunpack.c.l.b16 %v19
  %v43 = vunpack.c.l.b16 %v20
  %v44 = vunpack.c.l.b16 %v21
  %v45 = vunpack.c.l.b16 %v22
  %v46 = vunpack.c.l.b16 %v23
  %v47 = vpack.c.b16 %v40, %v39
  %v48 = vpack.c.b16 %v42, %v41
  %v49 = vpack.c.b16 %v44, %v43
  %v50 = vpack.c.b16 %v46, %v45
  %vm55 = vcmask 523264
  %v57 = vsel %vm55, %v15, 0
  %59 = vmatprep.subr.bf16.mxu0 0
  %60 = vmatpush1.bf16.msra.mxu0 %v47
  %61 = vmatprep.subr.bf16.mxu0 0
  %62 = vmatpush1.bf16.msra.mxu0 %v48
  %63 = vmatprep.subr.bf16.mxu0 0
  %64 = vmatpush1.bf16.msra.mxu0 %v49
  %65 = vmatprep.subr.bf16.mxu0 0
  %66 = vmatpush1.bf16.msra.mxu0 %v50
  %67 = vmatprep.subr.bf16.mxu0 0
  %68 = vmatpush1.bf16.msra.mxu0 0
  %69 = vmatprep.subr.bf16.mxu0 0
  %70 = vmatpush1.bf16.msra.mxu0 0
  %71 = vmatprep.subr.bf16.mxu0 0
  %72 = vmatpush1.bf16.msra.mxu0 0
  %73 = vmatprep.subr.bf16.mxu0 0
  %74 = vmatpush1.bf16.msra.mxu0 0
  %75 = vmatprep.subr.bf16.mxu0 0
  %76 = vmatpush1.bf16.msra.mxu0 0
  %77 = vmatprep.subr.bf16.mxu0 0
  %78 = vmatpush1.bf16.msra.mxu0 0
  %79 = vmatprep.subr.bf16.mxu0 0
  %80 = vmatpush1.bf16.msra.mxu0 0
  %81 = vmatprep.subr.bf16.mxu0 0
  %82 = vmatpush1.bf16.msra.mxu0 0
  %83 = vmatprep.subr.bf16.mxu0 0
  %84 = vmatpush1.bf16.msra.mxu0 0
  %85 = vmatprep.subr.bf16.mxu0 0
  %86 = vmatpush1.bf16.msra.mxu0 0
  %87 = vmatprep.subr.bf16.mxu0 0
  %88 = vmatpush1.bf16.msra.mxu0 0
  %89 = vmatprep.subr.bf16.mxu0 0
  %90 = vmatpush1.bf16.msra.mxu0 0
  %91 = vmatprep.mubr.bf16.mxu0 0
  %92 = vmatmul.mubr.bf16.gmra.mrb[0].mxu0 %v57
  %v93 = vpop.f32.mrb[0].mxu0
  %v94 = vadd.f32 %v29, %v93
  %v95 = vpop.f32.mrb[0].mxu0
  %v96 = vpop.f32.mrb[0].mxu0
  %v97 = vpop.f32.mrb[0].mxu0
  %98 = vdwg.mxu0
  %vm99 = vcmp.ge.f32.partialorder %v94, 0.0
  %v100 = vmul.f32 %v94, 0.01
  %v101 = vsel %vm99, %v94, %v100
  %v102 = vpack.c.bf16 %v101, %v101
  %vm103 = vcmask 253952
  %104 = vst.msk [vmem:[%s3] sm:$0x1] %vm103, %v102
  // Predicated region
  $region14: #{encoder_forward.16} parent=0 // pred_check
    _
  $region15: #{encoder_forward.16} parent=0 // pred_check_branch
    %106 = sbr.rel (0) target = $region17
  $region16: #{encoder_forward.16} parent=0 // pred_region
    _
  $region17: #{encoder_forward.16} parent=0 // pred_fallthru
    _
  // Predicated region
  $region18: #{encoder_forward.16} parent=0 // pred_check
    _
  $region19: #{encoder_forward.16} parent=0 // pred_check_branch
    %108 = sbr.rel (0) target = $region21
  $region20: #{encoder_forward.16} parent=0 // pred_region
    _
  $region21: #{encoder_forward.16} parent=0 // pred_fallthru
    _

// kernel: encoder_forward.17
$region0: #{encoder_forward.17}
  #allocation0 [shape = 'u32[]', space=smem, size = 0x4, offset = 0x4, fixed_abs, tag = 'smem constant byte address 0x4 - core index']
  #allocation1 [shape = 'u32[144,128]{1,0:T(1,128)}', space=vmem, size = 0x12000, scoped, tag = 'internal scratch']
  %s0 = inlined_call_operand.vmem [shape: bf16[2,32], index: 0, kind: input, shape index: {}]
  %s1 = inlined_call_operand.vmem [shape: bf16[32,1536], index: 1, kind: input, shape index: {}]
  %s2 = inlined_call_operand.vmem [shape: bf16[2,1536], index: 2, kind: output, shape index: {}]
  %s3 = sld [smem:[#allocation0]]
  $region64: #{encoder_forward.17} parent=0
    _
  %s5 = ssub.s32 1, %s3
  %s6 = scalar_select 0, %s5, %s3
  $region1: #{encoder_forward.17} parent=0
    #allocation2 [shape = 'u8[65536]{0}', space=vmem, size = 0x10000, scoped, tag = 'input window, operand 1']
    loop: start=0, step=1, limit=5
    $region2: #{encoder_forward.17} parent=1 // loop_pre_header
      _
    $region3: #{encoder_forward.17} parent=1 // loop_header
      %s8 = sphi 0, %s12
      %p9 = scmp.ge.s32.totalorder %s8, 5
      %s16 = sphi 0, %s16
      %s18 = sphi 0, %s16
      %s19 = sphi 0, %s18
      %s33 = sphi 0, %s19
      %s39 = sphi 0, %s41
      %s42 = sphi 0, %s39
      %s43 = sphi 0, %s42
      %s59 = sphi 0, %s43
      %s65 = sphi 0, %s67
      %s68 = sphi 0, %s65
      %s69 = sphi 0, %s68
      %s85 = sphi 0, %s69
    $region4: #{encoder_forward.17} parent=1 // loop_header_branch
      %11 = sbr.rel (%p9) target = $region8
    $region5: #{encoder_forward.17} parent=1 // loop_body
      %s13 = ssub.s32 %s8, 1
      %s14 = ssub.s32 %s8, 2
      %s15 = sadd.s32 %s8, 1
      %s17 = sadd.s32 %s16, 1
      %p20 = scmp.eq.s32.totalorder %s8, 2
      %p21 = scmp.ne.s32.totalorder %s16, %s18
      %p22 = scmp.eq.s32.totalorder %s8, 0
      %p23 = por %p21, %p22
      %p24 = scmp.ne.s32.totalorder %s16, %s18
      %p25 = scmp.eq.s32.totalorder %s13, 2
      %p26 = por %p24, %p25
      %p27 = scmp.ne.s32.totalorder %s18, %s19
      %p28 = scmp.eq.s32.totalorder %s13, 0
      %p29 = por %p27, %p28
      %p30 = scmp.ne.s32.totalorder %s18, %s19
      %p31 = scmp.eq.s32.totalorder %s14, 2
      %p32 = por %p30, %p31
      %p34 = scmp.ne.s32.totalorder %s19, %s33
      %p35 = scmp.eq.s32.totalorder %s14, 0
      %p36 = por %p34, %p35
      %s37 = ssub.s32 %s8, %s15
      %p38 = scmp.eq.s32.totalorder %s37, 0
      %s40 = sadd.s32 %s39, 1
      %s41 = scalar_select %p38, %s39, %s40
      %p44 = pneg %p38
      %p45 = scmp.eq.s32.totalorder %s8, 2
      %p46 = por %p44, %p45
      %p47 = scmp.ne.s32.totalorder %s39, %s42
      %p48 = scmp.eq.s32.totalorder %s8, 0
      %p49 = por %p47, %p48
      %p50 = scmp.ne.s32.totalorder %s39, %s42
      %p51 = scmp.eq.s32.totalorder %s13, 2
      %p52 = por %p50, %p51
      %p53 = scmp.ne.s32.totalorder %s42, %s43
      %p54 = scmp.eq.s32.totalorder %s13, 0
      %p55 = por %p53, %p54
      %p56 = scmp.ne.s32.totalorder %s42, %s43
      %p57 = scmp.eq.s32.totalorder %s14, 2
      %p58 = por %p56, %p57
      %p60 = scmp.ne.s32.totalorder %s43, %s59
      %p61 = scmp.eq.s32.totalorder %s14, 0
      %p62 = por %p60, %p61
      %s63 = ssub.s32 %s8, %s15
      %p64 = scmp.eq.s32.totalorder %s63, 0
      %s66 = sadd.s32 %s65, 1
      %s67 = scalar_select %p64, %s65, %s66
      %p70 = pneg %p64
      %p71 = scmp.eq.s32.totalorder %s8, 2
      %p72 = por %p70, %p71
      %p73 = scmp.ne.s32.totalorder %s65, %s68
      %p74 = scmp.eq.s32.totalorder %s8, 0
      %p75 = por %p73, %p74
      %p76 = scmp.ne.s32.totalorder %s65, %s68
      %p77 = scmp.eq.s32.totalorder %s13, 2
      %p78 = por %p76, %p77
      %p79 = scmp.ne.s32.totalorder %s68, %s69
      %p80 = scmp.eq.s32.totalorder %s13, 0
      %p81 = por %p79, %p80
      %p82 = scmp.ne.s32.totalorder %s68, %s69
      %p83 = scmp.eq.s32.totalorder %s14, 2
      %p84 = por %p82, %p83
      %p86 = scmp.ne.s32.totalorder %s69, %s85
      %p87 = scmp.eq.s32.totalorder %s14, 0
      %p88 = por %p86, %p87
      %p89 = scmp.le.s32.totalorder 1, %s8
      %p90 = scmp.lt.s32.totalorder %s8, 4
      %p91 = pnand %p89, %p90
      %p92 = pneg %p91
      // Predicated region
      $region9: #{encoder_forward.17} parent=5 // pred_check
        _
      $region10: #{encoder_forward.17} parent=5 // pred_check_branch
        %94 = sbr.rel (%p91) target = $region12
      $region11: #{encoder_forward.17} parent=5 // pred_region
        %s95 = ssub.s32 %s8, 1
        // Predicated region
        $region13: #{encoder_forward.17} parent=11 // pred_check
          %p96 = pneg %p29
        $region14: #{encoder_forward.17} parent=11 // pred_check_branch
          %98 = sbr.rel (%p96) target = $region16
        $region15: #{encoder_forward.17} parent=11 // pred_region
          _
        $region16: #{encoder_forward.17} parent=11 // pred_fallthru
          _
      $region12: #{encoder_forward.17} parent=5 // pred_fallthru
        _
      %p99 = scmp.lt.s32.totalorder %s8, 3
      // Predicated region
      $region17: #{encoder_forward.17} parent=5 // pred_check
        %p100 = pneg %p99
      $region18: #{encoder_forward.17} parent=5 // pred_check_branch
        %102 = sbr.rel (%p100) target = $region20
      $region19: #{encoder_forward.17} parent=5 // pred_region
        // Predicated region
        $region21: #{encoder_forward.17} parent=19 // pred_check
          %p103 = pneg %p49
        $region22: #{encoder_forward.17} parent=19 // pred_check_branch
          %105 = sbr.rel (%p103) target = $region24
        $region23: #{encoder_forward.17} parent=19 // pred_region
          %s106 = sand.u32 %s39, 1
          %s107 = sand.u32 %s39, 1
          %s108 = smul.addr %s107, 64
          %s109 = scalar_lea.vmem [#allocation2], %s108
          %s110 = smul.u32 4, %s8
          %s111 = smul.addr %s110, 4
          %s112 = scalar_lea.vmem %s1, %s111
          // Predicated region
          $region25: #{encoder_forward.17} parent=23 // pred_check
            _
          $region26: #{encoder_forward.17} parent=23 // pred_check_branch
            %114 = sbr.rel (0) target = $region28
          $region27: #{encoder_forward.17} parent=23 // pred_region
            // Predicated region
            $region29: #{encoder_forward.17} parent=27 // pred_check
              _
            $region30: #{encoder_forward.17} parent=27 // pred_check_branch
              %116 = sbr.rel (0) target = $region32
            $region31: #{encoder_forward.17} parent=27 // pred_region
              loop: start=0, step=1, limit=1
              $region33: #{encoder_forward.17} parent=31 // loop_pre_header
                _
              $region34: #{encoder_forward.17} parent=31 // loop_header
                %s118 = sphi 0, %s122
                %p119 = scmp.ge.s32.totalorder %s118, 1
                %s123 = sphi %s112, %s112
                %s124 = sphi %s109, %s109
              $region35: #{encoder_forward.17} parent=31 // loop_header_branch
                %121 = sbr.rel (%p119) target = $region39
              $region36: #{encoder_forward.17} parent=31 // loop_body
                %v125 = vld [vmem:[%s123] sm:$0xff]
                %126 = vst [vmem:[%s124] sm:$0xff] %v125
                %v127 = vld [vmem:[%s123 + $0x8] sm:$0xff]
                %128 = vst [vmem:[%s124 + $0x8] sm:$0xff] %v127
                %v129 = vld [vmem:[%s123 + $0x30] sm:$0xff]
                %130 = vst [vmem:[%s124 + $0x10] sm:$0xff] %v129
                %v131 = vld [vmem:[%s123 + $0x38] sm:$0xff]
                %132 = vst [vmem:[%s124 + $0x18] sm:$0xff] %v131
                %v133 = vld [vmem:[%s123 + $0x60] sm:$0xff]
                %134 = vst [vmem:[%s124 + $0x20] sm:$0xff] %v133
                %v135 = vld [vmem:[%s123 + $0x68] sm:$0xff]
                %136 = vst [vmem:[%s124 + $0x28] sm:$0xff] %v135
                %v137 = vld [vmem:[%s123 + $0x90] sm:$0xff]
                %138 = vst [vmem:[%s124 + $0x30] sm:$0xff] %v137
                %v139 = vld [vmem:[%s123 + $0x98] sm:$0xff]
                %140 = vst [vmem:[%s124 + $0x38] sm:$0xff] %v139
              $region37: #{encoder_forward.17} parent=31 // loop_footer
                %s122 = sadd.s32 1, %s118
              $region38: #{encoder_forward.17} parent=31 // loop_footer_branch
                %117 = sbr.rel target = $region34
              $region39: #{encoder_forward.17} parent=31 // loop_exit
                _
            $region32: #{encoder_forward.17} parent=27 // pred_fallthru
              _
            // Predicated region
            $region40: #{encoder_forward.17} parent=27 // pred_check
              _
            $region41: #{encoder_forward.17} parent=27 // pred_check_branch
              %142 = sbr.rel target = $region43
            $region42: #{encoder_forward.17} parent=27 // pred_region
              _
            $region43: #{encoder_forward.17} parent=27 // pred_fallthru
              _
          $region28: #{encoder_forward.17} parent=23 // pred_fallthru
            _
          %143 = vnop
        $region24: #{encoder_forward.17} parent=19 // pred_fallthru
          _
      $region20: #{encoder_forward.17} parent=5 // pred_fallthru
        _
      %p144 = scmp.le.s32.totalorder 1, %s8
      %p145 = scmp.lt.s32.totalorder %s8, 4
      %p146 = pnand %p144, %p145
      %p147 = pneg %p146
      // Predicated region
      $region44: #{encoder_forward.17} parent=5 // pred_check
        _
      $region45: #{encoder_forward.17} parent=5 // pred_check_branch
        %149 = sbr.rel (%p146) target = $region47
      $region46: #{encoder_forward.17} parent=5 // pred_region
        %s150 = ssub.s32 %s8, 1
        %s151 = sand.u32 %s42, 1
        %s152 = sand.u32 %s42, 1
        %s153 = smul.addr %s152, 64
        %s154 = scalar_lea.vmem [#allocation2], %s153
        // Predicated region
        $region48: #{encoder_forward.17} parent=46 // pred_check
          %p155 = pneg %p55
        $region49: #{encoder_forward.17} parent=46 // pred_check_branch
          %157 = sbr.rel (%p155) target = $region51
        $region50: #{encoder_forward.17} parent=46 // pred_region
          _
        $region51: #{encoder_forward.17} parent=46 // pred_fallthru
          _
        %p158 = pneg %p29
        %p159 = pneg %p26
        %s160 = sand.u32 %s42, 1
        %s161 = sand.u32 %s42, 1
        %s162 = smul.addr %s161, 64
        %s163 = scalar_lea.vmem [#allocation2], %s162
        %p164 = pneg %p55
        %p165 = pneg %p52
        %p166 = pneg %p81
        %p167 = pneg %p78
        %s168 = smul.u32 4, %s13
        %p169 = scmp.lt.s32.totalorder %s168, 11
        %s170 = scalar_select %p169, %s168, 11
        %s171 = scalar_lea.vmem %s2, %s170
        %s172 = smul.u32 4, %s13
        %s173 = smul.u32 4, %s13
        %p174 = scmp.lt.s32.totalorder %s173, 11
        %s175 = scalar_select %p174, %s173, 11
        %s176 = scalar_lea.vmem %s2, %s175
        %s177 = smul.u32 4, %s13
        %v179 = vld [vmem:[%s0] sm:$0x1]
        %v180 = vld [vmem:[%s154] sm:$0xff]
        %v181 = vld [vmem:[%s154 + $0x8] sm:$0xff]
        %v182 = vld [vmem:[%s154 + $0x10] sm:$0xff]
        %v183 = vld [vmem:[%s154 + $0x18] sm:$0xff]
        %v184 = vld [vmem:[%s154 + $0x20] sm:$0xff]
        %v185 = vld [vmem:[%s154 + $0x28] sm:$0xff]
        %v186 = vld [vmem:[%s154 + $0x30] sm:$0xff]
        %v187 = vld [vmem:[%s154 + $0x38] sm:$0xff]
        %v196 = vunpack.c.l.b16 %v180
        %v197 = vunpack.c.h.b16 %v180
        %v198 = vunpack.c.l.b16 %v181
        %v199 = vunpack.c.h.b16 %v181
        %v200 = vunpack.c.l.b16 %v182
        %v201 = vunpack.c.h.b16 %v182
        %v202 = vunpack.c.l.b16 %v183
        %v203 = vunpack.c.h.b16 %v183
        %v204 = vunpack.c.l.b16 %v184
        %v205 = vunpack.c.h.b16 %v184
        %v206 = vunpack.c.l.b16 %v185
        %v207 = vunpack.c.h.b16 %v185
        %v208 = vunpack.c.l.b16 %v186
        %v209 = vunpack.c.h.b16 %v186
        %v210 = vunpack.c.l.b16 %v187
        %v211 = vunpack.c.h.b16 %v187
        %v212 = vpack.c.b16 %v200, %v196
        %v213 = vpack.c.b16 %v201, %v197
        %v214 = vpack.c.b16 %v202, %v198
        %v215 = vpack.c.b16 %v203, %v199
        %v216 = vpack.c.b16 %v208, %v204
        %v217 = vpack.c.b16 %v209, %v205
        %v218 = vpack.c.b16 %v210, %v206
        %v219 = vpack.c.b16 %v211, %v207
        %vm228 = vcmask 261120
        %v230 = vsel %vm228, %v179, 0
        %232 = vmatprep.subr.bf16.mxu0 %v213
        %233 = vmatpush1.bf16.msra.mxu0 %v212
        %234 = vmatprep.subr.bf16.mxu0 %v217
        %235 = vmatpush1.bf16.msra.mxu0 %v216
        %236 = vmatprep.subr.bf16.mxu0 0
        %237 = vmatpush1.bf16.msra.mxu0 0
        %238 = vmatprep.subr.bf16.mxu0 0
        %239 = vmatpush1.bf16.msra.mxu0 0
        %240 = vmatprep.subr.bf16.mxu0 0
        %241 = vmatpush1.bf16.msra.mxu0 0
        %242 = vmatprep.subr.bf16.mxu0 0
        %243 = vmatpush1.bf16.msra.mxu0 0
        %244 = vmatprep.subr.bf16.mxu0 0
        %245 = vmatpush1.bf16.msra.mxu0 0
        %246 = vmatprep.subr.bf16.mxu0 0
        %247 = vmatpush1.bf16.msra.mxu0 0
        %248 = vmatprep.subr.bf16.mxu0 0
        %249 = vmatpush1.bf16.msra.mxu0 0
        %250 = vmatprep.subr.bf16.mxu0 0
        %251 = vmatpush1.bf16.msra.mxu0 0
        %252 = vmatprep.subr.bf16.mxu0 0
        %253 = vmatpush1.bf16.msra.mxu0 0
        %254 = vmatprep.subr.bf16.mxu0 0
        %255 = vmatpush1.bf16.msra.mxu0 0
        %256 = vmatprep.subr.bf16.mxu0 0
        %257 = vmatpush1.bf16.msra.mxu0 0
        %258 = vmatprep.subr.bf16.mxu0 0
        %259 = vmatpush1.bf16.msra.mxu0 0
        %260 = vmatprep.subr.bf16.mxu0 0
        %261 = vmatpush1.bf16.msra.mxu0 0
        %262 = vmatprep.subr.bf16.mxu0 0
        %263 = vmatpush1.bf16.msra.mxu0 0
        %264 = vmatprep.mubr.bf16.mxu0 0
        %265 = vmatmul.mubr.bf16.gmra.mrb[0].mxu0 %v230
        %v266 = vpop.f32.mrb[0].mxu0
        %v267 = vadd.f32 0.0, %v266
        %v268 = vpop.f32.mrb[0].mxu0
        %v269 = vadd.f32 0.0, %v268
        %v270 = vpop.f32.mrb[0].mxu0
        %v271 = vpop.f32.mrb[0].mxu0
        %272 = vdwg.mxu0
        %273 = vmatprep.subr.bf16.mxu0 %v215
        %274 = vmatpush1.bf16.msra.mxu0 %v214
        %275 = vmatprep.subr.bf16.mxu0 %v219
        %276 = vmatpush1.bf16.msra.mxu0 %v218
        %277 = vmatprep.subr.bf16.mxu0 0
        %278 = vmatpush1.bf16.msra.mxu0 0
        %279 = vmatprep.subr.bf16.mxu0 0
        %280 = vmatpush1.bf16.msra.mxu0 0
        %281 = vmatprep.subr.bf16.mxu0 0
        %282 = vmatpush1.bf16.msra.mxu0 0
        %283 = vmatprep.subr.bf16.mxu0 0
        %284 = vmatpush1.bf16.msra.mxu0 0
        %285 = vmatprep.subr.bf16.mxu0 0
        %286 = vmatpush1.bf16.msra.mxu0 0
        %287 = vmatprep.subr.bf16.mxu0 0
        %288 = vmatpush1.bf16.msra.mxu0 0
        %289 = vmatprep.subr.bf16.mxu0 0
        %290 = vmatpush1.bf16.msra.mxu0 0
        %291 = vmatprep.subr.bf16.mxu0 0
        %292 = vmatpush1.bf16.msra.mxu0 0
        %293 = vmatprep.subr.bf16.mxu0 0
        %294 = vmatpush1.bf16.msra.mxu0 0
        %295 = vmatprep.subr.bf16.mxu0 0
        %296 = vmatpush1.bf16.msra.mxu0 0
        %297 = vmatprep.subr.bf16.mxu0 0
        %298 = vmatpush1.bf16.msra.mxu0 0
        %299 = vmatprep.subr.bf16.mxu0 0
        %300 = vmatpush1.bf16.msra.mxu0 0
        %301 = vmatprep.subr.bf16.mxu0 0
        %302 = vmatpush1.bf16.msra.mxu0 0
        %303 = vmatprep.subr.bf16.mxu0 0
        %304 = vmatpush1.bf16.msra.mxu0 0
        %305 = vmatprep.mubr.bf16.mxu0 0
        %306 = vmatmul.mubr.bf16.gmra.mrb[0].mxu0 %v230
        %v307 = vpop.f32.mrb[0].mxu0
        %v308 = vadd.f32 0.0, %v307
        %v309 = vpop.f32.mrb[0].mxu0
        %v310 = vadd.f32 0.0, %v309
        %v311 = vpop.f32.mrb[0].mxu0
        %v312 = vpop.f32.mrb[0].mxu0
        %313 = vdwg.mxu0
        %v314 = vpack.c.bf16 %v267, %v267
        %v315 = vpack.c.bf16 %v269, %v269
        %v316 = vpack.c.bf16 %v308, %v308
        %v317 = vpack.c.bf16 %v310, %v310
        %v322 = vcombine.low %v314, %v315
        %v323 = vcombine.low %v316, %v317
        %v325 = vunpack.c.l.s4 1966171168
        %v326 = vunpack.c.0.s8 %v325
        %v327 = vlaneseq
        %v328 = vshrl.u32 %v327, 7
        %v329 = vsub.s32 %v326, %v328
        %v330 = vrot.slane %v322, %v329
        %v332 = vunpack.c.l.s4 1966171168
        %v333 = vunpack.c.0.s8 %v332
        %v334 = vlaneseq
        %v335 = vshrl.u32 %v334, 7
        %v336 = vsub.s32 %v333, %v335
        %v337 = vrot.slane %v323, %v336
        %v338 = vcombine.low %v330, %v337
        %v340 = vunpack.c.l.s4 1966171168
        %v341 = vunpack.c.0.s8 %v340
        %v342 = vlaneseq
        %v343 = vshrl.u32 %v342, 7
        %v344 = vsub.s32 %v341, %v343
        %v345 = vrot.slane %v338, %v344
        %347 = vst [vmem:[%s176] sm:$0xf] %v345
        %s348 = smul.u32 4, %s13
        %p349 = scmp.lt.s32.totalorder %s348, 11
        %s350 = scalar_select %p349, %s348, 11
        %s351 = scalar_lea.vmem %s2, %s350
        // Predicated region
        $region52: #{encoder_forward.17} parent=46 // pred_check
          %p352 = pneg %p78
        $region53: #{encoder_forward.17} parent=46 // pred_check_branch
          %354 = sbr.rel (%p352) target = $region55
        $region54: #{encoder_forward.17} parent=46 // pred_region
          %s355 = smul.u32 4, %s13
        $region55: #{encoder_forward.17} parent=46 // pred_fallthru
          _
      $region47: #{encoder_forward.17} parent=5 // pred_fallthru
        _
      %p356 = scmp.le.s32.totalorder 2, %s8
      // Predicated region
      $region56: #{encoder_forward.17} parent=5 // pred_check
        %p357 = pneg %p356
      $region57: #{encoder_forward.17} parent=5 // pred_check_branch
        %359 = sbr.rel (%p357) target = $region59
      $region58: #{encoder_forward.17} parent=5 // pred_region
        %s360 = ssub.s32 %s8, 2
        // Predicated region
        $region60: #{encoder_forward.17} parent=58 // pred_check
          %p361 = pneg %p84
        $region61: #{encoder_forward.17} parent=58 // pred_check_branch
          %363 = sbr.rel (%p361) target = $region63
        $region62: #{encoder_forward.17} parent=58 // pred_region
          %s364 = smul.u32 4, %s14
          %p365 = scmp.lt.s32.totalorder %s364, 11
          %s366 = scalar_select %p365, %s364, 11
          %s367 = scalar_lea.vmem %s2, %s366
        $region63: #{encoder_forward.17} parent=58 // pred_fallthru
          _
      $region59: #{encoder_forward.17} parent=5 // pred_fallthru
        _
    $region6: #{encoder_forward.17} parent=1 // loop_footer
      %s12 = sadd.s32 1, %s8
    $region7: #{encoder_forward.17} parent=1 // loop_footer_branch
      %7 = sbr.rel target = $region3
    $region8: #{encoder_forward.17} parent=1 // loop_exit
      _

// kernel: encoder_forward.18
$region0: #{encoder_forward.18}
  #allocation0 [shape = 'u32[]', space=smem, size = 0x4, offset = 0x4, fixed_abs, tag = 'smem constant byte address 0x4 - core index']
  #allocation1 [shape = 'u32[144,128]{1,0:T(1,128)}', space=vmem, size = 0x12000, scoped, tag = 'internal scratch']
  %s0 = inlined_call_operand.vmem [shape: bf16[16,216], index: 0, kind: input, shape index: {}]
  %s1 = inlined_call_operand.vmem [shape: bf16[216,128], index: 1, kind: input, shape index: {}]
  %s2 = inlined_call_operand.vmem [shape: f32[16,1], index: 2, kind: input, shape index: {}]
  %s3 = inlined_call_operand.vmem [shape: bf16[16,128], index: 3, kind: input, shape index: {}]
  %s4 = inlined_call_operand.vmem [shape: f32[8,128], index: 4, kind: input, shape index: {}]
  %s5 = inlined_call_operand.vmem [shape: f32[8,128], index: 5, kind: output, shape index: {0}]
  %s6 = inlined_call_operand.vmem [shape: bf16[8,128], index: 6, kind: output, shape index: {1}]
  %7 = xla_tuple %s5, %s6
  %s8 = sld [smem:[#allocation0]]
  $region38: #{encoder_forward.18} parent=0
    _
  %s10 = ssub.s32 1, %s8
  %s11 = scalar_select 0, %s10, %s8
  // Predicated region
  $region2: #{encoder_forward.18} parent=0 // pred_check
    _
  $region3: #{encoder_forward.18} parent=0 // pred_check_branch
    %13 = sbr.rel (0) target = $region5
  $region4: #{encoder_forward.18} parent=0 // pred_region
    _
  $region5: #{encoder_forward.18} parent=0 // pred_fallthru
    _
  // Predicated region
  $region6: #{encoder_forward.18} parent=0 // pred_check
    _
  $region7: #{encoder_forward.18} parent=0 // pred_check_branch
    %15 = sbr.rel (0) target = $region9
  $region8: #{encoder_forward.18} parent=0 // pred_region
    _
  $region9: #{encoder_forward.18} parent=0 // pred_fallthru
    _
  // Predicated region
  $region10: #{encoder_forward.18} parent=0 // pred_check
    _
  $region11: #{encoder_forward.18} parent=0 // pred_check_branch
    %17 = sbr.rel (0) target = $region13
  $region12: #{encoder_forward.18} parent=0 // pred_region
    _
  $region13: #{encoder_forward.18} parent=0 // pred_fallthru
    _
  // Predicated region
  $region14: #{encoder_forward.18} parent=0 // pred_check
    _
  $region15: #{encoder_forward.18} parent=0 // pred_check_branch
    %19 = sbr.rel (0) target = $region17
  $region16: #{encoder_forward.18} parent=0 // pred_region
    _
  $region17: #{encoder_forward.18} parent=0 // pred_fallthru
    _
  // Predicated region
  $region18: #{encoder_forward.18} parent=0 // pred_check
    _
  $region19: #{encoder_forward.18} parent=0 // pred_check_branch
    %21 = sbr.rel (0) target = $region21
  $region20: #{encoder_forward.18} parent=0 // pred_region
    _
  $region21: #{encoder_forward.18} parent=0 // pred_fallthru
    _
  %v23 = vld [vmem:[%s0] sm:$0xff]
  %v24 = vld [vmem:[%s0 + $0x8] sm:$0xff]
  %v25 = vld [vmem:[%s1] sm:$0xf]
  %v26 = vld [vmem:[%s1 + $0x4] sm:$0xf]
  %v27 = vld [vmem:[%s1 + $0x8] sm:$0xf]
  %v28 = vld [vmem:[%s1 + $0xc] sm:$0xf]
  %v29 = vld [vmem:[%s1 + $0x10] sm:$0xf]
  %v30 = vld [vmem:[%s1 + $0x14] sm:$0xf]
  %v31 = vld [vmem:[%s1 + $0x18] sm:$0xf]
  %v32 = vld [vmem:[%s1 + $0x1c] sm:$0xf]
  %v33 = vld [vmem:[%s1 + $0x20] sm:$0xf]
  %v34 = vld [vmem:[%s1 + $0x24] sm:$0xf]
  %v35 = vld [vmem:[%s1 + $0x28] sm:$0xf]
  %v36 = vld [vmem:[%s1 + $0x2c] sm:$0xf]
  %v37 = vld [vmem:[%s1 + $0x30] sm:$0xf]
  %v38 = vld [vmem:[%s1 + $0x34] sm:$0xf]
  %v39 = vld [vmem:[%s1 + $0x38] sm:$0xf]
  %v40 = vld [vmem:[%s1 + $0x3c] sm:$0xf]
  %v41 = vld [vmem:[%s1 + $0x40] sm:$0xf]
  %v42 = vld [vmem:[%s1 + $0x44] sm:$0xf]
  %v43 = vld [vmem:[%s1 + $0x48] sm:$0xf]
  %v44 = vld [vmem:[%s1 + $0x4c] sm:$0xf]
  %v45 = vld [vmem:[%s1 + $0x50] sm:$0xf]
  %v46 = vld [vmem:[%s1 + $0x54] sm:$0xf]
  %v47 = vld [vmem:[%s1 + $0x58] sm:$0xf]
  %v48 = vld [vmem:[%s1 + $0x5c] sm:$0xf]
  %v49 = vld [vmem:[%s1 + $0x60] sm:$0xf]
  %v50 = vld [vmem:[%s1 + $0x64] sm:$0xf]
  %v51 = vld [vmem:[%s1 + $0x68] sm:$0xf]
  %v52 = vld [vmem:[%s2] sm:$0xff]
  %v53 = vld [vmem:[%s2 + $0x8] sm:$0xff]
  %55 = vset.pattern.permute.xlu0 0
  %56 = vperm.xlu0 %55, %v52
  %v57 = vpop.permute.xlu0 %56
  %60 = vset.pattern.permute.xlu0 0
  %61 = vperm.xlu0 %60, %v53
  %v62 = vpop.permute.xlu0 %61
  %v66 = vunpack.c.l.b16 %v23
  %v67 = vunpack.c.h.b16 %v23
  %v68 = vunpack.c.l.b16 %v24
  %v69 = vunpack.c.h.b16 %v24
  %v70 = vpack.c.b16 %v68, %v66
  %v71 = vpack.c.b16 %v69, %v67
  %v100 = vunpack.c.l.b16 %v25
  %v101 = vunpack.c.l.b16 %v26
  %v102 = vunpack.c.l.b16 %v27
  %v103 = vunpack.c.l.b16 %v28
  %v104 = vunpack.c.l.b16 %v29
  %v105 = vunpack.c.l.b16 %v30
  %v106 = vunpack.c.l.b16 %v31
  %v107 = vunpack.c.l.b16 %v32
  %v108 = vunpack.c.l.b16 %v33
  %v109 = vunpack.c.l.b16 %v34
  %v110 = vunpack.c.l.b16 %v35
  %v111 = vunpack.c.l.b16 %v36
  %v112 = vunpack.c.l.b16 %v37
  %v113 = vunpack.c.l.b16 %v38
  %v114 = vunpack.c.l.b16 %v39
  %v115 = vunpack.c.l.b16 %v40
  %v116 = vunpack.c.l.b16 %v41
  %v117 = vunpack.c.l.b16 %v42
  %v118 = vunpack.c.l.b16 %v43
  %v119 = vunpack.c.l.b16 %v44
  %v120 = vunpack.c.l.b16 %v45
  %v121 = vunpack.c.l.b16 %v46
  %v122 = vunpack.c.l.b16 %v47
  %v123 = vunpack.c.l.b16 %v48
  %v124 = vunpack.c.l.b16 %v49
  %v125 = vunpack.c.l.b16 %v50
  %v126 = vunpack.c.l.b16 %v51
  %v127 = vpack.c.b16 %v101, %v100
  %v128 = vpack.c.b16 %v103, %v102
  %v129 = vpack.c.b16 %v105, %v104
  %v130 = vpack.c.b16 %v107, %v106
  %v131 = vpack.c.b16 %v109, %v108
  %v132 = vpack.c.b16 %v111, %v110
  %v133 = vpack.c.b16 %v113, %v112
  %v134 = vpack.c.b16 %v115, %v114
  %v135 = vpack.c.b16 %v117, %v116
  %v136 = vpack.c.b16 %v119, %v118
  %v137 = vpack.c.b16 %v121, %v120
  %v138 = vpack.c.b16 %v123, %v122
  %v139 = vpack.c.b16 %v125, %v124
  %v140 = vpack.c.b16 %v126, %v126
  %vm154 = vcmask 719872
  %v156 = vsel %vm154, %v71, 0
  %vm158 = vcmask 1043456
  %v160 = vsel %vm158, %v140, 0
  %162 = vmatprep.subr.bf16.mxu0 0
  %163 = vmatpush1.bf16.msra.mxu0 %v127
  %164 = vmatprep.subr.bf16.mxu0 0
  %165 = vmatpush1.bf16.msra.mxu0 %v128
  %166 = vmatprep.subr.bf16.mxu0 0
  %167 = vmatpush1.bf16.msra.mxu0 %v129
  %168 = vmatprep.subr.bf16.mxu0 0
  %169 = vmatpush1.bf16.msra.mxu0 %v130
  %170 = vmatprep.subr.bf16.mxu0 0
  %171 = vmatpush1.bf16.msra.mxu0 %v131
  %172 = vmatprep.subr.bf16.mxu0 0
  %173 = vmatpush1.bf16.msra.mxu0 %v132
  %174 = vmatprep.subr.bf16.mxu0 0
  %175 = vmatpush1.bf16.msra.mxu0 %v133
  %176 = vmatprep.subr.bf16.mxu0 0
  %177 = vmatpush1.bf16.msra.mxu0 %v134
  %178 = vmatprep.subr.bf16.mxu0 0
  %179 = vmatpush1.bf16.msra.mxu0 %v135
  %180 = vmatprep.subr.bf16.mxu0 0
  %181 = vmatpush1.bf16.msra.mxu0 %v136
  %182 = vmatprep.subr.bf16.mxu0 0
  %183 = vmatpush1.bf16.msra.mxu0 %v137
  %184 = vmatprep.subr.bf16.mxu0 0
  %185 = vmatpush1.bf16.msra.mxu0 %v138
  %186 = vmatprep.subr.bf16.mxu0 0
  %187 = vmatpush1.bf16.msra.mxu0 %v139
  %188 = vmatprep.subr.bf16.mxu0 0
  %189 = vmatpush1.bf16.msra.mxu0 %v160
  %190 = vmatprep.subr.bf16.mxu0 0
  %191 = vmatpush1.bf16.msra.mxu0 0
  %192 = vmatprep.subr.bf16.mxu0 0
  %193 = vmatpush1.bf16.msra.mxu0 0
  %194 = vmatprep.mubr.bf16.mxu0 %v156
  %195 = vmatmul.mubr.bf16.gmra.mrb[0].mxu0 %v70
  %v196 = vpop.f32.mrb[0].mxu0
  %v197 = vadd.f32 %v57, %v196
  %v198 = vpop.f32.mrb[0].mxu0
  %v199 = vpop.f32.mrb[0].mxu0
  %v200 = vadd.f32 %v62, %v199
  %v201 = vpop.f32.mrb[0].mxu0
  %202 = vdwg.mxu0
  %v203 = vld [vmem:[%s3] sm:$0xf]
  %v204 = vld [vmem:[%s3 + $0x4] sm:$0xf]
  %v205 = vunpack.c.l.bf16 %v203
  %v206 = vunpack.c.l.bf16 %v204
  %v207 = vadd.f32 %v197, %v205
  %v208 = vadd.f32 %v200, %v206
  %v209 = vsub.f32 0.0, %v207
  %v210 = vsub.f32 0.0, %v208
  %v211 = vmul.f32 %v209, 1.442695
  %v212 = vpow.pop %v211
  %v213 = vmul.f32 %v210, 1.442695
  %v214 = vpow.pop %v213
  %v215 = vadd.f32 %v212, 1.0
  %v216 = vadd.f32 %v214, 1.0
  %v217 = vrcp.pop %v215
  %v218 = vmul.f32 1.0, %v217
  %v219 = vrcp.pop %v216
  %v220 = vmul.f32 1.0, %v219
  %221 = vst [vmem:[%s5] sm:$0xff] %v218
  %v222 = vld [vmem:[%s4] sm:$0xff]
  %v223 = vmul.f32 %v220, %v222
  %v224 = vpack.c.bf16 %v223, %v223
  %225 = vst [vmem:[%s6] sm:$0xf] %v224
  // Predicated region
  $region22: #{encoder_forward.18} parent=0 // pred_check
    _
  $region23: #{encoder_forward.18} parent=0 // pred_check_branch
    %227 = sbr.rel (0) target = $region25
  $region24: #{encoder_forward.18} parent=0 // pred_region
    _
  $region25: #{encoder_forward.18} parent=0 // pred_fallthru
    _
  // Predicated region
  $region26: #{encoder_forward.18} parent=0 // pred_check
    _
  $region27: #{encoder_forward.18} parent=0 // pred_check_branch
    %229 = sbr.rel (0) target = $region29
  $region28: #{encoder_forward.18} parent=0 // pred_region
    _
  $region29: #{encoder_forward.18} parent=0 // pred_fallthru
    _
  // Predicated region
  $region30: #{encoder_forward.18} parent=0 // pred_check
    _
  $region31: #{encoder_forward.18} parent=0 // pred_check_branch
    %231 = sbr.rel (0) target = $region33
  $region32: #{encoder_forward.18} parent=0 // pred_region
    _
  $region33: #{encoder_forward.18} parent=0 // pred_fallthru
    _
  // Predicated region
  $region34: #{encoder_forward.18} parent=0 // pred_check
    _
  $region35: #{encoder_forward.18} parent=0 // pred_check_branch
    %233 = sbr.rel (0) target = $region37
  $region36: #{encoder_forward.18} parent=0 // pred_region
    _
  $region37: #{encoder_forward.18} parent=0 // pred_fallthru
    _

// kernel: encoder_forward.19
$region0: #{encoder_forward.19}
  #allocation0 [shape = 'u32[]', space=smem, size = 0x4, offset = 0x4, fixed_abs, tag = 'smem constant byte address 0x4 - core index']
  #allocation1 [shape = 'u32[144,128]{1,0:T(1,128)}', space=vmem, size = 0x12000, scoped, tag = 'internal scratch']
  %s0 = inlined_call_operand.vmem [shape: bf16[8,216], index: 0, kind: input, shape index: {}]
  %s1 = inlined_call_operand.vmem [shape: bf16[216,128], index: 1, kind: input, shape index: {}]
  %s2 = inlined_call_operand.vmem [shape: f32[8,1], index: 2, kind: input, shape index: {}]
  %s3 = inlined_call_operand.vmem [shape: bf16[8,128], index: 3, kind: input, shape index: {}]
  %s4 = inlined_call_operand.vmem [shape: f32[8,128], index: 4, kind: input, shape index: {}]
  %s5 = inlined_call_operand.vmem [shape: f32[8,128], index: 5, kind: input, shape index: {}]
  %s6 = inlined_call_operand.vmem [shape: f32[8,128], index: 6, kind: output, shape index: {}]
  %s7 = sld [smem:[#allocation0]]
  $region34: #{encoder_forward.19} parent=0
    _
  %s9 = ssub.s32 1, %s7
  %s10 = scalar_select 0, %s9, %s7
  // Predicated region
  $region2: #{encoder_forward.19} parent=0 // pred_check
    _
  $region3: #{encoder_forward.19} parent=0 // pred_check_branch
    %12 = sbr.rel (0) target = $region5
  $region4: #{encoder_forward.19} parent=0 // pred_region
    _
  $region5: #{encoder_forward.19} parent=0 // pred_fallthru
    _
  // Predicated region
  $region6: #{encoder_forward.19} parent=0 // pred_check
    _
  $region7: #{encoder_forward.19} parent=0 // pred_check_branch
    %14 = sbr.rel (0) target = $region9
  $region8: #{encoder_forward.19} parent=0 // pred_region
    _
  $region9: #{encoder_forward.19} parent=0 // pred_fallthru
    _
  // Predicated region
  $region10: #{encoder_forward.19} parent=0 // pred_check
    _
  $region11: #{encoder_forward.19} parent=0 // pred_check_branch
    %16 = sbr.rel (0) target = $region13
  $region12: #{encoder_forward.19} parent=0 // pred_region
    _
  $region13: #{encoder_forward.19} parent=0 // pred_fallthru
    _
  // Predicated region
  $region14: #{encoder_forward.19} parent=0 // pred_check
    _
  $region15: #{encoder_forward.19} parent=0 // pred_check_branch
    %18 = sbr.rel (0) target = $region17
  $region16: #{encoder_forward.19} parent=0 // pred_region
    _
  $region17: #{encoder_forward.19} parent=0 // pred_fallthru
    _
  // Predicated region
  $region18: #{encoder_forward.19} parent=0 // pred_check
    _
  $region19: #{encoder_forward.19} parent=0 // pred_check_branch
    %20 = sbr.rel (0) target = $region21
  $region20: #{encoder_forward.19} parent=0 // pred_region
    _
  $region21: #{encoder_forward.19} parent=0 // pred_fallthru
    _
  // Predicated region
  $region22: #{encoder_forward.19} parent=0 // pred_check
    _
  $region23: #{encoder_forward.19} parent=0 // pred_check_branch
    %22 = sbr.rel (0) target = $region25
  $region24: #{encoder_forward.19} parent=0 // pred_region
    _
  $region25: #{encoder_forward.19} parent=0 // pred_fallthru
    _
  %v24 = vld [vmem:[%s0] sm:$0xff]
  %v25 = vld [vmem:[%s1] sm:$0xf]
  %v26 = vld [vmem:[%s1 + $0x4] sm:$0xf]
  %v27 = vld [vmem:[%s1 + $0x8] sm:$0xf]
  %v28 = vld [vmem:[%s1 + $0xc] sm:$0xf]
  %v29 = vld [vmem:[%s1 + $0x10] sm:$0xf]
  %v30 = vld [vmem:[%s1 + $0x14] sm:$0xf]
  %v31 = vld [vmem:[%s1 + $0x18] sm:$0xf]
  %v32 = vld [vmem:[%s1 + $0x1c] sm:$0xf]
  %v33 = vld [vmem:[%s1 + $0x20] sm:$0xf]
  %v34 = vld [vmem:[%s1 + $0x24] sm:$0xf]
  %v35 = vld [vmem:[%s1 + $0x28] sm:$0xf]
  %v36 = vld [vmem:[%s1 + $0x2c] sm:$0xf]
  %v37 = vld [vmem:[%s1 + $0x30] sm:$0xf]
  %v38 = vld [vmem:[%s1 + $0x34] sm:$0xf]
  %v39 = vld [vmem:[%s1 + $0x38] sm:$0xf]
  %v40 = vld [vmem:[%s1 + $0x3c] sm:$0xf]
  %v41 = vld [vmem:[%s1 + $0x40] sm:$0xf]
  %v42 = vld [vmem:[%s1 + $0x44] sm:$0xf]
  %v43 = vld [vmem:[%s1 + $0x48] sm:$0xf]
  %v44 = vld [vmem:[%s1 + $0x4c] sm:$0xf]
  %v45 = vld [vmem:[%s1 + $0x50] sm:$0xf]
  %v46 = vld [vmem:[%s1 + $0x54] sm:$0xf]
  %v47 = vld [vmem:[%s1 + $0x58] sm:$0xf]
  %v48 = vld [vmem:[%s1 + $0x5c] sm:$0xf]
  %v49 = vld [vmem:[%s1 + $0x60] sm:$0xf]
  %v50 = vld [vmem:[%s1 + $0x64] sm:$0xf]
  %v51 = vld [vmem:[%s1 + $0x68] sm:$0xf]
  %v52 = vld [vmem:[%s2] sm:$0xff]
  %54 = vset.pattern.permute.xlu0 0
  %55 = vperm.xlu0 %54, %v52
  %v56 = vpop.permute.xlu0 %55
  %v59 = vunpack.c.l.b16 %v24
  %v60 = vunpack.c.h.b16 %v24
  %v61 = vpack.c.b16 %v59, %v59
  %v62 = vpack.c.b16 %v60, %v60
  %v91 = vunpack.c.l.b16 %v25
  %v92 = vunpack.c.l.b16 %v26
  %v93 = vunpack.c.l.b16 %v27
  %v94 = vunpack.c.l.b16 %v28
  %v95 = vunpack.c.l.b16 %v29
  %v96 = vunpack.c.l.b16 %v30
  %v97 = vunpack.c.l.b16 %v31
  %v98 = vunpack.c.l.b16 %v32
  %v99 = vunpack.c.l.b16 %v33
  %v100 = vunpack.c.l.b16 %v34
  %v101 = vunpack.c.l.b16 %v35
  %v102 = vunpack.c.l.b16 %v36
  %v103 = vunpack.c.l.b16 %v37
  %v104 = vunpack.c.l.b16 %v38
  %v105 = vunpack.c.l.b16 %v39
  %v106 = vunpack.c.l.b16 %v40
  %v107 = vunpack.c.l.b16 %v41
  %v108 = vunpack.c.l.b16 %v42
  %v109 = vunpack.c.l.b16 %v43
  %v110 = vunpack.c.l.b16 %v44
  %v111 = vunpack.c.l.b16 %v45
  %v112 = vunpack.c.l.b16 %v46
  %v113 = vunpack.c.l.b16 %v47
  %v114 = vunpack.c.l.b16 %v48
  %v115 = vunpack.c.l.b16 %v49
  %v116 = vunpack.c.l.b16 %v50
  %v117 = vunpack.c.l.b16 %v51
  %v118 = vpack.c.b16 %v92, %v91
  %v119 = vpack.c.b16 %v94, %v93
  %v120 = vpack.c.b16 %v96, %v95
  %v121 = vpack.c.b16 %v98, %v97
  %v122 = vpack.c.b16 %v100, %v99
  %v123 = vpack.c.b16 %v102, %v101
  %v124 = vpack.c.b16 %v104, %v103
  %v125 = vpack.c.b16 %v106, %v105
  %v126 = vpack.c.b16 %v108, %v107
  %v127 = vpack.c.b16 %v110, %v109
  %v128 = vpack.c.b16 %v112, %v111
  %v129 = vpack.c.b16 %v114, %v113
  %v130 = vpack.c.b16 %v116, %v115
  %v131 = vpack.c.b16 %v117, %v117
  %vm145 = vcmask 719872
  %v147 = vsel %vm145, %v62, 0
  %vm149 = vcmask 1043456
  %v151 = vsel %vm149, %v131, 0
  %153 = vmatprep.subr.bf16.mxu0 0
  %154 = vmatpush1.bf16.msra.mxu0 %v118
  %155 = vmatprep.subr.bf16.mxu0 0
  %156 = vmatpush1.bf16.msra.mxu0 %v119
  %157 = vmatprep.subr.bf16.mxu0 0
  %158 = vmatpush1.bf16.msra.mxu0 %v120
  %159 = vmatprep.subr.bf16.mxu0 0
  %160 = vmatpush1.bf16.msra.mxu0 %v121
  %161 = vmatprep.subr.bf16.mxu0 0
  %162 = vmatpush1.bf16.msra.mxu0 %v122
  %163 = vmatprep.subr.bf16.mxu0 0
  %164 = vmatpush1.bf16.msra.mxu0 %v123
  %165 = vmatprep.subr.bf16.mxu0 0
  %166 = vmatpush1.bf16.msra.mxu0 %v124
  %167 = vmatprep.subr.bf16.mxu0 0
  %168 = vmatpush1.bf16.msra.mxu0 %v125
  %169 = vmatprep.subr.bf16.mxu0 0
  %170 = vmatpush1.bf16.msra.mxu0 %v126
  %171 = vmatprep.subr.bf16.mxu0 0
  %172 = vmatpush1.bf16.msra.mxu0 %v127
  %173 = vmatprep.subr.bf16.mxu0 0
  %174 = vmatpush1.bf16.msra.mxu0 %v128
  %175 = vmatprep.subr.bf16.mxu0 0
  %176 = vmatpush1.bf16.msra.mxu0 %v129
  %177 = vmatprep.subr.bf16.mxu0 0
  %178 = vmatpush1.bf16.msra.mxu0 %v130
  %179 = vmatprep.subr.bf16.mxu0 0
  %180 = vmatpush1.bf16.msra.mxu0 %v151
  %181 = vmatprep.subr.bf16.mxu0 0
  %182 = vmatpush1.bf16.msra.mxu0 0
  %183 = vmatprep.subr.bf16.mxu0 0
  %184 = vmatpush1.bf16.msra.mxu0 0
  %185 = vmatprep.mubr.bf16.mxu0 %v147
  %186 = vmatmul.mubr.bf16.gmra.mrb[0].mxu0 %v61
  %v187 = vpop.f32.mrb[0].mxu0
  %v188 = vadd.f32 %v56, %v187
  %v189 = vpop.f32.mrb[0].mxu0
  %v190 = vpop.f32.mrb[0].mxu0
  %v191 = vpop.f32.mrb[0].mxu0
  %192 = vdwg.mxu0
  %v193 = vld [vmem:[%s3] sm:$0xf]
  %v194 = vunpack.c.l.bf16 %v193
  %v195 = vadd.f32 %v188, %v194
  %v196 = vtanh.pop %v195
  %v197 = vld [vmem:[%s4] sm:$0xff]
  %v198 = vld [vmem:[%s5] sm:$0xff]
  %v199 = vmul.f32 %v197, %v198
  %v200 = vsub.f32 1.0, %v197
  %v201 = vmul.f32 %v200, %v196
  %v202 = vadd.f32 %v199, %v201
  %203 = vst [vmem:[%s6] sm:$0xff] %v202
  // Predicated region
  $region26: #{encoder_forward.19} parent=0 // pred_check
    _
  $region27: #{encoder_forward.19} parent=0 // pred_check_branch
    %205 = sbr.rel (0) target = $region29
  $region28: #{encoder_forward.19} parent=0 // pred_region
    _
  $region29: #{encoder_forward.19} parent=0 // pred_fallthru
    _
  // Predicated region
  $region30: #{encoder_forward.19} parent=0 // pred_check
    _
  $region31: #{encoder_forward.19} parent=0 // pred_check_branch
    %207 = sbr.rel (0) target = $region33
  $region32: #{encoder_forward.19} parent=0 // pred_region
    _
  $region33: #{encoder_forward.19} parent=0 // pred_fallthru
    _

</llo_original>
